<compile_context>
chip_gen: v5e
topology: v5e:2x2
jax: 0.10.0
libtpu: 0.0.40
codegen_flags: <defaults>
</compile_context>

<pallas_src>
import numpy as np
import jax
import jax.numpy as jnp
from jax.experimental import pallas as pl
from jax.experimental.pallas import tpu as pltpu


BT = 8  # batch tile (sublane-aligned)


# ----------------------------------------------------------------------------
# Fused LeNet-5 kernel (8 images per grid step)
# ----------------------------------------------------------------------------
def _lenet5_kernel(x_ref, w1_ref, b1_ref, w2_ref, b2_ref,
                   wf1_ref, bf1_ref, wf2_ref, bf2_ref, wf3_ref, bf3_ref,
                   o_ref):
    f32 = jnp.float32
    bt = x_ref.shape[0]                                       # 8

    x = x_ref[...]                                            # (bt, 32, 32)

    # ---- conv1 (5x5, pad 2) as ONE banded matmul, K = 5*32 ------------------
    # LHS lane t = i*32 + w_in  (5 row-shifted copies of the padded image).
    # Output lane = (xo%2)*128 + c*16 + xo//2  -> W-pool is a half-vs-half max.
    lhs1 = jnp.concatenate([x[:, i:i + 28, :] for i in range(5)], axis=-1)
    lhs1 = lhs1.reshape(bt * 28, 5 * 32)                      # (bt*28, 160)
    h = jnp.dot(lhs1, w1_ref[...], preferred_element_type=f32)  # (bt*28, 256)
    h = jnp.maximum(h + b1_ref[...], 0.0)

    # ---- maxpool 2x2 ---------------------------------------------------------
    h = h.reshape(bt, 14, 2, 256)
    h = jnp.maximum(h[:, :, 0, :], h[:, :, 1, :])             # H pool (sublanes)
    h = jnp.maximum(h[:, :, :128], h[:, :, 128:])             # W pool (lane halves)
    # h: (bt, 14, 128), lane = c*16 + x  (x in 0..13 live; c in 0..5 live)

    # ---- conv2 (5x5, valid) as ONE banded matmul, K = 5*128 ------------------
    lhs2 = jnp.concatenate([h[:, i:i + 10, :] for i in range(5)], axis=-1)
    lhs2 = lhs2.reshape(bt * 10, 5 * 128)                     # (bt*10, 640)
    h = jnp.dot(lhs2, w2_ref[...], preferred_element_type=f32)  # (bt*10, 256)
    h = jnp.maximum(h + b2_ref[...], 0.0)

    # ---- maxpool 2x2 ---------------------------------------------------------
    h = h.reshape(bt, 5, 2, 256)
    h = jnp.maximum(h[:, :, 0, :], h[:, :, 1, :])             # (bt, 5, 256)
    h = jnp.maximum(h[:, :, :128], h[:, :, 128:])             # (bt, 5, 128)
    # lane = co*8 + x  (x in 0..4 live)

    # ---- fc1: 5 accumulated (bt,128)x(128,128) matmuls (one per pooled row) --
    z = jnp.dot(h[:, 0, :], wf1_ref[0], preferred_element_type=f32)
    for y in range(1, 5):
        z = z + jnp.dot(h[:, y, :], wf1_ref[y], preferred_element_type=f32)
    z = jnp.maximum(z + bf1_ref[...], 0.0)                    # (bt, 128)

    # ---- fc2 + ReLU, fc3 (lane-dense) ----------------------------------------
    z = jnp.maximum(
        jnp.dot(z, wf2_ref[...], preferred_element_type=f32) + bf2_ref[...], 0.0)
    z = jnp.dot(z, wf3_ref[...], preferred_element_type=f32) + bf3_ref[...]

    o_ref[...] = z.astype(o_ref.dtype)                        # (bt, 128) unmasked


# ----------------------------------------------------------------------------
# Parameter init (PyTorch layout) and one-time packing for the kernel
# ----------------------------------------------------------------------------
def init_params(key):
    ks = jax.random.split(key, 10)
    s = 0.1
    return {
        "conv1_w": jax.random.normal(ks[0], (6, 1, 5, 5), jnp.float32) * s,
        "conv1_b": jax.random.normal(ks[1], (6,), jnp.float32) * s,
        "conv2_w": jax.random.normal(ks[2], (16, 6, 5, 5), jnp.float32) * s,
        "conv2_b": jax.random.normal(ks[3], (16,), jnp.float32) * s,
        "fc1_w": jax.random.normal(ks[4], (120, 400), jnp.float32) * s,
        "fc1_b": jax.random.normal(ks[5], (120,), jnp.float32) * s,
        "fc2_w": jax.random.normal(ks[6], (80, 120), jnp.float32) * s,
        "fc2_b": jax.random.normal(ks[7], (80,), jnp.float32) * s,
        "fc3_w": jax.random.normal(ks[8], (10, 80), jnp.float32) * s,
        "fc3_b": jax.random.normal(ks[9], (10,), jnp.float32) * s,
    }


def pack_params(p):
    """Pack PyTorch-layout params into banded / lane-dense kernel operands.

    Zero-padded rows/columns stay exactly zero through ReLU, so padded channel
    and spatial slots never contaminate live outputs.
    """
    cw1 = np.asarray(p["conv1_w"]); cb1 = np.asarray(p["conv1_b"])
    cw2 = np.asarray(p["conv2_w"]); cb2 = np.asarray(p["conv2_b"])
    fw1 = np.asarray(p["fc1_w"]);   fb1 = np.asarray(p["fc1_b"])
    fw2 = np.asarray(p["fc2_w"]);   fb2 = np.asarray(p["fc2_b"])
    fw3 = np.asarray(p["fc3_w"]);   fb3 = np.asarray(p["fc3_b"])

    # conv1 band: row = i*32 + w_in ; col = (xo%2)*128 + c*16 + xo//2
    w1 = np.zeros((160, 256), np.float32)
    b1 = np.zeros((1, 256), np.float32)
    for c in range(6):
        for xo in range(28):
            col = (xo % 2) * 128 + c * 16 + xo // 2
            b1[0, col] = cb1[c]
            for i in range(5):
                for j in range(5):
                    w1[i * 32 + xo + j, col] = cw1[c, 0, i, j]

    # conv2 band: row = i*128 + ci*16 + w_in ; col = (xo%2)*128 + co*8 + xo//2
    w2 = np.zeros((640, 256), np.float32)
    b2 = np.zeros((1, 256), np.float32)
    for co in range(16):
        for xo in range(10):
            col = (xo % 2) * 128 + co * 8 + xo // 2
            b2[0, col] = cb2[co]
            for ci in range(6):
                for i in range(5):
                    for j in range(5):
                        w2[i * 128 + ci * 16 + xo + j, col] = cw2[co, ci, i, j]

    # fc1: per pooled row y, lane layout co*8 + x ; PyTorch flatten c*25+y*5+x
    wf1 = np.zeros((5, 128, 128), np.float32)
    for y in range(5):
        for c in range(16):
            for x in range(5):
                wf1[y, c * 8 + x, :120] = fw1[:, c * 25 + y * 5 + x]
    bf1 = np.zeros((1, 128), np.float32); bf1[0, :120] = fb1

    wf2 = np.zeros((128, 128), np.float32); wf2[:120, :80] = fw2.T
    bf2 = np.zeros((1, 128), np.float32);   bf2[0, :80] = fb2
    wf3 = np.zeros((128, 128), np.float32); wf3[:80, :10] = fw3.T
    bf3 = np.zeros((1, 128), np.float32);   bf3[0, :10] = fb3

    return tuple(jnp.asarray(a) for a in
                 (w1, b1, w2, b2, wf1, bf1, wf2, bf2, wf3, bf3))


# ----------------------------------------------------------------------------
# Forward pass
# ----------------------------------------------------------------------------
@jax.jit
def lenet5_forward(packed, x):
    # x: (B, 1, 28, 28) float32 NCHW, exactly like the PyTorch module.
    B = x.shape[0]
    x = x.reshape(B, 28, 28).astype(jnp.float32)
    x = jnp.pad(x, ((0, 0), (2, 2), (2, 2)))                  # (B, 32, 32)

    nblk = (B + BT - 1) // BT
    Bp = nblk * BT
    if Bp != B:                                               # pad tail block
        x = jnp.pad(x, ((0, Bp - B), (0, 0), (0, 0)))

    w1, b1, w2, b2, wf1, bf1, wf2, bf2, wf3, bf3 = packed
    c2 = lambda i: (0, 0)
    c3 = lambda i: (0, 0, 0)

    out = pl.pallas_call(
        _lenet5_kernel,
        out_shape=jax.ShapeDtypeStruct((Bp, 128), jnp.float32),
        grid=(nblk,),
        in_specs=[
            pl.BlockSpec((BT, 32, 32), lambda i: (i, 0, 0)),  # image tile
            pl.BlockSpec((160, 256), c2),                     # conv1 band
            pl.BlockSpec((1, 256), c2),                       # conv1 bias
            pl.BlockSpec((640, 256), c2),                     # conv2 band
            pl.BlockSpec((1, 256), c2),                       # conv2 bias
            pl.BlockSpec((5, 128, 128), c3),                  # fc1 w (per row)
            pl.BlockSpec((1, 128), c2),                       # fc1 b
            pl.BlockSpec((128, 128), c2),                     # fc2 w
            pl.BlockSpec((1, 128), c2),                       # fc2 b
            pl.BlockSpec((128, 128), c2),                     # fc3 w
            pl.BlockSpec((1, 128), c2),                       # fc3 b
        ],
        out_specs=pl.BlockSpec((BT, 128), lambda i: (i, 0)),
        compiler_params=pltpu.CompilerParams(
            dimension_semantics=("parallel",),
            vmem_limit_bytes=32 * 1024 * 1024,
        ),
    )(x, w1, b1, w2, b2, wf1, bf1, wf2, bf2, wf3, bf3)

    return out[:B, :10]                                       # (B, 10) logits


# ----------------------------------------------------------------------------
# Pure-JAX reference (mirrors the PyTorch module) for a correctness check
# ----------------------------------------------------------------------------
def _reference_forward(params, x):
    def conv2d(h, w, b, pad):
        if pad:
            h = jnp.pad(h, ((0, 0), (0, 0), (pad, pad), (pad, pad)))
        k = w.shape[-1]
        oh, ow = h.shape[2] - k + 1, h.shape[3] - k + 1
        out = jnp.zeros((h.shape[0], w.shape[0], oh, ow), jnp.float32)
        out = out + b[None, :, None, None]
        for i in range(k):
            for j in range(k):
                out = out + jnp.einsum("bchw,oc->bohw",
                                       h[:, :, i:i + oh, j:j + ow], w[:, :, i, j],
                                       precision="highest")
        return out

    def pool(h):
        b, c, hh, ww = h.shape
        return jnp.max(h.reshape(b, c, hh // 2, 2, ww // 2, 2), axis=(3, 5))

    h = jax.nn.relu(conv2d(x, params["conv1_w"], params["conv1_b"], 2))
    h = pool(h)
    h = jax.nn.relu(conv2d(h, params["conv2_w"], params["conv2_b"], 0))
    h = pool(h)
    h = h.reshape(x.shape[0], -1)
    h = jax.nn.relu(jnp.dot(h, params["fc1_w"].T, precision="highest") + params["fc1_b"])
    h = jax.nn.relu(jnp.dot(h, params["fc2_w"].T, precision="highest") + params["fc2_b"])
    return jnp.dot(h, params["fc3_w"].T, precision="highest") + params["fc3_b"]


if __name__ == "__main__":
    key = jax.random.PRNGKey(0)
    pkey, xkey = jax.random.split(key)
    params = init_params(pkey)
    packed = pack_params(params)

    # LeNet-5 requires 28x28 single-channel input for the 16*5*5 flatten to hold.
    x = jax.random.normal(xkey, (16, 1, 28, 28), jnp.float32)

    out = lenet5_forward(packed, x)
    jax.block_until_ready(out)
    assert out.shape == (16, 10) and out.dtype == jnp.float32

    ref = _reference_forward(params, x)
    max_err = float(jnp.max(jnp.abs(out - ref)))
    assert max_err < 2e-3, f"kernel/reference mismatch: {max_err}"

    print("KERNEL_OK")
</pallas_src>

<mosaic_0001>
module attributes {stable_mosaic.version = 11 : i64} {
  func.func @_lenet5_kernel(%arg0: i32, %arg1: memref<8x32x32xf32, #tpu.memory_space<vmem>>, %arg2: memref<160x256xf32, #tpu.memory_space<vmem>>, %arg3: memref<1x256xf32, #tpu.memory_space<vmem>>, %arg4: memref<640x256xf32, #tpu.memory_space<vmem>>, %arg5: memref<1x256xf32, #tpu.memory_space<vmem>>, %arg6: memref<5x128x128xf32, #tpu.memory_space<vmem>>, %arg7: memref<1x128xf32, #tpu.memory_space<vmem>>, %arg8: memref<128x128xf32, #tpu.memory_space<vmem>>, %arg9: memref<1x128xf32, #tpu.memory_space<vmem>>, %arg10: memref<128x128xf32, #tpu.memory_space<vmem>>, %arg11: memref<1x128xf32, #tpu.memory_space<vmem>>, %arg12: memref<8x128xf32, #tpu.memory_space<vmem>>) attributes {dimension_semantics = [#tpu.dimension_semantics<parallel>], iteration_bounds = array<i64: 2>, scalar_prefetch = 0 : i64, scratch_operands = 0 : i64, tpu.core_type = #tpu.core_type<tc>, window_params = [{transform_indices = @transform_0, window_bounds = array<i64: 8, 32, 32>}, {pipeline_mode = #tpu.pipeline_mode<synchronous>, transform_indices = @transform_1, window_bounds = array<i64: 160, 256>}, {pipeline_mode = #tpu.pipeline_mode<synchronous>, transform_indices = @transform_2, window_bounds = array<i64: 1, 256>}, {pipeline_mode = #tpu.pipeline_mode<synchronous>, transform_indices = @transform_3, window_bounds = array<i64: 640, 256>}, {pipeline_mode = #tpu.pipeline_mode<synchronous>, transform_indices = @transform_4, window_bounds = array<i64: 1, 256>}, {pipeline_mode = #tpu.pipeline_mode<synchronous>, transform_indices = @transform_5, window_bounds = array<i64: 5, 128, 128>}, {pipeline_mode = #tpu.pipeline_mode<synchronous>, transform_indices = @transform_6, window_bounds = array<i64: 1, 128>}, {pipeline_mode = #tpu.pipeline_mode<synchronous>, transform_indices = @transform_7, window_bounds = array<i64: 128, 128>}, {pipeline_mode = #tpu.pipeline_mode<synchronous>, transform_indices = @transform_8, window_bounds = array<i64: 1, 128>}, {pipeline_mode = #tpu.pipeline_mode<synchronous>, transform_indices = @transform_9, window_bounds = array<i64: 128, 128>}, {pipeline_mode = #tpu.pipeline_mode<synchronous>, transform_indices = @transform_10, window_bounds = array<i64: 1, 128>}, {transform_indices = @transform_11, window_bounds = array<i64: 8, 128>}]} {
    %c0 = arith.constant 0 : index
    %c0_0 = arith.constant 0 : index
    %c0_1 = arith.constant 0 : index
    %0 = vector.load %arg1[%c0, %c0_0, %c0_1] : memref<8x32x32xf32, #tpu.memory_space<vmem>>, vector<8x32x32xf32>
    %1 = vector.extract_strided_slice %0 {offsets = [0, 0, 0], sizes = [8, 28, 32], strides = [1, 1, 1]} : vector<8x32x32xf32> to vector<8x28x32xf32>
    %2 = vector.extract_strided_slice %0 {offsets = [0, 1, 0], sizes = [8, 28, 32], strides = [1, 1, 1]} : vector<8x32x32xf32> to vector<8x28x32xf32>
    %3 = vector.extract_strided_slice %0 {offsets = [0, 2, 0], sizes = [8, 28, 32], strides = [1, 1, 1]} : vector<8x32x32xf32> to vector<8x28x32xf32>
    %4 = vector.extract_strided_slice %0 {offsets = [0, 3, 0], sizes = [8, 28, 32], strides = [1, 1, 1]} : vector<8x32x32xf32> to vector<8x28x32xf32>
    %5 = vector.extract_strided_slice %0 {offsets = [0, 4, 0], sizes = [8, 28, 32], strides = [1, 1, 1]} : vector<8x32x32xf32> to vector<8x28x32xf32>
    %6 = tpu.concatenate %1, %2, %3, %4, %5 in 2 : vector<8x28x32xf32>, vector<8x28x32xf32>, vector<8x28x32xf32>, vector<8x28x32xf32>, vector<8x28x32xf32> -> vector<8x28x160xf32>
    %7 = vector.shape_cast %6 : vector<8x28x160xf32> to vector<224x160xf32>
    %c0_2 = arith.constant 0 : index
    %c0_3 = arith.constant 0 : index
    %8 = vector.load %arg2[%c0_2, %c0_3] : memref<160x256xf32, #tpu.memory_space<vmem>>, vector<160x256xf32>
    %cst = arith.constant dense<0.000000e+00> : vector<224x256xf32>
    %9 = tpu.matmul %7, %8, %cst {dimension_numbers = #tpu.dot_dimension_numbers<[1], [0], [0], [1], [0, 0, 1, 1], [], []>} : vector<224x160xf32>, vector<160x256xf32>, vector<224x256xf32> -> vector<224x256xf32>
    %c0_4 = arith.constant 0 : index
    %c0_5 = arith.constant 0 : index
    %10 = vector.load %arg3[%c0_4, %c0_5] : memref<1x256xf32, #tpu.memory_space<vmem>>, vector<1x256xf32>
    %11 = vector.broadcast %10 : vector<1x256xf32> to vector<224x256xf32>
    %12 = arith.addf %9, %11 : vector<224x256xf32>
    %cst_6 = arith.constant 0.000000e+00 : f32
    %13 = vector.broadcast %cst_6 : f32 to vector<224x256xf32>
    %14 = arith.maximumf %12, %13 : vector<224x256xf32>
    %15 = vector.shape_cast %14 : vector<224x256xf32> to vector<8x14x2x256xf32>
    %16 = vector.extract_strided_slice %15 {offsets = [0, 0, 0, 0], sizes = [8, 14, 1, 256], strides = [1, 1, 1, 1]} : vector<8x14x2x256xf32> to vector<8x14x1x256xf32>
    %17 = vector.shape_cast %16 : vector<8x14x1x256xf32> to vector<8x14x256xf32>
    %18 = vector.extract_strided_slice %15 {offsets = [0, 0, 1, 0], sizes = [8, 14, 1, 256], strides = [1, 1, 1, 1]} : vector<8x14x2x256xf32> to vector<8x14x1x256xf32>
    %19 = vector.shape_cast %18 : vector<8x14x1x256xf32> to vector<8x14x256xf32>
    %20 = arith.maximumf %17, %19 : vector<8x14x256xf32>
    %21 = vector.extract_strided_slice %20 {offsets = [0, 0, 0], sizes = [8, 14, 128], strides = [1, 1, 1]} : vector<8x14x256xf32> to vector<8x14x128xf32>
    %22 = vector.extract_strided_slice %20 {offsets = [0, 0, 128], sizes = [8, 14, 128], strides = [1, 1, 1]} : vector<8x14x256xf32> to vector<8x14x128xf32>
    %23 = arith.maximumf %21, %22 : vector<8x14x128xf32>
    %24 = vector.extract_strided_slice %23 {offsets = [0, 0, 0], sizes = [8, 10, 128], strides = [1, 1, 1]} : vector<8x14x128xf32> to vector<8x10x128xf32>
    %25 = vector.extract_strided_slice %23 {offsets = [0, 1, 0], sizes = [8, 10, 128], strides = [1, 1, 1]} : vector<8x14x128xf32> to vector<8x10x128xf32>
    %26 = vector.extract_strided_slice %23 {offsets = [0, 2, 0], sizes = [8, 10, 128], strides = [1, 1, 1]} : vector<8x14x128xf32> to vector<8x10x128xf32>
    %27 = vector.extract_strided_slice %23 {offsets = [0, 3, 0], sizes = [8, 10, 128], strides = [1, 1, 1]} : vector<8x14x128xf32> to vector<8x10x128xf32>
    %28 = vector.extract_strided_slice %23 {offsets = [0, 4, 0], sizes = [8, 10, 128], strides = [1, 1, 1]} : vector<8x14x128xf32> to vector<8x10x128xf32>
    %29 = tpu.concatenate %24, %25, %26, %27, %28 in 2 : vector<8x10x128xf32>, vector<8x10x128xf32>, vector<8x10x128xf32>, vector<8x10x128xf32>, vector<8x10x128xf32> -> vector<8x10x640xf32>
    %30 = vector.shape_cast %29 : vector<8x10x640xf32> to vector<80x640xf32>
    %c0_7 = arith.constant 0 : index
    %c0_8 = arith.constant 0 : index
    %31 = vector.load %arg4[%c0_7, %c0_8] : memref<640x256xf32, #tpu.memory_space<vmem>>, vector<640x256xf32>
    %cst_9 = arith.constant dense<0.000000e+00> : vector<80x256xf32>
    %32 = tpu.matmul %30, %31, %cst_9 {dimension_numbers = #tpu.dot_dimension_numbers<[1], [0], [0], [1], [0, 0, 1, 1], [], []>} : vector<80x640xf32>, vector<640x256xf32>, vector<80x256xf32> -> vector<80x256xf32>
    %c0_10 = arith.constant 0 : index
    %c0_11 = arith.constant 0 : index
    %33 = vector.load %arg5[%c0_10, %c0_11] : memref<1x256xf32, #tpu.memory_space<vmem>>, vector<1x256xf32>
    %34 = vector.broadcast %33 : vector<1x256xf32> to vector<80x256xf32>
    %35 = arith.addf %32, %34 : vector<80x256xf32>
    %cst_12 = arith.constant 0.000000e+00 : f32
    %36 = vector.broadcast %cst_12 : f32 to vector<80x256xf32>
    %37 = arith.maximumf %35, %36 : vector<80x256xf32>
    %38 = vector.shape_cast %37 : vector<80x256xf32> to vector<8x5x2x256xf32>
    %39 = vector.extract_strided_slice %38 {offsets = [0, 0, 0, 0], sizes = [8, 5, 1, 256], strides = [1, 1, 1, 1]} : vector<8x5x2x256xf32> to vector<8x5x1x256xf32>
    %40 = vector.shape_cast %39 : vector<8x5x1x256xf32> to vector<8x5x256xf32>
    %41 = vector.extract_strided_slice %38 {offsets = [0, 0, 1, 0], sizes = [8, 5, 1, 256], strides = [1, 1, 1, 1]} : vector<8x5x2x256xf32> to vector<8x5x1x256xf32>
    %42 = vector.shape_cast %41 : vector<8x5x1x256xf32> to vector<8x5x256xf32>
    %43 = arith.maximumf %40, %42 : vector<8x5x256xf32>
    %44 = vector.extract_strided_slice %43 {offsets = [0, 0, 0], sizes = [8, 5, 128], strides = [1, 1, 1]} : vector<8x5x256xf32> to vector<8x5x128xf32>
    %45 = vector.extract_strided_slice %43 {offsets = [0, 0, 128], sizes = [8, 5, 128], strides = [1, 1, 1]} : vector<8x5x256xf32> to vector<8x5x128xf32>
    %46 = arith.maximumf %44, %45 : vector<8x5x128xf32>
    %47 = vector.extract_strided_slice %46 {offsets = [0, 0, 0], sizes = [8, 1, 128], strides = [1, 1, 1]} : vector<8x5x128xf32> to vector<8x1x128xf32>
    %48 = vector.shape_cast %47 : vector<8x1x128xf32> to vector<8x128xf32>
    %c0_13 = arith.constant 0 : index
    %c0_14 = arith.constant 0 : index
    %c0_15 = arith.constant 0 : index
    %49 = vector.load %arg6[%c0_13, %c0_14, %c0_15] : memref<5x128x128xf32, #tpu.memory_space<vmem>>, vector<1x128x128xf32>
    %50 = vector.shape_cast %49 : vector<1x128x128xf32> to vector<128x128xf32>
    %cst_16 = arith.constant dense<0.000000e+00> : vector<8x128xf32>
    %51 = tpu.matmul %48, %50, %cst_16 {dimension_numbers = #tpu.dot_dimension_numbers<[1], [0], [0], [1], [0, 0, 1, 1], [], []>} : vector<8x128xf32>, vector<128x128xf32>, vector<8x128xf32> -> vector<8x128xf32>
    %52 = vector.extract_strided_slice %46 {offsets = [0, 1, 0], sizes = [8, 1, 128], strides = [1, 1, 1]} : vector<8x5x128xf32> to vector<8x1x128xf32>
    %53 = vector.shape_cast %52 : vector<8x1x128xf32> to vector<8x128xf32>
    %c1 = arith.constant 1 : index
    %c0_17 = arith.constant 0 : index
    %c0_18 = arith.constant 0 : index
    %54 = vector.load %arg6[%c1, %c0_17, %c0_18] : memref<5x128x128xf32, #tpu.memory_space<vmem>>, vector<1x128x128xf32>
    %55 = vector.shape_cast %54 : vector<1x128x128xf32> to vector<128x128xf32>
    %cst_19 = arith.constant dense<0.000000e+00> : vector<8x128xf32>
    %56 = tpu.matmul %53, %55, %cst_19 {dimension_numbers = #tpu.dot_dimension_numbers<[1], [0], [0], [1], [0, 0, 1, 1], [], []>} : vector<8x128xf32>, vector<128x128xf32>, vector<8x128xf32> -> vector<8x128xf32>
    %57 = arith.addf %51, %56 : vector<8x128xf32>
    %58 = vector.extract_strided_slice %46 {offsets = [0, 2, 0], sizes = [8, 1, 128], strides = [1, 1, 1]} : vector<8x5x128xf32> to vector<8x1x128xf32>
    %59 = vector.shape_cast %58 : vector<8x1x128xf32> to vector<8x128xf32>
    %c2 = arith.constant 2 : index
    %c0_20 = arith.constant 0 : index
    %c0_21 = arith.constant 0 : index
    %60 = vector.load %arg6[%c2, %c0_20, %c0_21] : memref<5x128x128xf32, #tpu.memory_space<vmem>>, vector<1x128x128xf32>
    %61 = vector.shape_cast %60 : vector<1x128x128xf32> to vector<128x128xf32>
    %cst_22 = arith.constant dense<0.000000e+00> : vector<8x128xf32>
    %62 = tpu.matmul %59, %61, %cst_22 {dimension_numbers = #tpu.dot_dimension_numbers<[1], [0], [0], [1], [0, 0, 1, 1], [], []>} : vector<8x128xf32>, vector<128x128xf32>, vector<8x128xf32> -> vector<8x128xf32>
    %63 = arith.addf %57, %62 : vector<8x128xf32>
    %64 = vector.extract_strided_slice %46 {offsets = [0, 3, 0], sizes = [8, 1, 128], strides = [1, 1, 1]} : vector<8x5x128xf32> to vector<8x1x128xf32>
    %65 = vector.shape_cast %64 : vector<8x1x128xf32> to vector<8x128xf32>
    %c3 = arith.constant 3 : index
    %c0_23 = arith.constant 0 : index
    %c0_24 = arith.constant 0 : index
    %66 = vector.load %arg6[%c3, %c0_23, %c0_24] : memref<5x128x128xf32, #tpu.memory_space<vmem>>, vector<1x128x128xf32>
    %67 = vector.shape_cast %66 : vector<1x128x128xf32> to vector<128x128xf32>
    %cst_25 = arith.constant dense<0.000000e+00> : vector<8x128xf32>
    %68 = tpu.matmul %65, %67, %cst_25 {dimension_numbers = #tpu.dot_dimension_numbers<[1], [0], [0], [1], [0, 0, 1, 1], [], []>} : vector<8x128xf32>, vector<128x128xf32>, vector<8x128xf32> -> vector<8x128xf32>
    %69 = arith.addf %63, %68 : vector<8x128xf32>
    %70 = vector.extract_strided_slice %46 {offsets = [0, 4, 0], sizes = [8, 1, 128], strides = [1, 1, 1]} : vector<8x5x128xf32> to vector<8x1x128xf32>
    %71 = vector.shape_cast %70 : vector<8x1x128xf32> to vector<8x128xf32>
    %c4 = arith.constant 4 : index
    %c0_26 = arith.constant 0 : index
    %c0_27 = arith.constant 0 : index
    %72 = vector.load %arg6[%c4, %c0_26, %c0_27] : memref<5x128x128xf32, #tpu.memory_space<vmem>>, vector<1x128x128xf32>
    %73 = vector.shape_cast %72 : vector<1x128x128xf32> to vector<128x128xf32>
    %cst_28 = arith.constant dense<0.000000e+00> : vector<8x128xf32>
    %74 = tpu.matmul %71, %73, %cst_28 {dimension_numbers = #tpu.dot_dimension_numbers<[1], [0], [0], [1], [0, 0, 1, 1], [], []>} : vector<8x128xf32>, vector<128x128xf32>, vector<8x128xf32> -> vector<8x128xf32>
    %75 = arith.addf %69, %74 : vector<8x128xf32>
    %c0_29 = arith.constant 0 : index
    %c0_30 = arith.constant 0 : index
    %76 = vector.load %arg7[%c0_29, %c0_30] : memref<1x128xf32, #tpu.memory_space<vmem>>, vector<1x128xf32>
    %77 = vector.broadcast %76 : vector<1x128xf32> to vector<8x128xf32>
    %78 = arith.addf %75, %77 : vector<8x128xf32>
    %cst_31 = arith.constant 0.000000e+00 : f32
    %79 = vector.broadcast %cst_31 : f32 to vector<8x128xf32>
    %80 = arith.maximumf %78, %79 : vector<8x128xf32>
    %c0_32 = arith.constant 0 : index
    %c0_33 = arith.constant 0 : index
    %81 = vector.load %arg8[%c0_32, %c0_33] : memref<128x128xf32, #tpu.memory_space<vmem>>, vector<128x128xf32>
    %cst_34 = arith.constant dense<0.000000e+00> : vector<8x128xf32>
    %82 = tpu.matmul %80, %81, %cst_34 {dimension_numbers = #tpu.dot_dimension_numbers<[1], [0], [0], [1], [0, 0, 1, 1], [], []>} : vector<8x128xf32>, vector<128x128xf32>, vector<8x128xf32> -> vector<8x128xf32>
    %c0_35 = arith.constant 0 : index
    %c0_36 = arith.constant 0 : index
    %83 = vector.load %arg9[%c0_35, %c0_36] : memref<1x128xf32, #tpu.memory_space<vmem>>, vector<1x128xf32>
    %84 = vector.broadcast %83 : vector<1x128xf32> to vector<8x128xf32>
    %85 = arith.addf %82, %84 : vector<8x128xf32>
    %cst_37 = arith.constant 0.000000e+00 : f32
    %86 = vector.broadcast %cst_37 : f32 to vector<8x128xf32>
    %87 = arith.maximumf %85, %86 : vector<8x128xf32>
    %c0_38 = arith.constant 0 : index
    %c0_39 = arith.constant 0 : index
    %88 = vector.load %arg10[%c0_38, %c0_39] : memref<128x128xf32, #tpu.memory_space<vmem>>, vector<128x128xf32>
    %cst_40 = arith.constant dense<0.000000e+00> : vector<8x128xf32>
    %89 = tpu.matmul %87, %88, %cst_40 {dimension_numbers = #tpu.dot_dimension_numbers<[1], [0], [0], [1], [0, 0, 1, 1], [], []>} : vector<8x128xf32>, vector<128x128xf32>, vector<8x128xf32> -> vector<8x128xf32>
    %c0_41 = arith.constant 0 : index
    %c0_42 = arith.constant 0 : index
    %90 = vector.load %arg11[%c0_41, %c0_42] : memref<1x128xf32, #tpu.memory_space<vmem>>, vector<1x128xf32>
    %91 = vector.broadcast %90 : vector<1x128xf32> to vector<8x128xf32>
    %92 = arith.addf %89, %91 : vector<8x128xf32>
    %c0_43 = arith.constant 0 : index
    %c0_44 = arith.constant 0 : index
    %93 = vector.load %arg12[%c0_43, %c0_44] : memref<8x128xf32, #tpu.memory_space<vmem>>, vector<8x128xf32>
    tpu.vector_store %arg12[%c0_43, %c0_44], %92 {strides = array<i32>} : memref<8x128xf32, #tpu.memory_space<vmem>>, vector<8x128xf32>,
    return
  }
  func.func @transform_0(%arg0: i32) -> (i32, i32, i32) {
    %c0_i32 = arith.constant 0 : i32
    %c0_i32_0 = arith.constant 0 : i32
    %c0_i32_1 = arith.constant 0 : i32
    return %arg0, %c0_i32, %c0_i32_0 : i32, i32, i32
  }
  func.func @transform_1(%arg0: i32) -> (i32, i32) {
    %c0_i32 = arith.constant 0 : i32
    %c0_i32_0 = arith.constant 0 : i32
    %c0_i32_1 = arith.constant 0 : i32
    return %c0_i32, %c0_i32_0 : i32, i32
  }
  func.func @transform_2(%arg0: i32) -> (i32, i32) {
    %c0_i32 = arith.constant 0 : i32
    %c0_i32_0 = arith.constant 0 : i32
    %c0_i32_1 = arith.constant 0 : i32
    return %c0_i32, %c0_i32_0 : i32, i32
  }
  func.func @transform_3(%arg0: i32) -> (i32, i32) {
    %c0_i32 = arith.constant 0 : i32
    %c0_i32_0 = arith.constant 0 : i32
    %c0_i32_1 = arith.constant 0 : i32
    return %c0_i32, %c0_i32_0 : i32, i32
  }
  func.func @transform_4(%arg0: i32) -> (i32, i32) {
    %c0_i32 = arith.constant 0 : i32
    %c0_i32_0 = arith.constant 0 : i32
    %c0_i32_1 = arith.constant 0 : i32
    return %c0_i32, %c0_i32_0 : i32, i32
  }
  func.func @transform_5(%arg0: i32) -> (i32, i32, i32) {
    %c0_i32 = arith.constant 0 : i32
    %c0_i32_0 = arith.constant 0 : i32
    %c0_i32_1 = arith.constant 0 : i32
    %c0_i32_2 = arith.constant 0 : i32
    return %c0_i32, %c0_i32_0, %c0_i32_1 : i32, i32, i32
  }
  func.func @transform_6(%arg0: i32) -> (i32, i32) {
    %c0_i32 = arith.constant 0 : i32
    %c0_i32_0 = arith.constant 0 : i32
    %c0_i32_1 = arith.constant 0 : i32
    return %c0_i32, %c0_i32_0 : i32, i32
  }
  func.func @transform_7(%arg0: i32) -> (i32, i32) {
    %c0_i32 = arith.constant 0 : i32
    %c0_i32_0 = arith.constant 0 : i32
    %c0_i32_1 = arith.constant 0 : i32
    return %c0_i32, %c0_i32_0 : i32, i32
  }
  func.func @transform_8(%arg0: i32) -> (i32, i32) {
    %c0_i32 = arith.constant 0 : i32
    %c0_i32_0 = arith.constant 0 : i32
    %c0_i32_1 = arith.constant 0 : i32
    return %c0_i32, %c0_i32_0 : i32, i32
  }
  func.func @transform_9(%arg0: i32) -> (i32, i32) {
    %c0_i32 = arith.constant 0 : i32
    %c0_i32_0 = arith.constant 0 : i32
    %c0_i32_1 = arith.constant 0 : i32
    return %c0_i32, %c0_i32_0 : i32, i32
  }
  func.func @transform_10(%arg0: i32) -> (i32, i32) {
    %c0_i32 = arith.constant 0 : i32
    %c0_i32_0 = arith.constant 0 : i32
    %c0_i32_1 = arith.constant 0 : i32
    return %c0_i32, %c0_i32_0 : i32, i32
  }
  func.func @transform_11(%arg0: i32) -> (i32, i32) {
    %c0_i32 = arith.constant 0 : i32
    %c0_i32_0 = arith.constant 0 : i32
    return %arg0, %c0_i32 : i32, i32
  }
}

</mosaic_0001>

<llo_original>
// kernel: lenet5_forward.1
$region0: #{lenet5_forward.1}
  #allocation0 [shape = 'u32[]', space=smem, size = 0x4, offset = 0x4, fixed_abs, tag = 'smem constant byte address 0x4 - core index']
  #allocation1 [shape = 'u32[72,128]{1,0:T(1,128)}', space=vmem, size = 0x9000, scoped, tag = 'internal scratch']
  %s0 = inlined_call_operand.vmem [shape: f32[16,32,32], index: 0, kind: input, shape index: {}]
  %s1 = inlined_call_operand.hbm [shape: f32[160,256], index: 1, kind: input, shape index: {}]
  %s2 = inlined_call_operand.vmem [shape: f32[1,256], index: 2, kind: input, shape index: {}]
  %s3 = inlined_call_operand.vmem [shape: f32[640,256], index: 3, kind: input, shape index: {}]
  %s4 = inlined_call_operand.vmem [shape: f32[1,256], index: 4, kind: input, shape index: {}]
  %s5 = inlined_call_operand.vmem [shape: f32[5,128,128], index: 5, kind: input, shape index: {}]
  %s6 = inlined_call_operand.vmem [shape: f32[1,128], index: 6, kind: input, shape index: {}]
  %s7 = inlined_call_operand.hbm [shape: f32[128,128], index: 7, kind: input, shape index: {}]
  %s8 = inlined_call_operand.vmem [shape: f32[1,128], index: 8, kind: input, shape index: {}]
  %s9 = inlined_call_operand.hbm [shape: f32[128,128], index: 9, kind: input, shape index: {}]
  %s10 = inlined_call_operand.vmem [shape: f32[1,128], index: 10, kind: input, shape index: {}]
  %s11 = inlined_call_operand.hbm [shape: f32[16,128], index: 11, kind: output, shape index: {}]
  %s12 = sld [smem:[#allocation0]]
  $region89: #{lenet5_forward.1} parent=0
    _
  %s14 = ssub.s32 1, %s12
  %s15 = scalar_select 0, %s14, %s12
  $region1: #{lenet5_forward.1} parent=0
    #allocation2 [shape = 'u8[163840]{0}', space=vmem, size = 0x28000, scoped, tag = 'input window, operand 1, single buffered']
    #allocation3 [shape = 's32[2]{0}', space=sflag, size = 0x8, scoped, tag = 'scoped memory for lenet5_forward.1']
    #allocation4 [shape = 's32[2]{0}', space=sflag, size = 0x8, scoped, tag = 'scoped memory for lenet5_forward.1']
    #allocation5 [shape = 'u8[65536]{0}', space=vmem, size = 0x10000, scoped, tag = 'input window, operand 7, single buffered']
    #allocation6 [shape = 's32[1]{0}', space=sflag, size = 0x4, scoped, tag = 'scoped memory for lenet5_forward.1']
    #allocation7 [shape = 'u8[65536]{0}', space=vmem, size = 0x10000, scoped, tag = 'input window, operand 9, single buffered']
    #allocation8 [shape = 'u8[8192]{0}', space=vmem, size = 0x2000, scoped, tag = 'output window, operand 0']
    %16 = vsyncpa [#allocation3], 0
    %17 = vsyncpa [#allocation6], 0
    %18 = vsyncpa [#allocation4], 0
    %s19 = scalar_lea.sflag [#allocation4], 1
    %20 = vsyncpa %s19, 0
    loop: start=0, step=1, limit=4
    $region2: #{lenet5_forward.1} parent=1 // loop_pre_header
      _
    $region3: #{lenet5_forward.1} parent=1 // loop_header
      %s22 = sphi 0, %s26
      %p23 = scmp.ge.s32.totalorder %s22, 4
      %s32 = sphi 0, %s34
      %s35 = sphi 0, %s32
      %s36 = sphi 0, %s35
      %s52 = sphi 0, %s36
      %s56 = sphi 0, %s56
      %s58 = sphi 0, %s56
      %s59 = sphi 0, %s58
      %s73 = sphi 0, %s59
      %s77 = sphi 0, %s77
      %s79 = sphi 0, %s77
      %s80 = sphi 0, %s79
      %s94 = sphi 0, %s80
      %s98 = sphi 0, %s98
      %s100 = sphi 0, %s98
      %s101 = sphi 0, %s100
      %s115 = sphi 0, %s101
      %s119 = sphi 0, %s119
      %s121 = sphi 0, %s119
      %s122 = sphi 0, %s121
      %s136 = sphi 0, %s122
      %s140 = sphi 0, %s140
      %s142 = sphi 0, %s140
      %s143 = sphi 0, %s142
      %s157 = sphi 0, %s143
      %s161 = sphi 0, %s161
      %s163 = sphi 0, %s161
      %s164 = sphi 0, %s163
      %s178 = sphi 0, %s164
      %s182 = sphi 0, %s182
      %s184 = sphi 0, %s182
      %s185 = sphi 0, %s184
      %s199 = sphi 0, %s185
      %s203 = sphi 0, %s203
      %s205 = sphi 0, %s203
      %s206 = sphi 0, %s205
      %s220 = sphi 0, %s206
      %s224 = sphi 0, %s224
      %s226 = sphi 0, %s224
      %s227 = sphi 0, %s226
      %s241 = sphi 0, %s227
      %s245 = sphi 0, %s245
      %s247 = sphi 0, %s245
      %s248 = sphi 0, %s247
      %s262 = sphi 0, %s248
      %s268 = sphi 0, %s270
      %s271 = sphi 0, %s268
      %s272 = sphi 0, %s271
      %s288 = sphi 0, %s272
    $region4: #{lenet5_forward.1} parent=1 // loop_header_branch
      %25 = sbr.rel (%p23) target = $region8
    $region5: #{lenet5_forward.1} parent=1 // loop_body
      %s27 = ssub.s32 %s22, 1
      %s28 = ssub.s32 %s22, 2
      %s29 = sadd.s32 %s22, 1
      %s30 = ssub.s32 %s22, %s29
      %p31 = scmp.eq.s32.totalorder %s30, 0
      %s33 = sadd.s32 %s32, 1
      %s34 = scalar_select %p31, %s32, %s33
      %p37 = pneg %p31
      %p38 = scmp.eq.s32.totalorder %s22, 1
      %p39 = por %p37, %p38
      %p40 = scmp.ne.s32.totalorder %s32, %s35
      %p41 = scmp.eq.s32.totalorder %s22, 0
      %p42 = por %p40, %p41
      %p43 = scmp.ne.s32.totalorder %s32, %s35
      %p44 = scmp.eq.s32.totalorder %s27, 1
      %p45 = por %p43, %p44
      %p46 = scmp.ne.s32.totalorder %s35, %s36
      %p47 = scmp.eq.s32.totalorder %s27, 0
      %p48 = por %p46, %p47
      %p49 = scmp.ne.s32.totalorder %s35, %s36
      %p50 = scmp.eq.s32.totalorder %s28, 1
      %p51 = por %p49, %p50
      %p53 = scmp.ne.s32.totalorder %s36, %s52
      %p54 = scmp.eq.s32.totalorder %s28, 0
      %p55 = por %p53, %p54
      %s57 = sadd.s32 %s56, 1
      %p60 = scmp.eq.s32.totalorder %s22, 1
      %p61 = scmp.ne.s32.totalorder %s56, %s58
      %p62 = scmp.eq.s32.totalorder %s22, 0
      %p63 = por %p61, %p62
      %p64 = scmp.ne.s32.totalorder %s56, %s58
      %p65 = scmp.eq.s32.totalorder %s27, 1
      %p66 = por %p64, %p65
      %p67 = scmp.ne.s32.totalorder %s58, %s59
      %p68 = scmp.eq.s32.totalorder %s27, 0
      %p69 = por %p67, %p68
      %p70 = scmp.ne.s32.totalorder %s58, %s59
      %p71 = scmp.eq.s32.totalorder %s28, 1
      %p72 = por %p70, %p71
      %p74 = scmp.ne.s32.totalorder %s59, %s73
      %p75 = scmp.eq.s32.totalorder %s28, 0
      %p76 = por %p74, %p75
      %s78 = sadd.s32 %s77, 1
      %p81 = scmp.eq.s32.totalorder %s22, 1
      %p82 = scmp.ne.s32.totalorder %s77, %s79
      %p83 = scmp.eq.s32.totalorder %s22, 0
      %p84 = por %p82, %p83
      %p85 = scmp.ne.s32.totalorder %s77, %s79
      %p86 = scmp.eq.s32.totalorder %s27, 1
      %p87 = por %p85, %p86
      %p88 = scmp.ne.s32.totalorder %s79, %s80
      %p89 = scmp.eq.s32.totalorder %s27, 0
      %p90 = por %p88, %p89
      %p91 = scmp.ne.s32.totalorder %s79, %s80
      %p92 = scmp.eq.s32.totalorder %s28, 1
      %p93 = por %p91, %p92
      %p95 = scmp.ne.s32.totalorder %s80, %s94
      %p96 = scmp.eq.s32.totalorder %s28, 0
      %p97 = por %p95, %p96
      %s99 = sadd.s32 %s98, 1
      %p102 = scmp.eq.s32.totalorder %s22, 1
      %p103 = scmp.ne.s32.totalorder %s98, %s100
      %p104 = scmp.eq.s32.totalorder %s22, 0
      %p105 = por %p103, %p104
      %p106 = scmp.ne.s32.totalorder %s98, %s100
      %p107 = scmp.eq.s32.totalorder %s27, 1
      %p108 = por %p106, %p107
      %p109 = scmp.ne.s32.totalorder %s100, %s101
      %p110 = scmp.eq.s32.totalorder %s27, 0
      %p111 = por %p109, %p110
      %p112 = scmp.ne.s32.totalorder %s100, %s101
      %p113 = scmp.eq.s32.totalorder %s28, 1
      %p114 = por %p112, %p113
      %p116 = scmp.ne.s32.totalorder %s101, %s115
      %p117 = scmp.eq.s32.totalorder %s28, 0
      %p118 = por %p116, %p117
      %s120 = sadd.s32 %s119, 1
      %p123 = scmp.eq.s32.totalorder %s22, 1
      %p124 = scmp.ne.s32.totalorder %s119, %s121
      %p125 = scmp.eq.s32.totalorder %s22, 0
      %p126 = por %p124, %p125
      %p127 = scmp.ne.s32.totalorder %s119, %s121
      %p128 = scmp.eq.s32.totalorder %s27, 1
      %p129 = por %p127, %p128
      %p130 = scmp.ne.s32.totalorder %s121, %s122
      %p131 = scmp.eq.s32.totalorder %s27, 0
      %p132 = por %p130, %p131
      %p133 = scmp.ne.s32.totalorder %s121, %s122
      %p134 = scmp.eq.s32.totalorder %s28, 1
      %p135 = por %p133, %p134
      %p137 = scmp.ne.s32.totalorder %s122, %s136
      %p138 = scmp.eq.s32.totalorder %s28, 0
      %p139 = por %p137, %p138
      %s141 = sadd.s32 %s140, 1
      %p144 = scmp.eq.s32.totalorder %s22, 1
      %p145 = scmp.ne.s32.totalorder %s140, %s142
      %p146 = scmp.eq.s32.totalorder %s22, 0
      %p147 = por %p145, %p146
      %p148 = scmp.ne.s32.totalorder %s140, %s142
      %p149 = scmp.eq.s32.totalorder %s27, 1
      %p150 = por %p148, %p149
      %p151 = scmp.ne.s32.totalorder %s142, %s143
      %p152 = scmp.eq.s32.totalorder %s27, 0
      %p153 = por %p151, %p152
      %p154 = scmp.ne.s32.totalorder %s142, %s143
      %p155 = scmp.eq.s32.totalorder %s28, 1
      %p156 = por %p154, %p155
      %p158 = scmp.ne.s32.totalorder %s143, %s157
      %p159 = scmp.eq.s32.totalorder %s28, 0
      %p160 = por %p158, %p159
      %s162 = sadd.s32 %s161, 1
      %p165 = scmp.eq.s32.totalorder %s22, 1
      %p166 = scmp.ne.s32.totalorder %s161, %s163
      %p167 = scmp.eq.s32.totalorder %s22, 0
      %p168 = por %p166, %p167
      %p169 = scmp.ne.s32.totalorder %s161, %s163
      %p170 = scmp.eq.s32.totalorder %s27, 1
      %p171 = por %p169, %p170
      %p172 = scmp.ne.s32.totalorder %s163, %s164
      %p173 = scmp.eq.s32.totalorder %s27, 0
      %p174 = por %p172, %p173
      %p175 = scmp.ne.s32.totalorder %s163, %s164
      %p176 = scmp.eq.s32.totalorder %s28, 1
      %p177 = por %p175, %p176
      %p179 = scmp.ne.s32.totalorder %s164, %s178
      %p180 = scmp.eq.s32.totalorder %s28, 0
      %p181 = por %p179, %p180
      %s183 = sadd.s32 %s182, 1
      %p186 = scmp.eq.s32.totalorder %s22, 1
      %p187 = scmp.ne.s32.totalorder %s182, %s184
      %p188 = scmp.eq.s32.totalorder %s22, 0
      %p189 = por %p187, %p188
      %p190 = scmp.ne.s32.totalorder %s182, %s184
      %p191 = scmp.eq.s32.totalorder %s27, 1
      %p192 = por %p190, %p191
      %p193 = scmp.ne.s32.totalorder %s184, %s185
      %p194 = scmp.eq.s32.totalorder %s27, 0
      %p195 = por %p193, %p194
      %p196 = scmp.ne.s32.totalorder %s184, %s185
      %p197 = scmp.eq.s32.totalorder %s28, 1
      %p198 = por %p196, %p197
      %p200 = scmp.ne.s32.totalorder %s185, %s199
      %p201 = scmp.eq.s32.totalorder %s28, 0
      %p202 = por %p200, %p201
      %s204 = sadd.s32 %s203, 1
      %p207 = scmp.eq.s32.totalorder %s22, 1
      %p208 = scmp.ne.s32.totalorder %s203, %s205
      %p209 = scmp.eq.s32.totalorder %s22, 0
      %p210 = por %p208, %p209
      %p211 = scmp.ne.s32.totalorder %s203, %s205
      %p212 = scmp.eq.s32.totalorder %s27, 1
      %p213 = por %p211, %p212
      %p214 = scmp.ne.s32.totalorder %s205, %s206
      %p215 = scmp.eq.s32.totalorder %s27, 0
      %p216 = por %p214, %p215
      %p217 = scmp.ne.s32.totalorder %s205, %s206
      %p218 = scmp.eq.s32.totalorder %s28, 1
      %p219 = por %p217, %p218
      %p221 = scmp.ne.s32.totalorder %s206, %s220
      %p222 = scmp.eq.s32.totalorder %s28, 0
      %p223 = por %p221, %p222
      %s225 = sadd.s32 %s224, 1
      %p228 = scmp.eq.s32.totalorder %s22, 1
      %p229 = scmp.ne.s32.totalorder %s224, %s226
      %p230 = scmp.eq.s32.totalorder %s22, 0
      %p231 = por %p229, %p230
      %p232 = scmp.ne.s32.totalorder %s224, %s226
      %p233 = scmp.eq.s32.totalorder %s27, 1
      %p234 = por %p232, %p233
      %p235 = scmp.ne.s32.totalorder %s226, %s227
      %p236 = scmp.eq.s32.totalorder %s27, 0
      %p237 = por %p235, %p236
      %p238 = scmp.ne.s32.totalorder %s226, %s227
      %p239 = scmp.eq.s32.totalorder %s28, 1
      %p240 = por %p238, %p239
      %p242 = scmp.ne.s32.totalorder %s227, %s241
      %p243 = scmp.eq.s32.totalorder %s28, 0
      %p244 = por %p242, %p243
      %s246 = sadd.s32 %s245, 1
      %p249 = scmp.eq.s32.totalorder %s22, 1
      %p250 = scmp.ne.s32.totalorder %s245, %s247
      %p251 = scmp.eq.s32.totalorder %s22, 0
      %p252 = por %p250, %p251
      %p253 = scmp.ne.s32.totalorder %s245, %s247
      %p254 = scmp.eq.s32.totalorder %s27, 1
      %p255 = por %p253, %p254
      %p256 = scmp.ne.s32.totalorder %s247, %s248
      %p257 = scmp.eq.s32.totalorder %s27, 0
      %p258 = por %p256, %p257
      %p259 = scmp.ne.s32.totalorder %s247, %s248
      %p260 = scmp.eq.s32.totalorder %s28, 1
      %p261 = por %p259, %p260
      %p263 = scmp.ne.s32.totalorder %s248, %s262
      %p264 = scmp.eq.s32.totalorder %s28, 0
      %p265 = por %p263, %p264
      %s266 = ssub.s32 %s22, %s29
      %p267 = scmp.eq.s32.totalorder %s266, 0
      %s269 = sadd.s32 %s268, 1
      %s270 = scalar_select %p267, %s268, %s269
      %p273 = pneg %p267
      %p274 = scmp.eq.s32.totalorder %s22, 1
      %p275 = por %p273, %p274
      %p276 = scmp.ne.s32.totalorder %s268, %s271
      %p277 = scmp.eq.s32.totalorder %s22, 0
      %p278 = por %p276, %p277
      %p279 = scmp.ne.s32.totalorder %s268, %s271
      %p280 = scmp.eq.s32.totalorder %s27, 1
      %p281 = por %p279, %p280
      %p282 = scmp.ne.s32.totalorder %s271, %s272
      %p283 = scmp.eq.s32.totalorder %s27, 0
      %p284 = por %p282, %p283
      %p285 = scmp.ne.s32.totalorder %s271, %s272
      %p286 = scmp.eq.s32.totalorder %s28, 1
      %p287 = por %p285, %p286
      %p289 = scmp.ne.s32.totalorder %s272, %s288
      %p290 = scmp.eq.s32.totalorder %s28, 0
      %p291 = por %p289, %p290
      %p292 = scmp.le.s32.totalorder 1, %s22
      %p293 = scmp.lt.s32.totalorder %s22, 3
      %p294 = pnand %p292, %p293
      %p295 = pneg %p294
      // Predicated region
      $region9: #{lenet5_forward.1} parent=5 // pred_check
        _
      $region10: #{lenet5_forward.1} parent=5 // pred_check_branch
        %297 = sbr.rel (%p294) target = $region12
      $region11: #{lenet5_forward.1} parent=5 // pred_region
        %s298 = ssub.s32 %s22, 1
        // Predicated region
        $region13: #{lenet5_forward.1} parent=11 // pred_check
          %p299 = pneg %p69
        $region14: #{lenet5_forward.1} parent=11 // pred_check_branch
          %301 = sbr.rel (%p299) target = $region16
        $region15: #{lenet5_forward.1} parent=11 // pred_region
          %303 = vsyncadd [#allocation3], 0
          %s304 = sshll.u32 %s1, 4
          %s305 = int_to_ptr.hbm [resolvable:$true] %s304
          %s306 = sshll.u32 [#allocation2], 4
          %s307 = int_to_ptr.vmem [resolvable:$true] %s306
          %312 = dma.hbm_to_vmem [thread:$0]  %s305, 5120, %s307, [#allocation3], 256, 256, 16
        $region16: #{lenet5_forward.1} parent=11 // pred_fallthru
          _
        // Predicated region
        $region17: #{lenet5_forward.1} parent=11 // pred_check
          %p313 = pneg %p90
        $region18: #{lenet5_forward.1} parent=11 // pred_check_branch
          %315 = sbr.rel (%p313) target = $region20
        $region19: #{lenet5_forward.1} parent=11 // pred_region
          _
        $region20: #{lenet5_forward.1} parent=11 // pred_fallthru
          _
        // Predicated region
        $region21: #{lenet5_forward.1} parent=11 // pred_check
          %p316 = pneg %p111
        $region22: #{lenet5_forward.1} parent=11 // pred_check_branch
          %318 = sbr.rel (%p316) target = $region24
        $region23: #{lenet5_forward.1} parent=11 // pred_region
          _
        $region24: #{lenet5_forward.1} parent=11 // pred_fallthru
          _
        // Predicated region
        $region25: #{lenet5_forward.1} parent=11 // pred_check
          %p319 = pneg %p132
        $region26: #{lenet5_forward.1} parent=11 // pred_check_branch
          %321 = sbr.rel (%p319) target = $region28
        $region27: #{lenet5_forward.1} parent=11 // pred_region
          _
        $region28: #{lenet5_forward.1} parent=11 // pred_fallthru
          _
        // Predicated region
        $region29: #{lenet5_forward.1} parent=11 // pred_check
          %p322 = pneg %p153
        $region30: #{lenet5_forward.1} parent=11 // pred_check_branch
          %324 = sbr.rel (%p322) target = $region32
        $region31: #{lenet5_forward.1} parent=11 // pred_region
          _
        $region32: #{lenet5_forward.1} parent=11 // pred_fallthru
          _
        // Predicated region
        $region33: #{lenet5_forward.1} parent=11 // pred_check
          %p325 = pneg %p174
        $region34: #{lenet5_forward.1} parent=11 // pred_check_branch
          %327 = sbr.rel (%p325) target = $region36
        $region35: #{lenet5_forward.1} parent=11 // pred_region
          _
        $region36: #{lenet5_forward.1} parent=11 // pred_fallthru
          _
        // Predicated region
        $region37: #{lenet5_forward.1} parent=11 // pred_check
          %p328 = pneg %p195
        $region38: #{lenet5_forward.1} parent=11 // pred_check_branch
          %330 = sbr.rel (%p328) target = $region40
        $region39: #{lenet5_forward.1} parent=11 // pred_region
          %332 = vsyncadd [#allocation6], 0
          %s333 = sshll.u32 %s7, 4
          %s334 = int_to_ptr.hbm [resolvable:$true] %s333
          %s335 = sshll.u32 [#allocation5], 4
          %s336 = int_to_ptr.vmem [resolvable:$true] %s335
          %341 = dma.hbm_to_vmem [thread:$0]  %s334, 2048, %s336, [#allocation6], 128, 128, 8
        $region40: #{lenet5_forward.1} parent=11 // pred_fallthru
          _
        // Predicated region
        $region41: #{lenet5_forward.1} parent=11 // pred_check
          %p342 = pneg %p216
        $region42: #{lenet5_forward.1} parent=11 // pred_check_branch
          %344 = sbr.rel (%p342) target = $region44
        $region43: #{lenet5_forward.1} parent=11 // pred_region
          _
        $region44: #{lenet5_forward.1} parent=11 // pred_fallthru
          _
        // Predicated region
        $region45: #{lenet5_forward.1} parent=11 // pred_check
          %p345 = pneg %p237
        $region46: #{lenet5_forward.1} parent=11 // pred_check_branch
          %347 = sbr.rel (%p345) target = $region48
        $region47: #{lenet5_forward.1} parent=11 // pred_region
          %349 = vsyncadd [#allocation6], 0
          %s350 = sshll.u32 %s9, 4
          %s351 = int_to_ptr.hbm [resolvable:$true] %s350
          %s352 = sshll.u32 [#allocation7], 4
          %s353 = int_to_ptr.vmem [resolvable:$true] %s352
          %358 = dma.hbm_to_vmem [thread:$0]  %s351, 2048, %s353, [#allocation6], 128, 128, 8
        $region48: #{lenet5_forward.1} parent=11 // pred_fallthru
          _
        // Predicated region
        $region49: #{lenet5_forward.1} parent=11 // pred_check
          %p359 = pneg %p258
        $region50: #{lenet5_forward.1} parent=11 // pred_check_branch
          %361 = sbr.rel (%p359) target = $region52
        $region51: #{lenet5_forward.1} parent=11 // pred_region
          _
        $region52: #{lenet5_forward.1} parent=11 // pred_fallthru
          _
      $region12: #{lenet5_forward.1} parent=5 // pred_fallthru
        _
      %p362 = scmp.lt.s32.totalorder %s22, 2
      // Predicated region
      $region53: #{lenet5_forward.1} parent=5 // pred_check
        %p363 = pneg %p362
      $region54: #{lenet5_forward.1} parent=5 // pred_check_branch
        %365 = sbr.rel (%p363) target = $region56
      $region55: #{lenet5_forward.1} parent=5 // pred_region
        // Predicated region
        $region57: #{lenet5_forward.1} parent=55 // pred_check
          %p366 = pneg %p42
        $region58: #{lenet5_forward.1} parent=55 // pred_check_branch
          %368 = sbr.rel (%p366) target = $region60
        $region59: #{lenet5_forward.1} parent=55 // pred_region
          %s369 = smul.u32 8, %s22
          %p370 = scmp.lt.s32.totalorder %s369, 15
          %s371 = scalar_select %p370, %s369, 15
          %s372 = smul.addr %s371, 4
          %s373 = smul.addr %s372, 8
          %s374 = scalar_lea.vmem %s0, %s373
          %s375 = smul.u32 8, %s22
        $region60: #{lenet5_forward.1} parent=55 // pred_fallthru
          _
      $region56: #{lenet5_forward.1} parent=5 // pred_fallthru
        _
      %p376 = scmp.le.s32.totalorder 1, %s22
      %p377 = scmp.lt.s32.totalorder %s22, 3
      %p378 = pnand %p376, %p377
      %p379 = pneg %p378
      // Predicated region
      $region61: #{lenet5_forward.1} parent=5 // pred_check
        _
      $region62: #{lenet5_forward.1} parent=5 // pred_check_branch
        %381 = sbr.rel (%p378) target = $region64
      $region63: #{lenet5_forward.1} parent=5 // pred_region
        %s382 = ssub.s32 %s22, 1
        // Predicated region
        $region65: #{lenet5_forward.1} parent=63 // pred_check
          %p383 = pneg %p69
        $region66: #{lenet5_forward.1} parent=63 // pred_check_branch
          %385 = sbr.rel (%p383) target = $region68
        $region67: #{lenet5_forward.1} parent=63 // pred_region
          %387 = dma.done [#allocation3], 5120
        $region68: #{lenet5_forward.1} parent=63 // pred_fallthru
          _
        // Predicated region
        $region69: #{lenet5_forward.1} parent=63 // pred_check
          %p388 = pneg %p195
        $region70: #{lenet5_forward.1} parent=63 // pred_check_branch
          %390 = sbr.rel (%p388) target = $region72
        $region71: #{lenet5_forward.1} parent=63 // pred_region
          %392 = dma.done [#allocation6], 2048
        $region72: #{lenet5_forward.1} parent=63 // pred_fallthru
          _
        // Predicated region
        $region73: #{lenet5_forward.1} parent=63 // pred_check
          %p393 = pneg %p237
        $region74: #{lenet5_forward.1} parent=63 // pred_check_branch
          %395 = sbr.rel (%p393) target = $region76
        $region75: #{lenet5_forward.1} parent=63 // pred_region
          %397 = dma.done [#allocation6], 2048
        $region76: #{lenet5_forward.1} parent=63 // pred_fallthru
          _
        %s398 = smul.u32 8, %s27
        %p399 = scmp.lt.s32.totalorder %s398, 15
        %s400 = scalar_select %p399, %s398, 15
        %s401 = smul.addr %s400, 4
        %s402 = smul.addr %s401, 8
        %s403 = scalar_lea.vmem %s0, %s402
        %p404 = pneg %p48
        %p405 = pneg %p45
        %p406 = pneg %p69
        %p407 = pneg %p66
        %p408 = pneg %p90
        %p409 = pneg %p87
        %p410 = pneg %p111
        %p411 = pneg %p108
        %p412 = pneg %p132
        %p413 = pneg %p129
        %p414 = pneg %p153
        %p415 = pneg %p150
        %p416 = pneg %p174
        %p417 = pneg %p171
        %p418 = pneg %p195
        %p419 = pneg %p192
        %p420 = pneg %p216
        %p421 = pneg %p213
        %p422 = pneg %p237
        %p423 = pneg %p234
        %p424 = pneg %p258
        %p425 = pneg %p255
        %p426 = pneg %p284
        %p427 = pneg %p281
        %s428 = sand.u32 %s271, 1
        %s429 = scalar_lea.sflag [#allocation4], %s428
        %s430 = sand.u32 %s271, 1
        %s431 = smul.addr %s430, 8
        %s432 = scalar_lea.vmem [#allocation8], %s431
        %s433 = smul.u32 8, %s27
        %p434 = scmp.lt.s32.totalorder %s433, 15
        %s435 = scalar_select %p434, %s433, 15
        %s436 = smul.addr %s435, 4
        %s437 = smul.addr %s436, 8
        %s438 = scalar_lea.vmem %s0, %s437
        %s439 = smul.u32 8, %s27
        %v440 = vld [vmem:[%s438] sm:$0xff]
        %v441 = vld [vmem:[%s438 + $0x8] sm:$0xff]
        %v442 = vld [vmem:[%s438 + $0x10] sm:$0xff]
        %v443 = vld [vmem:[%s438 + $0x18] sm:$0xff]
        %v444 = vld [vmem:[%s438 + $0x20] sm:$0xff]
        %v445 = vld [vmem:[%s438 + $0x28] sm:$0xff]
        %v446 = vld [vmem:[%s438 + $0x30] sm:$0xff]
        %v447 = vld [vmem:[%s438 + $0x38] sm:$0xff]
        %v448 = vld [vmem:[%s438 + $0x40] sm:$0xff]
        %v449 = vld [vmem:[%s438 + $0x48] sm:$0xff]
        %v450 = vld [vmem:[%s438 + $0x50] sm:$0xff]
        %v451 = vld [vmem:[%s438 + $0x58] sm:$0xff]
        %v452 = vld [vmem:[%s438 + $0x60] sm:$0xff]
        %v453 = vld [vmem:[%s438 + $0x68] sm:$0xff]
        %v454 = vld [vmem:[%s438 + $0x70] sm:$0xff]
        %v455 = vld [vmem:[%s438 + $0x78] sm:$0xff]
        %v456 = vld [vmem:[%s438 + $0x80] sm:$0xff]
        %v457 = vld [vmem:[%s438 + $0x88] sm:$0xff]
        %v458 = vld [vmem:[%s438 + $0x90] sm:$0xff]
        %v459 = vld [vmem:[%s438 + $0x98] sm:$0xff]
        %v460 = vld [vmem:[%s438 + $0xa0] sm:$0xff]
        %v461 = vld [vmem:[%s438 + $0xa8] sm:$0xff]
        %v462 = vld [vmem:[%s438 + $0xb0] sm:$0xff]
        %v463 = vld [vmem:[%s438 + $0xb8] sm:$0xff]
        %v464 = vld [vmem:[%s438 + $0xc0] sm:$0xff]
        %v465 = vld [vmem:[%s438 + $0xc8] sm:$0xff]
        %v466 = vld [vmem:[%s438 + $0xd0] sm:$0xff]
        %v467 = vld [vmem:[%s438 + $0xd8] sm:$0xff]
        %v468 = vld [vmem:[%s438 + $0xe0] sm:$0xff]
        %v469 = vld [vmem:[%s438 + $0xe8] sm:$0xff]
        %v470 = vld [vmem:[%s438 + $0xf0] sm:$0xff]
        %v471 = vld [vmem:[%s438 + $0xf8] sm:$0xff]
        %vm504 = vcmask 1046528
        %v505 = vrot.slane %v440, 1
        %v506 = vrot.slane %v441, 1
        %v507 = vsel %vm504, %v505, %v506
        %v508 = vrot.slane %v442, 1
        %v509 = vsel %vm504, %v506, %v508
        %v510 = vrot.slane %v443, 1
        %v511 = vsel %vm504, %v508, %v510
        %v512 = vrot.slane %v444, 1
        %v513 = vrot.slane %v445, 1
        %v514 = vsel %vm504, %v512, %v513
        %v515 = vrot.slane %v446, 1
        %v516 = vsel %vm504, %v513, %v515
        %v517 = vrot.slane %v447, 1
        %v518 = vsel %vm504, %v515, %v517
        %v519 = vrot.slane %v448, 1
        %v520 = vrot.slane %v449, 1
        %v521 = vsel %vm504, %v519, %v520
        %v522 = vrot.slane %v450, 1
        %v523 = vsel %vm504, %v520, %v522
        %v524 = vrot.slane %v451, 1
        %v525 = vsel %vm504, %v522, %v524
        %v526 = vrot.slane %v452, 1
        %v527 = vrot.slane %v453, 1
        %v528 = vsel %vm504, %v526, %v527
        %v529 = vrot.slane %v454, 1
        %v530 = vsel %vm504, %v527, %v529
        %v531 = vrot.slane %v455, 1
        %v532 = vsel %vm504, %v529, %v531
        %v533 = vrot.slane %v456, 1
        %v534 = vrot.slane %v457, 1
        %v535 = vsel %vm504, %v533, %v534
        %v536 = vrot.slane %v458, 1
        %v537 = vsel %vm504, %v534, %v536
        %v538 = vrot.slane %v459, 1
        %v539 = vsel %vm504, %v536, %v538
        %v540 = vrot.slane %v460, 1
        %v541 = vrot.slane %v461, 1
        %v542 = vsel %vm504, %v540, %v541
        %v543 = vrot.slane %v462, 1
        %v544 = vsel %vm504, %v541, %v543
        %v545 = vrot.slane %v463, 1
        %v546 = vsel %vm504, %v543, %v545
        %v547 = vrot.slane %v464, 1
        %v548 = vrot.slane %v465, 1
        %v549 = vsel %vm504, %v547, %v548
        %v550 = vrot.slane %v466, 1
        %v551 = vsel %vm504, %v548, %v550
        %v552 = vrot.slane %v467, 1
        %v553 = vsel %vm504, %v550, %v552
        %v554 = vrot.slane %v468, 1
        %v555 = vrot.slane %v469, 1
        %v556 = vsel %vm504, %v554, %v555
        %v557 = vrot.slane %v470, 1
        %v558 = vsel %vm504, %v555, %v557
        %v559 = vrot.slane %v471, 1
        %v560 = vsel %vm504, %v557, %v559
        %561 = vrot.lane.b32.xlu0 %v507, 32
        %v562 = vpop.permute.xlu0 %561
        %563 = vrot.lane.b32.xlu0 %v509, 32
        %v564 = vpop.permute.xlu0 %563
        %565 = vrot.lane.b32.xlu0 %v511, 32
        %v566 = vpop.permute.xlu0 %565
        %567 = vrot.lane.b32.xlu0 %v510, 32
        %v568 = vpop.permute.xlu0 %567
        %569 = vrot.lane.b32.xlu0 %v514, 32
        %v570 = vpop.permute.xlu0 %569
        %571 = vrot.lane.b32.xlu0 %v516, 32
        %v572 = vpop.permute.xlu0 %571
        %573 = vrot.lane.b32.xlu0 %v518, 32
        %v574 = vpop.permute.xlu0 %573
        %575 = vrot.lane.b32.xlu0 %v517, 32
        %v576 = vpop.permute.xlu0 %575
        %577 = vrot.lane.b32.xlu0 %v521, 32
        %v578 = vpop.permute.xlu0 %577
        %579 = vrot.lane.b32.xlu0 %v523, 32
        %v580 = vpop.permute.xlu0 %579
        %581 = vrot.lane.b32.xlu0 %v525, 32
        %v582 = vpop.permute.xlu0 %581
        %583 = vrot.lane.b32.xlu0 %v524, 32
        %v584 = vpop.permute.xlu0 %583
        %585 = vrot.lane.b32.xlu0 %v528, 32
        %v586 = vpop.permute.xlu0 %585
        %587 = vrot.lane.b32.xlu0 %v530, 32
        %v588 = vpop.permute.xlu0 %587
        %589 = vrot.lane.b32.xlu0 %v532, 32
        %v590 = vpop.permute.xlu0 %589
        %591 = vrot.lane.b32.xlu0 %v531, 32
        %v592 = vpop.permute.xlu0 %591
        %593 = vrot.lane.b32.xlu0 %v535, 32
        %v594 = vpop.permute.xlu0 %593
        %595 = vrot.lane.b32.xlu0 %v537, 32
        %v596 = vpop.permute.xlu0 %595
        %597 = vrot.lane.b32.xlu0 %v539, 32
        %v598 = vpop.permute.xlu0 %597
        %599 = vrot.lane.b32.xlu0 %v538, 32
        %v600 = vpop.permute.xlu0 %599
        %601 = vrot.lane.b32.xlu0 %v542, 32
        %v602 = vpop.permute.xlu0 %601
        %603 = vrot.lane.b32.xlu0 %v544, 32
        %v604 = vpop.permute.xlu0 %603
        %605 = vrot.lane.b32.xlu0 %v546, 32
        %v606 = vpop.permute.xlu0 %605
        %607 = vrot.lane.b32.xlu0 %v545, 32
        %v608 = vpop.permute.xlu0 %607
        %609 = vrot.lane.b32.xlu0 %v549, 32
        %v610 = vpop.permute.xlu0 %609
        %611 = vrot.lane.b32.xlu0 %v551, 32
        %v612 = vpop.permute.xlu0 %611
        %613 = vrot.lane.b32.xlu0 %v553, 32
        %v614 = vpop.permute.xlu0 %613
        %615 = vrot.lane.b32.xlu0 %v552, 32
        %v616 = vpop.permute.xlu0 %615
        %617 = vrot.lane.b32.xlu0 %v556, 32
        %v618 = vpop.permute.xlu0 %617
        %619 = vrot.lane.b32.xlu0 %v558, 32
        %v620 = vpop.permute.xlu0 %619
        %621 = vrot.lane.b32.xlu0 %v560, 32
        %v622 = vpop.permute.xlu0 %621
        %623 = vrot.lane.b32.xlu0 %v559, 32
        %v624 = vpop.permute.xlu0 %623
        %vm657 = vcmask 1045504
        %v658 = vrot.slane %v440, 2
        %v659 = vrot.slane %v441, 2
        %v660 = vsel %vm657, %v658, %v659
        %v661 = vrot.slane %v442, 2
        %v662 = vsel %vm657, %v659, %v661
        %v663 = vrot.slane %v443, 2
        %v664 = vsel %vm657, %v661, %v663
        %v665 = vrot.slane %v444, 2
        %v666 = vrot.slane %v445, 2
        %v667 = vsel %vm657, %v665, %v666
        %v668 = vrot.slane %v446, 2
        %v669 = vsel %vm657, %v666, %v668
        %v670 = vrot.slane %v447, 2
        %v671 = vsel %vm657, %v668, %v670
        %v672 = vrot.slane %v448, 2
        %v673 = vrot.slane %v449, 2
        %v674 = vsel %vm657, %v672, %v673
        %v675 = vrot.slane %v450, 2
        %v676 = vsel %vm657, %v673, %v675
        %v677 = vrot.slane %v451, 2
        %v678 = vsel %vm657, %v675, %v677
        %v679 = vrot.slane %v452, 2
        %v680 = vrot.slane %v453, 2
        %v681 = vsel %vm657, %v679, %v680
        %v682 = vrot.slane %v454, 2
        %v683 = vsel %vm657, %v680, %v682
        %v684 = vrot.slane %v455, 2
        %v685 = vsel %vm657, %v682, %v684
        %v686 = vrot.slane %v456, 2
        %v687 = vrot.slane %v457, 2
        %v688 = vsel %vm657, %v686, %v687
        %v689 = vrot.slane %v458, 2
        %v690 = vsel %vm657, %v687, %v689
        %v691 = vrot.slane %v459, 2
        %v692 = vsel %vm657, %v689, %v691
        %v693 = vrot.slane %v460, 2
        %v694 = vrot.slane %v461, 2
        %v695 = vsel %vm657, %v693, %v694
        %v696 = vrot.slane %v462, 2
        %v697 = vsel %vm657, %v694, %v696
        %v698 = vrot.slane %v463, 2
        %v699 = vsel %vm657, %v696, %v698
        %v700 = vrot.slane %v464, 2
        %v701 = vrot.slane %v465, 2
        %v702 = vsel %vm657, %v700, %v701
        %v703 = vrot.slane %v466, 2
        %v704 = vsel %vm657, %v701, %v703
        %v705 = vrot.slane %v467, 2
        %v706 = vsel %vm657, %v703, %v705
        %v707 = vrot.slane %v468, 2
        %v708 = vrot.slane %v469, 2
        %v709 = vsel %vm657, %v707, %v708
        %v710 = vrot.slane %v470, 2
        %v711 = vsel %vm657, %v708, %v710
        %v712 = vrot.slane %v471, 2
        %v713 = vsel %vm657, %v710, %v712
        %714 = vrot.lane.b32.xlu0 %v660, 64
        %v715 = vpop.permute.xlu0 %714
        %716 = vrot.lane.b32.xlu0 %v662, 64
        %v717 = vpop.permute.xlu0 %716
        %718 = vrot.lane.b32.xlu0 %v664, 64
        %v719 = vpop.permute.xlu0 %718
        %720 = vrot.lane.b32.xlu0 %v663, 64
        %v721 = vpop.permute.xlu0 %720
        %722 = vrot.lane.b32.xlu0 %v667, 64
        %v723 = vpop.permute.xlu0 %722
        %724 = vrot.lane.b32.xlu0 %v669, 64
        %v725 = vpop.permute.xlu0 %724
        %726 = vrot.lane.b32.xlu0 %v671, 64
        %v727 = vpop.permute.xlu0 %726
        %728 = vrot.lane.b32.xlu0 %v670, 64
        %v729 = vpop.permute.xlu0 %728
        %730 = vrot.lane.b32.xlu0 %v674, 64
        %v731 = vpop.permute.xlu0 %730
        %732 = vrot.lane.b32.xlu0 %v676, 64
        %v733 = vpop.permute.xlu0 %732
        %734 = vrot.lane.b32.xlu0 %v678, 64
        %v735 = vpop.permute.xlu0 %734
        %736 = vrot.lane.b32.xlu0 %v677, 64
        %v737 = vpop.permute.xlu0 %736
        %738 = vrot.lane.b32.xlu0 %v681, 64
        %v739 = vpop.permute.xlu0 %738
        %740 = vrot.lane.b32.xlu0 %v683, 64
        %v741 = vpop.permute.xlu0 %740
        %742 = vrot.lane.b32.xlu0 %v685, 64
        %v743 = vpop.permute.xlu0 %742
        %744 = vrot.lane.b32.xlu0 %v684, 64
        %v745 = vpop.permute.xlu0 %744
        %746 = vrot.lane.b32.xlu0 %v688, 64
        %v747 = vpop.permute.xlu0 %746
        %748 = vrot.lane.b32.xlu0 %v690, 64
        %v749 = vpop.permute.xlu0 %748
        %750 = vrot.lane.b32.xlu0 %v692, 64
        %v751 = vpop.permute.xlu0 %750
        %752 = vrot.lane.b32.xlu0 %v691, 64
        %v753 = vpop.permute.xlu0 %752
        %754 = vrot.lane.b32.xlu0 %v695, 64
        %v755 = vpop.permute.xlu0 %754
        %756 = vrot.lane.b32.xlu0 %v697, 64
        %v757 = vpop.permute.xlu0 %756
        %758 = vrot.lane.b32.xlu0 %v699, 64
        %v759 = vpop.permute.xlu0 %758
        %760 = vrot.lane.b32.xlu0 %v698, 64
        %v761 = vpop.permute.xlu0 %760
        %762 = vrot.lane.b32.xlu0 %v702, 64
        %v763 = vpop.permute.xlu0 %762
        %764 = vrot.lane.b32.xlu0 %v704, 64
        %v765 = vpop.permute.xlu0 %764
        %766 = vrot.lane.b32.xlu0 %v706, 64
        %v767 = vpop.permute.xlu0 %766
        %768 = vrot.lane.b32.xlu0 %v705, 64
        %v769 = vpop.permute.xlu0 %768
        %770 = vrot.lane.b32.xlu0 %v709, 64
        %v771 = vpop.permute.xlu0 %770
        %772 = vrot.lane.b32.xlu0 %v711, 64
        %v773 = vpop.permute.xlu0 %772
        %774 = vrot.lane.b32.xlu0 %v713, 64
        %v775 = vpop.permute.xlu0 %774
        %776 = vrot.lane.b32.xlu0 %v712, 64
        %v777 = vpop.permute.xlu0 %776
        %vm810 = vcmask 1044480
        %v811 = vrot.slane %v440, 3
        %v812 = vrot.slane %v441, 3
        %v813 = vsel %vm810, %v811, %v812
        %v814 = vrot.slane %v442, 3
        %v815 = vsel %vm810, %v812, %v814
        %v816 = vrot.slane %v443, 3
        %v817 = vsel %vm810, %v814, %v816
        %v818 = vrot.slane %v444, 3
        %v819 = vrot.slane %v445, 3
        %v820 = vsel %vm810, %v818, %v819
        %v821 = vrot.slane %v446, 3
        %v822 = vsel %vm810, %v819, %v821
        %v823 = vrot.slane %v447, 3
        %v824 = vsel %vm810, %v821, %v823
        %v825 = vrot.slane %v448, 3
        %v826 = vrot.slane %v449, 3
        %v827 = vsel %vm810, %v825, %v826
        %v828 = vrot.slane %v450, 3
        %v829 = vsel %vm810, %v826, %v828
        %v830 = vrot.slane %v451, 3
        %v831 = vsel %vm810, %v828, %v830
        %v832 = vrot.slane %v452, 3
        %v833 = vrot.slane %v453, 3
        %v834 = vsel %vm810, %v832, %v833
        %v835 = vrot.slane %v454, 3
        %v836 = vsel %vm810, %v833, %v835
        %v837 = vrot.slane %v455, 3
        %v838 = vsel %vm810, %v835, %v837
        %v839 = vrot.slane %v456, 3
        %v840 = vrot.slane %v457, 3
        %v841 = vsel %vm810, %v839, %v840
        %v842 = vrot.slane %v458, 3
        %v843 = vsel %vm810, %v840, %v842
        %v844 = vrot.slane %v459, 3
        %v845 = vsel %vm810, %v842, %v844
        %v846 = vrot.slane %v460, 3
        %v847 = vrot.slane %v461, 3
        %v848 = vsel %vm810, %v846, %v847
        %v849 = vrot.slane %v462, 3
        %v850 = vsel %vm810, %v847, %v849
        %v851 = vrot.slane %v463, 3
        %v852 = vsel %vm810, %v849, %v851
        %v853 = vrot.slane %v464, 3
        %v854 = vrot.slane %v465, 3
        %v855 = vsel %vm810, %v853, %v854
        %v856 = vrot.slane %v466, 3
        %v857 = vsel %vm810, %v854, %v856
        %v858 = vrot.slane %v467, 3
        %v859 = vsel %vm810, %v856, %v858
        %v860 = vrot.slane %v468, 3
        %v861 = vrot.slane %v469, 3
        %v862 = vsel %vm810, %v860, %v861
        %v863 = vrot.slane %v470, 3
        %v864 = vsel %vm810, %v861, %v863
        %v865 = vrot.slane %v471, 3
        %v866 = vsel %vm810, %v863, %v865
        %867 = vrot.lane.b32.xlu0 %v813, 96
        %v868 = vpop.permute.xlu0 %867
        %869 = vrot.lane.b32.xlu0 %v815, 96
        %v870 = vpop.permute.xlu0 %869
        %871 = vrot.lane.b32.xlu0 %v817, 96
        %v872 = vpop.permute.xlu0 %871
        %873 = vrot.lane.b32.xlu0 %v816, 96
        %v874 = vpop.permute.xlu0 %873
        %875 = vrot.lane.b32.xlu0 %v820, 96
        %v876 = vpop.permute.xlu0 %875
        %877 = vrot.lane.b32.xlu0 %v822, 96
        %v878 = vpop.permute.xlu0 %877
        %879 = vrot.lane.b32.xlu0 %v824, 96
        %v880 = vpop.permute.xlu0 %879
        %881 = vrot.lane.b32.xlu0 %v823, 96
        %v882 = vpop.permute.xlu0 %881
        %883 = vrot.lane.b32.xlu0 %v827, 96
        %v884 = vpop.permute.xlu0 %883
        %885 = vrot.lane.b32.xlu0 %v829, 96
        %v886 = vpop.permute.xlu0 %885
        %887 = vrot.lane.b32.xlu0 %v831, 96
        %v888 = vpop.permute.xlu0 %887
        %889 = vrot.lane.b32.xlu0 %v830, 96
        %v890 = vpop.permute.xlu0 %889
        %891 = vrot.lane.b32.xlu0 %v834, 96
        %v892 = vpop.permute.xlu0 %891
        %893 = vrot.lane.b32.xlu0 %v836, 96
        %v894 = vpop.permute.xlu0 %893
        %895 = vrot.lane.b32.xlu0 %v838, 96
        %v896 = vpop.permute.xlu0 %895
        %897 = vrot.lane.b32.xlu0 %v837, 96
        %v898 = vpop.permute.xlu0 %897
        %899 = vrot.lane.b32.xlu0 %v841, 96
        %v900 = vpop.permute.xlu0 %899
        %901 = vrot.lane.b32.xlu0 %v843, 96
        %v902 = vpop.permute.xlu0 %901
        %903 = vrot.lane.b32.xlu0 %v845, 96
        %v904 = vpop.permute.xlu0 %903
        %905 = vrot.lane.b32.xlu0 %v844, 96
        %v906 = vpop.permute.xlu0 %905
        %907 = vrot.lane.b32.xlu0 %v848, 96
        %v908 = vpop.permute.xlu0 %907
        %909 = vrot.lane.b32.xlu0 %v850, 96
        %v910 = vpop.permute.xlu0 %909
        %911 = vrot.lane.b32.xlu0 %v852, 96
        %v912 = vpop.permute.xlu0 %911
        %913 = vrot.lane.b32.xlu0 %v851, 96
        %v914 = vpop.permute.xlu0 %913
        %915 = vrot.lane.b32.xlu0 %v855, 96
        %v916 = vpop.permute.xlu0 %915
        %917 = vrot.lane.b32.xlu0 %v857, 96
        %v918 = vpop.permute.xlu0 %917
        %919 = vrot.lane.b32.xlu0 %v859, 96
        %v920 = vpop.permute.xlu0 %919
        %921 = vrot.lane.b32.xlu0 %v858, 96
        %v922 = vpop.permute.xlu0 %921
        %923 = vrot.lane.b32.xlu0 %v862, 96
        %v924 = vpop.permute.xlu0 %923
        %925 = vrot.lane.b32.xlu0 %v864, 96
        %v926 = vpop.permute.xlu0 %925
        %927 = vrot.lane.b32.xlu0 %v866, 96
        %v928 = vpop.permute.xlu0 %927
        %929 = vrot.lane.b32.xlu0 %v865, 96
        %v930 = vpop.permute.xlu0 %929
        %vm963 = vcmask 1043456
        %v964 = vrot.slane %v440, 4
        %v965 = vrot.slane %v441, 4
        %v966 = vsel %vm963, %v964, %v965
        %v967 = vrot.slane %v442, 4
        %v968 = vsel %vm963, %v965, %v967
        %v969 = vrot.slane %v443, 4
        %v970 = vsel %vm963, %v967, %v969
        %v971 = vrot.slane %v444, 4
        %v972 = vrot.slane %v445, 4
        %v973 = vsel %vm963, %v971, %v972
        %v974 = vrot.slane %v446, 4
        %v975 = vsel %vm963, %v972, %v974
        %v976 = vrot.slane %v447, 4
        %v977 = vsel %vm963, %v974, %v976
        %v978 = vrot.slane %v448, 4
        %v979 = vrot.slane %v449, 4
        %v980 = vsel %vm963, %v978, %v979
        %v981 = vrot.slane %v450, 4
        %v982 = vsel %vm963, %v979, %v981
        %v983 = vrot.slane %v451, 4
        %v984 = vsel %vm963, %v981, %v983
        %v985 = vrot.slane %v452, 4
        %v986 = vrot.slane %v453, 4
        %v987 = vsel %vm963, %v985, %v986
        %v988 = vrot.slane %v454, 4
        %v989 = vsel %vm963, %v986, %v988
        %v990 = vrot.slane %v455, 4
        %v991 = vsel %vm963, %v988, %v990
        %v992 = vrot.slane %v456, 4
        %v993 = vrot.slane %v457, 4
        %v994 = vsel %vm963, %v992, %v993
        %v995 = vrot.slane %v458, 4
        %v996 = vsel %vm963, %v993, %v995
        %v997 = vrot.slane %v459, 4
        %v998 = vsel %vm963, %v995, %v997
        %v999 = vrot.slane %v460, 4
        %v1000 = vrot.slane %v461, 4
        %v1001 = vsel %vm963, %v999, %v1000
        %v1002 = vrot.slane %v462, 4
        %v1003 = vsel %vm963, %v1000, %v1002
        %v1004 = vrot.slane %v463, 4
        %v1005 = vsel %vm963, %v1002, %v1004
        %v1006 = vrot.slane %v464, 4
        %v1007 = vrot.slane %v465, 4
        %v1008 = vsel %vm963, %v1006, %v1007
        %v1009 = vrot.slane %v466, 4
        %v1010 = vsel %vm963, %v1007, %v1009
        %v1011 = vrot.slane %v467, 4
        %v1012 = vsel %vm963, %v1009, %v1011
        %v1013 = vrot.slane %v468, 4
        %v1014 = vrot.slane %v469, 4
        %v1015 = vsel %vm963, %v1013, %v1014
        %v1016 = vrot.slane %v470, 4
        %v1017 = vsel %vm963, %v1014, %v1016
        %v1018 = vrot.slane %v471, 4
        %v1019 = vsel %vm963, %v1016, %v1018
        %vm1020 = vcmask 261120
        %v1021 = vsel %vm1020, %v440, %v562
        %v1022 = vsel %vm1020, %v441, %v564
        %v1023 = vsel %vm1020, %v442, %v566
        %v1024 = vsel %vm1020, %v443, %v568
        %v1025 = vsel %vm1020, %v444, %v570
        %v1026 = vsel %vm1020, %v445, %v572
        %v1027 = vsel %vm1020, %v446, %v574
        %v1028 = vsel %vm1020, %v447, %v576
        %v1029 = vsel %vm1020, %v448, %v578
        %v1030 = vsel %vm1020, %v449, %v580
        %v1031 = vsel %vm1020, %v450, %v582
        %v1032 = vsel %vm1020, %v451, %v584
        %v1033 = vsel %vm1020, %v452, %v586
        %v1034 = vsel %vm1020, %v453, %v588
        %v1035 = vsel %vm1020, %v454, %v590
        %v1036 = vsel %vm1020, %v455, %v592
        %v1037 = vsel %vm1020, %v456, %v594
        %v1038 = vsel %vm1020, %v457, %v596
        %v1039 = vsel %vm1020, %v458, %v598
        %v1040 = vsel %vm1020, %v459, %v600
        %v1041 = vsel %vm1020, %v460, %v602
        %v1042 = vsel %vm1020, %v461, %v604
        %v1043 = vsel %vm1020, %v462, %v606
        %v1044 = vsel %vm1020, %v463, %v608
        %v1045 = vsel %vm1020, %v464, %v610
        %v1046 = vsel %vm1020, %v465, %v612
        %v1047 = vsel %vm1020, %v466, %v614
        %v1048 = vsel %vm1020, %v467, %v616
        %v1049 = vsel %vm1020, %v468, %v618
        %v1050 = vsel %vm1020, %v469, %v620
        %v1051 = vsel %vm1020, %v470, %v622
        %v1052 = vsel %vm1020, %v471, %v624
        %vm1053 = vcmask 523264
        %v1054 = vsel %vm1053, %v1021, %v715
        %v1055 = vsel %vm1053, %v1022, %v717
        %v1056 = vsel %vm1053, %v1023, %v719
        %v1057 = vsel %vm1053, %v1024, %v721
        %v1058 = vsel %vm1053, %v1025, %v723
        %v1059 = vsel %vm1053, %v1026, %v725
        %v1060 = vsel %vm1053, %v1027, %v727
        %v1061 = vsel %vm1053, %v1028, %v729
        %v1062 = vsel %vm1053, %v1029, %v731
        %v1063 = vsel %vm1053, %v1030, %v733
        %v1064 = vsel %vm1053, %v1031, %v735
        %v1065 = vsel %vm1053, %v1032, %v737
        %v1066 = vsel %vm1053, %v1033, %v739
        %v1067 = vsel %vm1053, %v1034, %v741
        %v1068 = vsel %vm1053, %v1035, %v743
        %v1069 = vsel %vm1053, %v1036, %v745
        %v1070 = vsel %vm1053, %v1037, %v747
        %v1071 = vsel %vm1053, %v1038, %v749
        %v1072 = vsel %vm1053, %v1039, %v751
        %v1073 = vsel %vm1053, %v1040, %v753
        %v1074 = vsel %vm1053, %v1041, %v755
        %v1075 = vsel %vm1053, %v1042, %v757
        %v1076 = vsel %vm1053, %v1043, %v759
        %v1077 = vsel %vm1053, %v1044, %v761
        %v1078 = vsel %vm1053, %v1045, %v763
        %v1079 = vsel %vm1053, %v1046, %v765
        %v1080 = vsel %vm1053, %v1047, %v767
        %v1081 = vsel %vm1053, %v1048, %v769
        %v1082 = vsel %vm1053, %v1049, %v771
        %v1083 = vsel %vm1053, %v1050, %v773
        %v1084 = vsel %vm1053, %v1051, %v775
        %v1085 = vsel %vm1053, %v1052, %v777
        %vm1086 = vcmask 785408
        %v1087 = vsel %vm1086, %v1054, %v868
        %v1088 = vsel %vm1086, %v1055, %v870
        %v1089 = vsel %vm1086, %v1056, %v872
        %v1090 = vsel %vm1086, %v1057, %v874
        %v1091 = vsel %vm1086, %v1058, %v876
        %v1092 = vsel %vm1086, %v1059, %v878
        %v1093 = vsel %vm1086, %v1060, %v880
        %v1094 = vsel %vm1086, %v1061, %v882
        %v1095 = vsel %vm1086, %v1062, %v884
        %v1096 = vsel %vm1086, %v1063, %v886
        %v1097 = vsel %vm1086, %v1064, %v888
        %v1098 = vsel %vm1086, %v1065, %v890
        %v1099 = vsel %vm1086, %v1066, %v892
        %v1100 = vsel %vm1086, %v1067, %v894
        %v1101 = vsel %vm1086, %v1068, %v896
        %v1102 = vsel %vm1086, %v1069, %v898
        %v1103 = vsel %vm1086, %v1070, %v900
        %v1104 = vsel %vm1086, %v1071, %v902
        %v1105 = vsel %vm1086, %v1072, %v904
        %v1106 = vsel %vm1086, %v1073, %v906
        %v1107 = vsel %vm1086, %v1074, %v908
        %v1108 = vsel %vm1086, %v1075, %v910
        %v1109 = vsel %vm1086, %v1076, %v912
        %v1110 = vsel %vm1086, %v1077, %v914
        %v1111 = vsel %vm1086, %v1078, %v916
        %v1112 = vsel %vm1086, %v1079, %v918
        %v1113 = vsel %vm1086, %v1080, %v920
        %v1114 = vsel %vm1086, %v1081, %v922
        %v1115 = vsel %vm1086, %v1082, %v924
        %v1116 = vsel %vm1086, %v1083, %v926
        %v1117 = vsel %vm1086, %v1084, %v928
        %v1118 = vsel %vm1086, %v1085, %v930
        %v1151 = vrot.slane %v966, 4
        %v1152 = vrot.slane %v968, 4
        %v1153 = vrot.slane %v970, 4
        %v1154 = vrot.slane %v969, 4
        %v1155 = vrot.slane %v973, 4
        %v1156 = vrot.slane %v975, 4
        %v1157 = vrot.slane %v977, 4
        %v1158 = vrot.slane %v976, 4
        %v1159 = vrot.slane %v980, 4
        %v1160 = vrot.slane %v982, 4
        %v1161 = vrot.slane %v984, 4
        %v1162 = vrot.slane %v983, 4
        %v1163 = vrot.slane %v987, 4
        %v1164 = vrot.slane %v989, 4
        %v1165 = vrot.slane %v991, 4
        %v1166 = vrot.slane %v990, 4
        %v1167 = vrot.slane %v994, 4
        %v1168 = vrot.slane %v996, 4
        %v1169 = vrot.slane %v998, 4
        %v1170 = vrot.slane %v997, 4
        %v1171 = vrot.slane %v1001, 4
        %v1172 = vrot.slane %v1003, 4
        %v1173 = vrot.slane %v1005, 4
        %v1174 = vrot.slane %v1004, 4
        %v1175 = vrot.slane %v1008, 4
        %v1176 = vrot.slane %v1010, 4
        %v1177 = vrot.slane %v1012, 4
        %v1178 = vrot.slane %v1011, 4
        %v1179 = vrot.slane %v1015, 4
        %v1180 = vrot.slane %v1017, 4
        %v1181 = vrot.slane %v1019, 4
        %v1182 = vrot.slane %v1018, 4
        %v1183 = vsel %vm963, %v1087, %v1151
        %v1184 = vsel %vm963, %v1151, %v1087
        %v1185 = vrot.slane %v1184, 4
        %v1186 = vsel %vm963, %v1088, %v1152
        %v1187 = vsel %vm963, %v1152, %v1088
        %v1188 = vrot.slane %v1187, 4
        %v1189 = vsel %vm963, %v1089, %v1153
        %v1190 = vsel %vm963, %v1153, %v1089
        %v1191 = vrot.slane %v1190, 4
        %v1192 = vsel %vm963, %v1090, %v1154
        %v1193 = vsel %vm963, %v1091, %v1155
        %v1194 = vsel %vm963, %v1155, %v1091
        %v1195 = vrot.slane %v1194, 4
        %v1196 = vsel %vm963, %v1092, %v1156
        %v1197 = vsel %vm963, %v1156, %v1092
        %v1198 = vrot.slane %v1197, 4
        %v1199 = vsel %vm963, %v1093, %v1157
        %v1200 = vsel %vm963, %v1157, %v1093
        %v1201 = vrot.slane %v1200, 4
        %v1202 = vsel %vm963, %v1094, %v1158
        %v1203 = vsel %vm963, %v1095, %v1159
        %v1204 = vsel %vm963, %v1159, %v1095
        %v1205 = vrot.slane %v1204, 4
        %v1206 = vsel %vm963, %v1096, %v1160
        %v1207 = vsel %vm963, %v1160, %v1096
        %v1208 = vrot.slane %v1207, 4
        %v1209 = vsel %vm963, %v1097, %v1161
        %v1210 = vsel %vm963, %v1161, %v1097
        %v1211 = vrot.slane %v1210, 4
        %v1212 = vsel %vm963, %v1098, %v1162
        %v1213 = vsel %vm963, %v1099, %v1163
        %v1214 = vsel %vm963, %v1163, %v1099
        %v1215 = vrot.slane %v1214, 4
        %v1216 = vsel %vm963, %v1100, %v1164
        %v1217 = vsel %vm963, %v1164, %v1100
        %v1218 = vrot.slane %v1217, 4
        %v1219 = vsel %vm963, %v1101, %v1165
        %v1220 = vsel %vm963, %v1165, %v1101
        %v1221 = vrot.slane %v1220, 4
        %v1222 = vsel %vm963, %v1102, %v1166
        %v1223 = vsel %vm963, %v1103, %v1167
        %v1224 = vsel %vm963, %v1167, %v1103
        %v1225 = vrot.slane %v1224, 4
        %v1226 = vsel %vm963, %v1104, %v1168
        %v1227 = vsel %vm963, %v1168, %v1104
        %v1228 = vrot.slane %v1227, 4
        %v1229 = vsel %vm963, %v1105, %v1169
        %v1230 = vsel %vm963, %v1169, %v1105
        %v1231 = vrot.slane %v1230, 4
        %v1232 = vsel %vm963, %v1106, %v1170
        %v1233 = vsel %vm963, %v1107, %v1171
        %v1234 = vsel %vm963, %v1171, %v1107
        %v1235 = vrot.slane %v1234, 4
        %v1236 = vsel %vm963, %v1108, %v1172
        %v1237 = vsel %vm963, %v1172, %v1108
        %v1238 = vrot.slane %v1237, 4
        %v1239 = vsel %vm963, %v1109, %v1173
        %v1240 = vsel %vm963, %v1173, %v1109
        %v1241 = vrot.slane %v1240, 4
        %v1242 = vsel %vm963, %v1110, %v1174
        %v1243 = vsel %vm963, %v1111, %v1175
        %v1244 = vsel %vm963, %v1175, %v1111
        %v1245 = vrot.slane %v1244, 4
        %v1246 = vsel %vm963, %v1112, %v1176
        %v1247 = vsel %vm963, %v1176, %v1112
        %v1248 = vrot.slane %v1247, 4
        %v1249 = vsel %vm963, %v1113, %v1177
        %v1250 = vsel %vm963, %v1177, %v1113
        %v1251 = vrot.slane %v1250, 4
        %v1252 = vsel %vm963, %v1114, %v1178
        %v1253 = vsel %vm963, %v1115, %v1179
        %v1254 = vsel %vm963, %v1179, %v1115
        %v1255 = vrot.slane %v1254, 4
        %v1256 = vsel %vm963, %v1116, %v1180
        %v1257 = vsel %vm963, %v1180, %v1116
        %v1258 = vrot.slane %v1257, 4
        %v1259 = vsel %vm963, %v1117, %v1181
        %v1260 = vsel %vm963, %v1181, %v1117
        %v1261 = vrot.slane %v1260, 4
        %v1262 = vsel %vm963, %v1118, %v1182
        %v1263 = vld [vmem:[#allocation2] sm:$0xff]
        %v1264 = vld [vmem:[#allocation2 + $0x8] sm:$0xff]
        %v1265 = vld [vmem:[#allocation2 + $0x10] sm:$0xff]
        %v1266 = vld [vmem:[#allocation2 + $0x18] sm:$0xff]
        %v1267 = vld [vmem:[#allocation2 + $0x20] sm:$0xff]
        %v1268 = vld [vmem:[#allocation2 + $0x28] sm:$0xff]
        %v1269 = vld [vmem:[#allocation2 + $0x30] sm:$0xff]
        %v1270 = vld [vmem:[#allocation2 + $0x38] sm:$0xff]
        %v1271 = vld [vmem:[#allocation2 + $0x40] sm:$0xff]
        %v1272 = vld [vmem:[#allocation2 + $0x48] sm:$0xff]
        %v1273 = vld [vmem:[#allocation2 + $0x50] sm:$0xff]
        %v1274 = vld [vmem:[#allocation2 + $0x58] sm:$0xff]
        %v1275 = vld [vmem:[#allocation2 + $0x60] sm:$0xff]
        %v1276 = vld [vmem:[#allocation2 + $0x68] sm:$0xff]
        %v1277 = vld [vmem:[#allocation2 + $0x70] sm:$0xff]
        %v1278 = vld [vmem:[#allocation2 + $0x78] sm:$0xff]
        %v1279 = vld [vmem:[#allocation2 + $0x80] sm:$0xff]
        %v1280 = vld [vmem:[#allocation2 + $0x88] sm:$0xff]
        %v1281 = vld [vmem:[#allocation2 + $0x90] sm:$0xff]
        %v1282 = vld [vmem:[#allocation2 + $0x98] sm:$0xff]
        %v1283 = vld [vmem:[#allocation2 + $0xa0] sm:$0xff]
        %v1284 = vld [vmem:[#allocation2 + $0xa8] sm:$0xff]
        %v1285 = vld [vmem:[#allocation2 + $0xb0] sm:$0xff]
        %v1286 = vld [vmem:[#allocation2 + $0xb8] sm:$0xff]
        %v1287 = vld [vmem:[#allocation2 + $0xc0] sm:$0xff]
        %v1288 = vld [vmem:[#allocation2 + $0xc8] sm:$0xff]
        %v1289 = vld [vmem:[#allocation2 + $0xd0] sm:$0xff]
        %v1290 = vld [vmem:[#allocation2 + $0xd8] sm:$0xff]
        %v1291 = vld [vmem:[#allocation2 + $0xe0] sm:$0xff]
        %v1292 = vld [vmem:[#allocation2 + $0xe8] sm:$0xff]
        %v1293 = vld [vmem:[#allocation2 + $0xf0] sm:$0xff]
        %v1294 = vld [vmem:[#allocation2 + $0xf8] sm:$0xff]
        %v1295 = vld [vmem:[#allocation2 + $0x100] sm:$0xff]
        %v1296 = vld [vmem:[#allocation2 + $0x108] sm:$0xff]
        %v1297 = vld [vmem:[#allocation2 + $0x110] sm:$0xff]
        %v1298 = vld [vmem:[#allocation2 + $0x118] sm:$0xff]
        %v1299 = vld [vmem:[#allocation2 + $0x120] sm:$0xff]
        %v1300 = vld [vmem:[#allocation2 + $0x128] sm:$0xff]
        %v1301 = vld [vmem:[#allocation2 + $0x130] sm:$0xff]
        %v1302 = vld [vmem:[#allocation2 + $0x138] sm:$0xff]
        %v1303 = vld [vmem:[%s2] sm:$0x3]
        %v1305 = vperm.slane %v1303, 0
        %v1306 = vperm.slane %v1303, 1
        %1309 = vst [vmem:[#allocation1] ss:$2 sm:$0xff] %v1183
        %s1310 = scalar_lea.vmem [#allocation1], 1
        %1311 = vst [vmem:[%s1310] ss:$2 sm:$0xff] %v1185
        %s1312 = scalar_lea.vmem [#allocation1], 16
        %1313 = vst [vmem:[%s1312] ss:$2 sm:$0xff] %v1186
        %s1314 = scalar_lea.vmem [#allocation1], 17
        %1315 = vst [vmem:[%s1314] ss:$2 sm:$0xff] %v1188
        %s1316 = scalar_lea.vmem [#allocation1], 32
        %1317 = vst [vmem:[%s1316] ss:$2 sm:$0xff] %v1189
        %s1318 = scalar_lea.vmem [#allocation1], 33
        %1319 = vst [vmem:[%s1318] ss:$2 sm:$0xff] %v1191
        %s1320 = scalar_lea.vmem [#allocation1], 48
        %1321 = vst [vmem:[%s1320] ss:$2 sm:$0xff] %v1192
        %s1322 = scalar_lea.vmem [#allocation1], 49
        %1323 = vst [vmem:[%s1322] ss:$2 sm:$0xff] %v1193
        %v1324 = vld.sshfl [vmem:[#allocation1] sm:$0xff pattern:$0x75316420]
        %v1325 = vld.sshfl [vmem:[#allocation1 + $0x8] sm:$0xff pattern:$0x75316420]
        %v1326 = vld.sshfl [vmem:[#allocation1 + $0x10] sm:$0xff pattern:$0x75316420]
        %v1327 = vld.sshfl [vmem:[#allocation1 + $0x18] sm:$0xff pattern:$0x75316420]
        %v1328 = vld.sshfl [vmem:[#allocation1 + $0x20] sm:$0xff pattern:$0x75316420]
        %v1329 = vld.sshfl [vmem:[#allocation1 + $0x28] sm:$0xff pattern:$0x75316420]
        %v1330 = vld.sshfl [vmem:[#allocation1 + $0x30] sm:$0xff pattern:$0x75316420]
        %v1331 = vld.sshfl [vmem:[#allocation1 + $0x38] sm:$0xff pattern:$0x75316420]
        %1332 = vst [vmem:[#allocation1] ss:$2 sm:$0xff] %v1195
        %1333 = vst [vmem:[%s1310] ss:$2 sm:$0xff] %v1196
        %1334 = vst [vmem:[%s1312] ss:$2 sm:$0xff] %v1198
        %1335 = vst [vmem:[%s1314] ss:$2 sm:$0xff] %v1199
        %1336 = vst [vmem:[%s1316] ss:$2 sm:$0xff] %v1201
        %1337 = vst [vmem:[%s1318] ss:$2 sm:$0xff] %v1202
        %1338 = vst [vmem:[%s1320] ss:$2 sm:$0xff] %v1203
        %1339 = vst [vmem:[%s1322] ss:$2 sm:$0xff] %v1205
        %v1340 = vld.sshfl [vmem:[#allocation1] sm:$0xff pattern:$0x75316420]
        %v1341 = vld.sshfl [vmem:[#allocation1 + $0x8] sm:$0xff pattern:$0x75316420]
        %v1342 = vld.sshfl [vmem:[#allocation1 + $0x10] sm:$0xff pattern:$0x75316420]
        %v1343 = vld.sshfl [vmem:[#allocation1 + $0x18] sm:$0xff pattern:$0x75316420]
        %v1344 = vld.sshfl [vmem:[#allocation1 + $0x20] sm:$0xff pattern:$0x75316420]
        %v1345 = vld.sshfl [vmem:[#allocation1 + $0x28] sm:$0xff pattern:$0x75316420]
        %v1346 = vld.sshfl [vmem:[#allocation1 + $0x30] sm:$0xff pattern:$0x75316420]
        %v1347 = vld.sshfl [vmem:[#allocation1 + $0x38] sm:$0xff pattern:$0x75316420]
        %1348 = vst [vmem:[#allocation1] ss:$2 sm:$0xff] %v1206
        %1349 = vst [vmem:[%s1310] ss:$2 sm:$0xff] %v1208
        %1350 = vst [vmem:[%s1312] ss:$2 sm:$0xff] %v1209
        %1351 = vst [vmem:[%s1314] ss:$2 sm:$0xff] %v1211
        %1352 = vst [vmem:[%s1316] ss:$2 sm:$0xff] %v1212
        %1353 = vst [vmem:[%s1318] ss:$2 sm:$0xff] %v1213
        %1354 = vst [vmem:[%s1320] ss:$2 sm:$0xff] %v1215
        %1355 = vst [vmem:[%s1322] ss:$2 sm:$0xff] %v1216
        %v1356 = vld.sshfl [vmem:[#allocation1] sm:$0xff pattern:$0x75316420]
        %v1357 = vld.sshfl [vmem:[#allocation1 + $0x8] sm:$0xff pattern:$0x75316420]
        %v1358 = vld.sshfl [vmem:[#allocation1 + $0x10] sm:$0xff pattern:$0x75316420]
        %v1359 = vld.sshfl [vmem:[#allocation1 + $0x18] sm:$0xff pattern:$0x75316420]
        %v1360 = vld.sshfl [vmem:[#allocation1 + $0x20] sm:$0xff pattern:$0x75316420]
        %v1361 = vld.sshfl [vmem:[#allocation1 + $0x28] sm:$0xff pattern:$0x75316420]
        %v1362 = vld.sshfl [vmem:[#allocation1 + $0x30] sm:$0xff pattern:$0x75316420]
        %v1363 = vld.sshfl [vmem:[#allocation1 + $0x38] sm:$0xff pattern:$0x75316420]
        %1364 = vst [vmem:[#allocation1] ss:$2 sm:$0xff] %v1218
        %1365 = vst [vmem:[%s1310] ss:$2 sm:$0xff] %v1219
        %1366 = vst [vmem:[%s1312] ss:$2 sm:$0xff] %v1221
        %1367 = vst [vmem:[%s1314] ss:$2 sm:$0xff] %v1222
        %1368 = vst [vmem:[%s1316] ss:$2 sm:$0xff] %v1223
        %1369 = vst [vmem:[%s1318] ss:$2 sm:$0xff] %v1225
        %1370 = vst [vmem:[%s1320] ss:$2 sm:$0xff] %v1226
        %1371 = vst [vmem:[%s1322] ss:$2 sm:$0xff] %v1228
        %v1372 = vld.sshfl [vmem:[#allocation1] sm:$0xff pattern:$0x75316420]
        %v1373 = vld.sshfl [vmem:[#allocation1 + $0x8] sm:$0xff pattern:$0x75316420]
        %v1374 = vld.sshfl [vmem:[#allocation1 + $0x10] sm:$0xff pattern:$0x75316420]
        %v1375 = vld.sshfl [vmem:[#allocation1 + $0x18] sm:$0xff pattern:$0x75316420]
        %v1376 = vld.sshfl [vmem:[#allocation1 + $0x20] sm:$0xff pattern:$0x75316420]
        %v1377 = vld.sshfl [vmem:[#allocation1 + $0x28] sm:$0xff pattern:$0x75316420]
        %v1378 = vld.sshfl [vmem:[#allocation1 + $0x30] sm:$0xff pattern:$0x75316420]
        %v1379 = vld.sshfl [vmem:[#allocation1 + $0x38] sm:$0xff pattern:$0x75316420]
        %1380 = vst [vmem:[#allocation1] ss:$2 sm:$0xff] %v1229
        %1381 = vst [vmem:[%s1310] ss:$2 sm:$0xff] %v1231
        %1382 = vst [vmem:[%s1312] ss:$2 sm:$0xff] %v1232
        %1383 = vst [vmem:[%s1314] ss:$2 sm:$0xff] %v1233
        %1384 = vst [vmem:[%s1316] ss:$2 sm:$0xff] %v1235
        %1385 = vst [vmem:[%s1318] ss:$2 sm:$0xff] %v1236
        %1386 = vst [vmem:[%s1320] ss:$2 sm:$0xff] %v1238
        %1387 = vst [vmem:[%s1322] ss:$2 sm:$0xff] %v1239
        %v1388 = vld.sshfl [vmem:[#allocation1] sm:$0xff pattern:$0x75316420]
        %v1389 = vld.sshfl [vmem:[#allocation1 + $0x8] sm:$0xff pattern:$0x75316420]
        %v1390 = vld.sshfl [vmem:[#allocation1 + $0x10] sm:$0xff pattern:$0x75316420]
        %v1391 = vld.sshfl [vmem:[#allocation1 + $0x18] sm:$0xff pattern:$0x75316420]
        %v1392 = vld.sshfl [vmem:[#allocation1 + $0x20] sm:$0xff pattern:$0x75316420]
        %v1393 = vld.sshfl [vmem:[#allocation1 + $0x28] sm:$0xff pattern:$0x75316420]
        %v1394 = vld.sshfl [vmem:[#allocation1 + $0x30] sm:$0xff pattern:$0x75316420]
        %v1395 = vld.sshfl [vmem:[#allocation1 + $0x38] sm:$0xff pattern:$0x75316420]
        %1396 = vst [vmem:[#allocation1] ss:$2 sm:$0xff] %v1241
        %1397 = vst [vmem:[%s1310] ss:$2 sm:$0xff] %v1242
        %1398 = vst [vmem:[%s1312] ss:$2 sm:$0xff] %v1243
        %1399 = vst [vmem:[%s1314] ss:$2 sm:$0xff] %v1245
        %1400 = vst [vmem:[%s1316] ss:$2 sm:$0xff] %v1246
        %1401 = vst [vmem:[%s1318] ss:$2 sm:$0xff] %v1248
        %1402 = vst [vmem:[%s1320] ss:$2 sm:$0xff] %v1249
        %1403 = vst [vmem:[%s1322] ss:$2 sm:$0xff] %v1251
        %v1404 = vld.sshfl [vmem:[#allocation1] sm:$0xff pattern:$0x75316420]
        %v1405 = vld.sshfl [vmem:[#allocation1 + $0x8] sm:$0xff pattern:$0x75316420]
        %v1406 = vld.sshfl [vmem:[#allocation1 + $0x10] sm:$0xff pattern:$0x75316420]
        %v1407 = vld.sshfl [vmem:[#allocation1 + $0x18] sm:$0xff pattern:$0x75316420]
        %v1408 = vld.sshfl [vmem:[#allocation1 + $0x20] sm:$0xff pattern:$0x75316420]
        %v1409 = vld.sshfl [vmem:[#allocation1 + $0x28] sm:$0xff pattern:$0x75316420]
        %v1410 = vld.sshfl [vmem:[#allocation1 + $0x30] sm:$0xff pattern:$0x75316420]
        %v1411 = vld.sshfl [vmem:[#allocation1 + $0x38] sm:$0xff pattern:$0x75316420]
        %1412 = vst [vmem:[#allocation1] ss:$2 sm:$0xff] %v1252
        %1413 = vst [vmem:[%s1310] ss:$2 sm:$0xff] %v1253
        %1414 = vst [vmem:[%s1312] ss:$2 sm:$0xff] %v1255
        %1415 = vst [vmem:[%s1314] ss:$2 sm:$0xff] %v1256
        %1416 = vst [vmem:[%s1316] ss:$2 sm:$0xff] %v1258
        %1417 = vst [vmem:[%s1318] ss:$2 sm:$0xff] %v1259
        %1418 = vst [vmem:[%s1320] ss:$2 sm:$0xff] %v1261
        %1419 = vst [vmem:[%s1322] ss:$2 sm:$0xff] %v1262
        %v1420 = vld.sshfl [vmem:[#allocation1] sm:$0xff pattern:$0x75316420]
        %v1421 = vld.sshfl [vmem:[#allocation1 + $0x8] sm:$0xff pattern:$0x75316420]
        %v1422 = vld.sshfl [vmem:[#allocation1 + $0x10] sm:$0xff pattern:$0x75316420]
        %v1423 = vld.sshfl [vmem:[#allocation1 + $0x18] sm:$0xff pattern:$0x75316420]
        %v1424 = vld.sshfl [vmem:[#allocation1 + $0x20] sm:$0xff pattern:$0x75316420]
        %v1425 = vld.sshfl [vmem:[#allocation1 + $0x28] sm:$0xff pattern:$0x75316420]
        %v1426 = vld.sshfl [vmem:[#allocation1 + $0x30] sm:$0xff pattern:$0x75316420]
        %v1427 = vld.sshfl [vmem:[#allocation1 + $0x38] sm:$0xff pattern:$0x75316420]
        %v1456 = vsel %vm1020, %v1325, 0
        %v1458 = vsel %vm1020, %v1327, 0
        %v1460 = vsel %vm1020, %v1329, 0
        %v1462 = vsel %vm1020, %v1331, 0
        %v1464 = vsel %vm1020, %v1341, 0
        %v1466 = vsel %vm1020, %v1343, 0
        %v1468 = vsel %vm1020, %v1345, 0
        %v1470 = vsel %vm1020, %v1347, 0
        %v1472 = vsel %vm1020, %v1357, 0
        %v1474 = vsel %vm1020, %v1359, 0
        %v1476 = vsel %vm1020, %v1361, 0
        %v1478 = vsel %vm1020, %v1363, 0
        %v1480 = vsel %vm1020, %v1373, 0
        %v1482 = vsel %vm1020, %v1375, 0
        %v1484 = vsel %vm1020, %v1377, 0
        %v1486 = vsel %vm1020, %v1379, 0
        %v1488 = vsel %vm1020, %v1389, 0
        %v1490 = vsel %vm1020, %v1391, 0
        %v1492 = vsel %vm1020, %v1393, 0
        %v1494 = vsel %vm1020, %v1395, 0
        %v1496 = vsel %vm1020, %v1405, 0
        %v1498 = vsel %vm1020, %v1407, 0
        %v1500 = vsel %vm1020, %v1409, 0
        %v1502 = vsel %vm1020, %v1411, 0
        %v1504 = vsel %vm1020, %v1421, 0
        %v1506 = vsel %vm1020, %v1423, 0
        %v1508 = vsel %vm1020, %v1425, 0
        %v1510 = vsel %vm1020, %v1427, 0
        %1512 = vmatpush.msra.mxu0 %v1293
        %1513 = vmatpush.msra.mxu0 %v1291
        %1514 = vmatpush.msra.mxu0 %v1289
        %1515 = vmatpush.msra.mxu0 %v1287
        %1516 = vmatpush.msra.mxu0 %v1285
        %1517 = vmatpush.msra.mxu0 %v1283
        %1518 = vmatpush.msra.mxu0 %v1281
        %1519 = vmatpush.msra.mxu0 %v1279
        %1520 = vmatpush.msra.mxu0 %v1277
        %1521 = vmatpush.msra.mxu0 %v1275
        %1522 = vmatpush.msra.mxu0 %v1273
        %1523 = vmatpush.msra.mxu0 %v1271
        %1524 = vmatpush.msra.mxu0 %v1269
        %1525 = vmatpush.msra.mxu0 %v1267
        %1526 = vmatpush.msra.mxu0 %v1265
        %1527 = vmatpush.msra.mxu0 %v1263
        %1528 = vmatmul.f32.gmra.mxu0 %v1324
        %v1529 = vpop.f32.mrf.mxu0
        %v1530 = vadd.f32 %v1305, %v1529
        %1531 = vmatmul.f32.gmra.mxu0 %v1326
        %v1532 = vpop.f32.mrf.mxu0
        %v1533 = vadd.f32 %v1305, %v1532
        %1534 = vmatmul.f32.gmra.mxu0 %v1328
        %v1535 = vpop.f32.mrf.mxu0
        %v1536 = vadd.f32 %v1305, %v1535
        %1537 = vmatmul.f32.gmra.mxu0 %v1330
        %v1538 = vpop.f32.mrf.mxu0
        %v1539 = vadd.f32 %v1305, %v1538
        %1540 = vmatmul.f32.gmra.mxu0 %v1340
        %v1541 = vpop.f32.mrf.mxu0
        %v1542 = vadd.f32 %v1305, %v1541
        %1543 = vmatmul.f32.gmra.mxu0 %v1342
        %v1544 = vpop.f32.mrf.mxu0
        %v1545 = vadd.f32 %v1305, %v1544
        %1546 = vmatmul.f32.gmra.mxu0 %v1344
        %v1547 = vpop.f32.mrf.mxu0
        %v1548 = vadd.f32 %v1305, %v1547
        %1549 = vmatmul.f32.gmra.mxu0 %v1346
        %v1550 = vpop.f32.mrf.mxu0
        %v1551 = vadd.f32 %v1305, %v1550
        %1552 = vmatmul.f32.gmra.mxu0 %v1356
        %v1553 = vpop.f32.mrf.mxu0
        %v1554 = vadd.f32 %v1305, %v1553
        %1555 = vmatmul.f32.gmra.mxu0 %v1358
        %v1556 = vpop.f32.mrf.mxu0
        %v1557 = vadd.f32 %v1305, %v1556
        %1558 = vmatmul.f32.gmra.mxu0 %v1360
        %v1559 = vpop.f32.mrf.mxu0
        %v1560 = vadd.f32 %v1305, %v1559
        %1561 = vmatmul.f32.gmra.mxu0 %v1362
        %v1562 = vpop.f32.mrf.mxu0
        %v1563 = vadd.f32 %v1305, %v1562
        %1564 = vmatmul.f32.gmra.mxu0 %v1372
        %v1565 = vpop.f32.mrf.mxu0
        %v1566 = vadd.f32 %v1305, %v1565
        %1567 = vmatmul.f32.gmra.mxu0 %v1374
        %v1568 = vpop.f32.mrf.mxu0
        %v1569 = vadd.f32 %v1305, %v1568
        %1570 = vmatmul.f32.gmra.mxu0 %v1376
        %v1571 = vpop.f32.mrf.mxu0
        %v1572 = vadd.f32 %v1305, %v1571
        %1573 = vmatmul.f32.gmra.mxu0 %v1378
        %v1574 = vpop.f32.mrf.mxu0
        %v1575 = vadd.f32 %v1305, %v1574
        %1576 = vmatmul.f32.gmra.mxu0 %v1388
        %v1577 = vpop.f32.mrf.mxu0
        %v1578 = vadd.f32 %v1305, %v1577
        %1579 = vmatmul.f32.gmra.mxu0 %v1390
        %v1580 = vpop.f32.mrf.mxu0
        %v1581 = vadd.f32 %v1305, %v1580
        %1582 = vmatmul.f32.gmra.mxu0 %v1392
        %v1583 = vpop.f32.mrf.mxu0
        %v1584 = vadd.f32 %v1305, %v1583
        %1585 = vmatmul.f32.gmra.mxu0 %v1394
        %v1586 = vpop.f32.mrf.mxu0
        %v1587 = vadd.f32 %v1305, %v1586
        %1588 = vmatmul.f32.gmra.mxu0 %v1404
        %v1589 = vpop.f32.mrf.mxu0
        %v1590 = vadd.f32 %v1305, %v1589
        %1591 = vmatmul.f32.gmra.mxu0 %v1406
        %v1592 = vpop.f32.mrf.mxu0
        %v1593 = vadd.f32 %v1305, %v1592
        %1594 = vmatmul.f32.gmra.mxu0 %v1408
        %v1595 = vpop.f32.mrf.mxu0
        %v1596 = vadd.f32 %v1305, %v1595
        %1597 = vmatmul.f32.gmra.mxu0 %v1410
        %v1598 = vpop.f32.mrf.mxu0
        %v1599 = vadd.f32 %v1305, %v1598
        %1600 = vmatmul.f32.gmra.mxu0 %v1420
        %v1601 = vpop.f32.mrf.mxu0
        %v1602 = vadd.f32 %v1305, %v1601
        %1603 = vmatmul.f32.gmra.mxu0 %v1422
        %v1604 = vpop.f32.mrf.mxu0
        %v1605 = vadd.f32 %v1305, %v1604
        %1606 = vmatmul.f32.gmra.mxu0 %v1424
        %v1607 = vpop.f32.mrf.mxu0
        %v1608 = vadd.f32 %v1305, %v1607
        %1609 = vmatmul.f32.gmra.mxu0 %v1426
        %v1610 = vpop.f32.mrf.mxu0
        %v1611 = vadd.f32 %v1305, %v1610
        %1612 = vdwg.mxu0
        %1613 = vmatpush.msra.mxu0 0.0
        %1614 = vmatpush.msra.mxu0 0.0
        %1615 = vmatpush.msra.mxu0 0.0
        %1616 = vmatpush.msra.mxu0 0.0
        %1617 = vmatpush.msra.mxu0 0.0
        %1618 = vmatpush.msra.mxu0 0.0
        %1619 = vmatpush.msra.mxu0 0.0
        %1620 = vmatpush.msra.mxu0 0.0
        %1621 = vmatpush.msra.mxu0 0.0
        %1622 = vmatpush.msra.mxu0 0.0
        %1623 = vmatpush.msra.mxu0 0.0
        %1624 = vmatpush.msra.mxu0 0.0
        %1625 = vmatpush.msra.mxu0 %v1301
        %1626 = vmatpush.msra.mxu0 %v1299
        %1627 = vmatpush.msra.mxu0 %v1297
        %1628 = vmatpush.msra.mxu0 %v1295
        %1629 = vmatmul.f32.gmra.mxu0 %v1456
        %v1630 = vpop.f32.mrf.mxu0
        %v1631 = vadd.f32 %v1530, %v1630
        %1632 = vmatmul.f32.gmra.mxu0 %v1458
        %v1633 = vpop.f32.mrf.mxu0
        %v1634 = vadd.f32 %v1533, %v1633
        %1635 = vmatmul.f32.gmra.mxu0 %v1460
        %v1636 = vpop.f32.mrf.mxu0
        %v1637 = vadd.f32 %v1536, %v1636
        %1638 = vmatmul.f32.gmra.mxu0 %v1462
        %v1639 = vpop.f32.mrf.mxu0
        %v1640 = vadd.f32 %v1539, %v1639
        %1641 = vmatmul.f32.gmra.mxu0 %v1464
        %v1642 = vpop.f32.mrf.mxu0
        %v1643 = vadd.f32 %v1542, %v1642
        %1644 = vmatmul.f32.gmra.mxu0 %v1466
        %v1645 = vpop.f32.mrf.mxu0
        %v1646 = vadd.f32 %v1545, %v1645
        %1647 = vmatmul.f32.gmra.mxu0 %v1468
        %v1648 = vpop.f32.mrf.mxu0
        %v1649 = vadd.f32 %v1548, %v1648
        %1650 = vmatmul.f32.gmra.mxu0 %v1470
        %v1651 = vpop.f32.mrf.mxu0
        %v1652 = vadd.f32 %v1551, %v1651
        %1653 = vmatmul.f32.gmra.mxu0 %v1472
        %v1654 = vpop.f32.mrf.mxu0
        %v1655 = vadd.f32 %v1554, %v1654
        %1656 = vmatmul.f32.gmra.mxu0 %v1474
        %v1657 = vpop.f32.mrf.mxu0
        %v1658 = vadd.f32 %v1557, %v1657
        %1659 = vmatmul.f32.gmra.mxu0 %v1476
        %v1660 = vpop.f32.mrf.mxu0
        %v1661 = vadd.f32 %v1560, %v1660
        %1662 = vmatmul.f32.gmra.mxu0 %v1478
        %v1663 = vpop.f32.mrf.mxu0
        %v1664 = vadd.f32 %v1563, %v1663
        %1665 = vmatmul.f32.gmra.mxu0 %v1480
        %v1666 = vpop.f32.mrf.mxu0
        %v1667 = vadd.f32 %v1566, %v1666
        %1668 = vmatmul.f32.gmra.mxu0 %v1482
        %v1669 = vpop.f32.mrf.mxu0
        %v1670 = vadd.f32 %v1569, %v1669
        %1671 = vmatmul.f32.gmra.mxu0 %v1484
        %v1672 = vpop.f32.mrf.mxu0
        %v1673 = vadd.f32 %v1572, %v1672
        %1674 = vmatmul.f32.gmra.mxu0 %v1486
        %v1675 = vpop.f32.mrf.mxu0
        %v1676 = vadd.f32 %v1575, %v1675
        %1677 = vmatmul.f32.gmra.mxu0 %v1488
        %v1678 = vpop.f32.mrf.mxu0
        %v1679 = vadd.f32 %v1578, %v1678
        %1680 = vmatmul.f32.gmra.mxu0 %v1490
        %v1681 = vpop.f32.mrf.mxu0
        %v1682 = vadd.f32 %v1581, %v1681
        %1683 = vmatmul.f32.gmra.mxu0 %v1492
        %v1684 = vpop.f32.mrf.mxu0
        %v1685 = vadd.f32 %v1584, %v1684
        %1686 = vmatmul.f32.gmra.mxu0 %v1494
        %v1687 = vpop.f32.mrf.mxu0
        %v1688 = vadd.f32 %v1587, %v1687
        %1689 = vmatmul.f32.gmra.mxu0 %v1496
        %v1690 = vpop.f32.mrf.mxu0
        %v1691 = vadd.f32 %v1590, %v1690
        %1692 = vmatmul.f32.gmra.mxu0 %v1498
        %v1693 = vpop.f32.mrf.mxu0
        %v1694 = vadd.f32 %v1593, %v1693
        %1695 = vmatmul.f32.gmra.mxu0 %v1500
        %v1696 = vpop.f32.mrf.mxu0
        %v1697 = vadd.f32 %v1596, %v1696
        %1698 = vmatmul.f32.gmra.mxu0 %v1502
        %v1699 = vpop.f32.mrf.mxu0
        %v1700 = vadd.f32 %v1599, %v1699
        %1701 = vmatmul.f32.gmra.mxu0 %v1504
        %v1702 = vpop.f32.mrf.mxu0
        %v1703 = vadd.f32 %v1602, %v1702
        %1704 = vmatmul.f32.gmra.mxu0 %v1506
        %v1705 = vpop.f32.mrf.mxu0
        %v1706 = vadd.f32 %v1605, %v1705
        %1707 = vmatmul.f32.gmra.mxu0 %v1508
        %v1708 = vpop.f32.mrf.mxu0
        %v1709 = vadd.f32 %v1608, %v1708
        %1710 = vmatmul.f32.gmra.mxu0 %v1510
        %v1711 = vpop.f32.mrf.mxu0
        %v1712 = vadd.f32 %v1611, %v1711
        %1713 = vdwg.mxu0
        %1714 = vmatpush.msra.mxu0 %v1294
        %1715 = vmatpush.msra.mxu0 %v1292
        %1716 = vmatpush.msra.mxu0 %v1290
        %1717 = vmatpush.msra.mxu0 %v1288
        %1718 = vmatpush.msra.mxu0 %v1286
        %1719 = vmatpush.msra.mxu0 %v1284
        %1720 = vmatpush.msra.mxu0 %v1282
        %1721 = vmatpush.msra.mxu0 %v1280
        %1722 = vmatpush.msra.mxu0 %v1278
        %1723 = vmatpush.msra.mxu0 %v1276
        %1724 = vmatpush.msra.mxu0 %v1274
        %1725 = vmatpush.msra.mxu0 %v1272
        %1726 = vmatpush.msra.mxu0 %v1270
        %1727 = vmatpush.msra.mxu0 %v1268
        %1728 = vmatpush.msra.mxu0 %v1266
        %1729 = vmatpush.msra.mxu0 %v1264
        %1730 = vmatmul.f32.gmra.mxu0 %v1324
        %v1731 = vpop.f32.mrf.mxu0
        %v1732 = vadd.f32 %v1306, %v1731
        %1733 = vmatmul.f32.gmra.mxu0 %v1326
        %v1734 = vpop.f32.mrf.mxu0
        %v1735 = vadd.f32 %v1306, %v1734
        %1736 = vmatmul.f32.gmra.mxu0 %v1328
        %v1737 = vpop.f32.mrf.mxu0
        %v1738 = vadd.f32 %v1306, %v1737
        %1739 = vmatmul.f32.gmra.mxu0 %v1330
        %v1740 = vpop.f32.mrf.mxu0
        %v1741 = vadd.f32 %v1306, %v1740
        %1742 = vmatmul.f32.gmra.mxu0 %v1340
        %v1743 = vpop.f32.mrf.mxu0
        %v1744 = vadd.f32 %v1306, %v1743
        %1745 = vmatmul.f32.gmra.mxu0 %v1342
        %v1746 = vpop.f32.mrf.mxu0
        %v1747 = vadd.f32 %v1306, %v1746
        %1748 = vmatmul.f32.gmra.mxu0 %v1344
        %v1749 = vpop.f32.mrf.mxu0
        %v1750 = vadd.f32 %v1306, %v1749
        %1751 = vmatmul.f32.gmra.mxu0 %v1346
        %v1752 = vpop.f32.mrf.mxu0
        %v1753 = vadd.f32 %v1306, %v1752
        %1754 = vmatmul.f32.gmra.mxu0 %v1356
        %v1755 = vpop.f32.mrf.mxu0
        %v1756 = vadd.f32 %v1306, %v1755
        %1757 = vmatmul.f32.gmra.mxu0 %v1358
        %v1758 = vpop.f32.mrf.mxu0
        %v1759 = vadd.f32 %v1306, %v1758
        %1760 = vmatmul.f32.gmra.mxu0 %v1360
        %v1761 = vpop.f32.mrf.mxu0
        %v1762 = vadd.f32 %v1306, %v1761
        %1763 = vmatmul.f32.gmra.mxu0 %v1362
        %v1764 = vpop.f32.mrf.mxu0
        %v1765 = vadd.f32 %v1306, %v1764
        %1766 = vmatmul.f32.gmra.mxu0 %v1372
        %v1767 = vpop.f32.mrf.mxu0
        %v1768 = vadd.f32 %v1306, %v1767
        %1769 = vmatmul.f32.gmra.mxu0 %v1374
        %v1770 = vpop.f32.mrf.mxu0
        %v1771 = vadd.f32 %v1306, %v1770
        %1772 = vmatmul.f32.gmra.mxu0 %v1376
        %v1773 = vpop.f32.mrf.mxu0
        %v1774 = vadd.f32 %v1306, %v1773
        %1775 = vmatmul.f32.gmra.mxu0 %v1378
        %v1776 = vpop.f32.mrf.mxu0
        %v1777 = vadd.f32 %v1306, %v1776
        %1778 = vmatmul.f32.gmra.mxu0 %v1388
        %v1779 = vpop.f32.mrf.mxu0
        %v1780 = vadd.f32 %v1306, %v1779
        %1781 = vmatmul.f32.gmra.mxu0 %v1390
        %v1782 = vpop.f32.mrf.mxu0
        %v1783 = vadd.f32 %v1306, %v1782
        %1784 = vmatmul.f32.gmra.mxu0 %v1392
        %v1785 = vpop.f32.mrf.mxu0
        %v1786 = vadd.f32 %v1306, %v1785
        %1787 = vmatmul.f32.gmra.mxu0 %v1394
        %v1788 = vpop.f32.mrf.mxu0
        %v1789 = vadd.f32 %v1306, %v1788
        %1790 = vmatmul.f32.gmra.mxu0 %v1404
        %v1791 = vpop.f32.mrf.mxu0
        %v1792 = vadd.f32 %v1306, %v1791
        %1793 = vmatmul.f32.gmra.mxu0 %v1406
        %v1794 = vpop.f32.mrf.mxu0
        %v1795 = vadd.f32 %v1306, %v1794
        %1796 = vmatmul.f32.gmra.mxu0 %v1408
        %v1797 = vpop.f32.mrf.mxu0
        %v1798 = vadd.f32 %v1306, %v1797
        %1799 = vmatmul.f32.gmra.mxu0 %v1410
        %v1800 = vpop.f32.mrf.mxu0
        %v1801 = vadd.f32 %v1306, %v1800
        %1802 = vmatmul.f32.gmra.mxu0 %v1420
        %v1803 = vpop.f32.mrf.mxu0
        %v1804 = vadd.f32 %v1306, %v1803
        %1805 = vmatmul.f32.gmra.mxu0 %v1422
        %v1806 = vpop.f32.mrf.mxu0
        %v1807 = vadd.f32 %v1306, %v1806
        %1808 = vmatmul.f32.gmra.mxu0 %v1424
        %v1809 = vpop.f32.mrf.mxu0
        %v1810 = vadd.f32 %v1306, %v1809
        %1811 = vmatmul.f32.gmra.mxu0 %v1426
        %v1812 = vpop.f32.mrf.mxu0
        %v1813 = vadd.f32 %v1306, %v1812
        %1814 = vdwg.mxu0
        %1815 = vmatpush.msra.mxu0 0.0
        %1816 = vmatpush.msra.mxu0 0.0
        %1817 = vmatpush.msra.mxu0 0.0
        %1818 = vmatpush.msra.mxu0 0.0
        %1819 = vmatpush.msra.mxu0 0.0
        %1820 = vmatpush.msra.mxu0 0.0
        %1821 = vmatpush.msra.mxu0 0.0
        %1822 = vmatpush.msra.mxu0 0.0
        %1823 = vmatpush.msra.mxu0 0.0
        %1824 = vmatpush.msra.mxu0 0.0
        %1825 = vmatpush.msra.mxu0 0.0
        %1826 = vmatpush.msra.mxu0 0.0
        %1827 = vmatpush.msra.mxu0 %v1302
        %1828 = vmatpush.msra.mxu0 %v1300
        %1829 = vmatpush.msra.mxu0 %v1298
        %1830 = vmatpush.msra.mxu0 %v1296
        %1831 = vmatmul.f32.gmra.mxu0 %v1456
        %v1832 = vpop.f32.mrf.mxu0
        %v1833 = vadd.f32 %v1732, %v1832
        %1834 = vmatmul.f32.gmra.mxu0 %v1458
        %v1835 = vpop.f32.mrf.mxu0
        %v1836 = vadd.f32 %v1735, %v1835
        %1837 = vmatmul.f32.gmra.mxu0 %v1460
        %v1838 = vpop.f32.mrf.mxu0
        %v1839 = vadd.f32 %v1738, %v1838
        %1840 = vmatmul.f32.gmra.mxu0 %v1462
        %v1841 = vpop.f32.mrf.mxu0
        %v1842 = vadd.f32 %v1741, %v1841
        %1843 = vmatmul.f32.gmra.mxu0 %v1464
        %v1844 = vpop.f32.mrf.mxu0
        %v1845 = vadd.f32 %v1744, %v1844
        %1846 = vmatmul.f32.gmra.mxu0 %v1466
        %v1847 = vpop.f32.mrf.mxu0
        %v1848 = vadd.f32 %v1747, %v1847
        %1849 = vmatmul.f32.gmra.mxu0 %v1468
        %v1850 = vpop.f32.mrf.mxu0
        %v1851 = vadd.f32 %v1750, %v1850
        %1852 = vmatmul.f32.gmra.mxu0 %v1470
        %v1853 = vpop.f32.mrf.mxu0
        %v1854 = vadd.f32 %v1753, %v1853
        %1855 = vmatmul.f32.gmra.mxu0 %v1472
        %v1856 = vpop.f32.mrf.mxu0
        %v1857 = vadd.f32 %v1756, %v1856
        %1858 = vmatmul.f32.gmra.mxu0 %v1474
        %v1859 = vpop.f32.mrf.mxu0
        %v1860 = vadd.f32 %v1759, %v1859
        %1861 = vmatmul.f32.gmra.mxu0 %v1476
        %v1862 = vpop.f32.mrf.mxu0
        %v1863 = vadd.f32 %v1762, %v1862
        %1864 = vmatmul.f32.gmra.mxu0 %v1478
        %v1865 = vpop.f32.mrf.mxu0
        %v1866 = vadd.f32 %v1765, %v1865
        %1867 = vmatmul.f32.gmra.mxu0 %v1480
        %v1868 = vpop.f32.mrf.mxu0
        %v1869 = vadd.f32 %v1768, %v1868
        %1870 = vmatmul.f32.gmra.mxu0 %v1482
        %v1871 = vpop.f32.mrf.mxu0
        %v1872 = vadd.f32 %v1771, %v1871
        %1873 = vmatmul.f32.gmra.mxu0 %v1484
        %v1874 = vpop.f32.mrf.mxu0
        %v1875 = vadd.f32 %v1774, %v1874
        %1876 = vmatmul.f32.gmra.mxu0 %v1486
        %v1877 = vpop.f32.mrf.mxu0
        %v1878 = vadd.f32 %v1777, %v1877
        %1879 = vmatmul.f32.gmra.mxu0 %v1488
        %v1880 = vpop.f32.mrf.mxu0
        %v1881 = vadd.f32 %v1780, %v1880
        %1882 = vmatmul.f32.gmra.mxu0 %v1490
        %v1883 = vpop.f32.mrf.mxu0
        %v1884 = vadd.f32 %v1783, %v1883
        %1885 = vmatmul.f32.gmra.mxu0 %v1492
        %v1886 = vpop.f32.mrf.mxu0
        %v1887 = vadd.f32 %v1786, %v1886
        %1888 = vmatmul.f32.gmra.mxu0 %v1494
        %v1889 = vpop.f32.mrf.mxu0
        %v1890 = vadd.f32 %v1789, %v1889
        %1891 = vmatmul.f32.gmra.mxu0 %v1496
        %v1892 = vpop.f32.mrf.mxu0
        %v1893 = vadd.f32 %v1792, %v1892
        %1894 = vmatmul.f32.gmra.mxu0 %v1498
        %v1895 = vpop.f32.mrf.mxu0
        %v1896 = vadd.f32 %v1795, %v1895
        %1897 = vmatmul.f32.gmra.mxu0 %v1500
        %v1898 = vpop.f32.mrf.mxu0
        %v1899 = vadd.f32 %v1798, %v1898
        %1900 = vmatmul.f32.gmra.mxu0 %v1502
        %v1901 = vpop.f32.mrf.mxu0
        %v1902 = vadd.f32 %v1801, %v1901
        %1903 = vmatmul.f32.gmra.mxu0 %v1504
        %v1904 = vpop.f32.mrf.mxu0
        %v1905 = vadd.f32 %v1804, %v1904
        %1906 = vmatmul.f32.gmra.mxu0 %v1506
        %v1907 = vpop.f32.mrf.mxu0
        %v1908 = vadd.f32 %v1807, %v1907
        %1909 = vmatmul.f32.gmra.mxu0 %v1508
        %v1910 = vpop.f32.mrf.mxu0
        %v1911 = vadd.f32 %v1810, %v1910
        %1912 = vmatmul.f32.gmra.mxu0 %v1510
        %v1913 = vpop.f32.mrf.mxu0
        %v1914 = vadd.f32 %v1813, %v1913
        %1915 = vdwg.mxu0
        %v1916 = vmax.f32 %v1631, 0.0
        %v1917 = vmax.f32 %v1833, 0.0
        %v1918 = vmax.f32 %v1634, 0.0
        %v1919 = vmax.f32 %v1836, 0.0
        %v1920 = vmax.f32 %v1637, 0.0
        %v1921 = vmax.f32 %v1839, 0.0
        %v1922 = vmax.f32 %v1640, 0.0
        %v1923 = vmax.f32 %v1842, 0.0
        %v1924 = vmax.f32 %v1643, 0.0
        %v1925 = vmax.f32 %v1845, 0.0
        %v1926 = vmax.f32 %v1646, 0.0
        %v1927 = vmax.f32 %v1848, 0.0
        %v1928 = vmax.f32 %v1649, 0.0
        %v1929 = vmax.f32 %v1851, 0.0
        %v1930 = vmax.f32 %v1652, 0.0
        %v1931 = vmax.f32 %v1854, 0.0
        %v1932 = vmax.f32 %v1655, 0.0
        %v1933 = vmax.f32 %v1857, 0.0
        %v1934 = vmax.f32 %v1658, 0.0
        %v1935 = vmax.f32 %v1860, 0.0
        %v1936 = vmax.f32 %v1661, 0.0
        %v1937 = vmax.f32 %v1863, 0.0
        %v1938 = vmax.f32 %v1664, 0.0
        %v1939 = vmax.f32 %v1866, 0.0
        %v1940 = vmax.f32 %v1667, 0.0
        %v1941 = vmax.f32 %v1869, 0.0
        %v1942 = vmax.f32 %v1670, 0.0
        %v1943 = vmax.f32 %v1872, 0.0
        %v1944 = vmax.f32 %v1673, 0.0
        %v1945 = vmax.f32 %v1875, 0.0
        %v1946 = vmax.f32 %v1676, 0.0
        %v1947 = vmax.f32 %v1878, 0.0
        %v1948 = vmax.f32 %v1679, 0.0
        %v1949 = vmax.f32 %v1881, 0.0
        %v1950 = vmax.f32 %v1682, 0.0
        %v1951 = vmax.f32 %v1884, 0.0
        %v1952 = vmax.f32 %v1685, 0.0
        %v1953 = vmax.f32 %v1887, 0.0
        %v1954 = vmax.f32 %v1688, 0.0
        %v1955 = vmax.f32 %v1890, 0.0
        %v1956 = vmax.f32 %v1691, 0.0
        %v1957 = vmax.f32 %v1893, 0.0
        %v1958 = vmax.f32 %v1694, 0.0
        %v1959 = vmax.f32 %v1896, 0.0
        %v1960 = vmax.f32 %v1697, 0.0
        %v1961 = vmax.f32 %v1899, 0.0
        %v1962 = vmax.f32 %v1700, 0.0
        %v1963 = vmax.f32 %v1902, 0.0
        %v1964 = vmax.f32 %v1703, 0.0
        %v1965 = vmax.f32 %v1905, 0.0
        %v1966 = vmax.f32 %v1706, 0.0
        %v1967 = vmax.f32 %v1908, 0.0
        %v1968 = vmax.f32 %v1709, 0.0
        %v1969 = vmax.f32 %v1911, 0.0
        %v1970 = vmax.f32 %v1712, 0.0
        %v1971 = vmax.f32 %v1914, 0.0
        %v2028 = vrot.slane %v1917, 6
        %v2029 = vrot.slane %v1919, 6
        %v2030 = vrot.slane %v1921, 6
        %v2031 = vrot.slane %v1923, 6
        %v2032 = vrot.slane %v1925, 6
        %v2033 = vrot.slane %v1927, 6
        %v2034 = vrot.slane %v1929, 6
        %v2035 = vrot.slane %v1931, 6
        %v2036 = vrot.slane %v1933, 6
        %v2037 = vrot.slane %v1935, 6
        %v2038 = vrot.slane %v1937, 6
        %v2039 = vrot.slane %v1939, 6
        %v2040 = vrot.slane %v1941, 6
        %v2041 = vrot.slane %v1943, 6
        %v2042 = vrot.slane %v1945, 6
        %v2043 = vrot.slane %v1947, 6
        %v2044 = vrot.slane %v1949, 6
        %v2045 = vrot.slane %v1951, 6
        %v2046 = vrot.slane %v1953, 6
        %v2047 = vrot.slane %v1955, 6
        %v2048 = vrot.slane %v1957, 6
        %v2049 = vrot.slane %v1959, 6
        %v2050 = vrot.slane %v1961, 6
        %v2051 = vrot.slane %v1963, 6
        %v2052 = vrot.slane %v1965, 6
        %v2053 = vrot.slane %v1967, 6
        %v2054 = vrot.slane %v1969, 6
        %v2055 = vrot.slane %v1971, 6
        %vm2056 = vcmask 1041408
        %v2057 = vsel %vm2056, %v1916, %v2028
        %vm2058 = vcmask 1043458
        %v2059 = vsel %vm2058, %v1916, %v2028
        %v2060 = vrot.slane %v2059, 2
        %vm2061 = vcmask 1045508
        %v2062 = vsel %vm2061, %v1916, %v2028
        %v2063 = vrot.slane %v2062, 4
        %v2064 = vsel %vm657, %v2028, %v1916
        %v2065 = vrot.slane %v2064, 6
        %v2066 = vsel %vm2056, %v1918, %v2029
        %v2067 = vsel %vm2058, %v1918, %v2029
        %v2068 = vrot.slane %v2067, 2
        %v2069 = vsel %vm2061, %v1918, %v2029
        %v2070 = vrot.slane %v2069, 4
        %v2071 = vsel %vm657, %v2029, %v1918
        %v2072 = vrot.slane %v2071, 6
        %v2073 = vsel %vm2056, %v1920, %v2030
        %v2074 = vsel %vm2058, %v1920, %v2030
        %v2075 = vrot.slane %v2074, 2
        %v2076 = vsel %vm2061, %v1920, %v2030
        %v2077 = vrot.slane %v2076, 4
        %v2078 = vsel %vm657, %v2030, %v1920
        %v2079 = vrot.slane %v2078, 6
        %v2080 = vsel %vm2056, %v1922, %v2031
        %v2081 = vsel %vm2058, %v1922, %v2031
        %v2082 = vrot.slane %v2081, 2
        %v2083 = vsel %vm2061, %v1922, %v2031
        %v2084 = vrot.slane %v2083, 4
        %v2085 = vsel %vm657, %v2031, %v1922
        %v2086 = vrot.slane %v2085, 6
        %v2087 = vsel %vm2056, %v1924, %v2032
        %v2088 = vsel %vm2058, %v1924, %v2032
        %v2089 = vrot.slane %v2088, 2
        %v2090 = vsel %vm2061, %v1924, %v2032
        %v2091 = vrot.slane %v2090, 4
        %v2092 = vsel %vm657, %v2032, %v1924
        %v2093 = vrot.slane %v2092, 6
        %v2094 = vsel %vm2056, %v1926, %v2033
        %v2095 = vsel %vm2058, %v1926, %v2033
        %v2096 = vrot.slane %v2095, 2
        %v2097 = vsel %vm2061, %v1926, %v2033
        %v2098 = vrot.slane %v2097, 4
        %v2099 = vsel %vm657, %v2033, %v1926
        %v2100 = vrot.slane %v2099, 6
        %v2101 = vsel %vm2056, %v1928, %v2034
        %v2102 = vsel %vm2058, %v1928, %v2034
        %v2103 = vrot.slane %v2102, 2
        %v2104 = vsel %vm2061, %v1928, %v2034
        %v2105 = vrot.slane %v2104, 4
        %v2106 = vsel %vm657, %v2034, %v1928
        %v2107 = vrot.slane %v2106, 6
        %v2108 = vsel %vm2056, %v1930, %v2035
        %v2109 = vsel %vm2058, %v1930, %v2035
        %v2110 = vrot.slane %v2109, 2
        %v2111 = vsel %vm2061, %v1930, %v2035
        %v2112 = vrot.slane %v2111, 4
        %v2113 = vsel %vm657, %v2035, %v1930
        %v2114 = vrot.slane %v2113, 6
        %v2115 = vsel %vm2056, %v1932, %v2036
        %v2116 = vsel %vm2058, %v1932, %v2036
        %v2117 = vrot.slane %v2116, 2
        %v2118 = vsel %vm2061, %v1932, %v2036
        %v2119 = vrot.slane %v2118, 4
        %v2120 = vsel %vm657, %v2036, %v1932
        %v2121 = vrot.slane %v2120, 6
        %v2122 = vsel %vm2056, %v1934, %v2037
        %v2123 = vsel %vm2058, %v1934, %v2037
        %v2124 = vrot.slane %v2123, 2
        %v2125 = vsel %vm2061, %v1934, %v2037
        %v2126 = vrot.slane %v2125, 4
        %v2127 = vsel %vm657, %v2037, %v1934
        %v2128 = vrot.slane %v2127, 6
        %v2129 = vsel %vm2056, %v1936, %v2038
        %v2130 = vsel %vm2058, %v1936, %v2038
        %v2131 = vrot.slane %v2130, 2
        %v2132 = vsel %vm2061, %v1936, %v2038
        %v2133 = vrot.slane %v2132, 4
        %v2134 = vsel %vm657, %v2038, %v1936
        %v2135 = vrot.slane %v2134, 6
        %v2136 = vsel %vm2056, %v1938, %v2039
        %v2137 = vsel %vm2058, %v1938, %v2039
        %v2138 = vrot.slane %v2137, 2
        %v2139 = vsel %vm2061, %v1938, %v2039
        %v2140 = vrot.slane %v2139, 4
        %v2141 = vsel %vm657, %v2039, %v1938
        %v2142 = vrot.slane %v2141, 6
        %v2143 = vsel %vm2056, %v1940, %v2040
        %v2144 = vsel %vm2058, %v1940, %v2040
        %v2145 = vrot.slane %v2144, 2
        %v2146 = vsel %vm2061, %v1940, %v2040
        %v2147 = vrot.slane %v2146, 4
        %v2148 = vsel %vm657, %v2040, %v1940
        %v2149 = vrot.slane %v2148, 6
        %v2150 = vsel %vm2056, %v1942, %v2041
        %v2151 = vsel %vm2058, %v1942, %v2041
        %v2152 = vrot.slane %v2151, 2
        %v2153 = vsel %vm2061, %v1942, %v2041
        %v2154 = vrot.slane %v2153, 4
        %v2155 = vsel %vm657, %v2041, %v1942
        %v2156 = vrot.slane %v2155, 6
        %v2157 = vsel %vm2056, %v1944, %v2042
        %v2158 = vsel %vm2058, %v1944, %v2042
        %v2159 = vrot.slane %v2158, 2
        %v2160 = vsel %vm2061, %v1944, %v2042
        %v2161 = vrot.slane %v2160, 4
        %v2162 = vsel %vm657, %v2042, %v1944
        %v2163 = vrot.slane %v2162, 6
        %v2164 = vsel %vm2056, %v1946, %v2043
        %v2165 = vsel %vm2058, %v1946, %v2043
        %v2166 = vrot.slane %v2165, 2
        %v2167 = vsel %vm2061, %v1946, %v2043
        %v2168 = vrot.slane %v2167, 4
        %v2169 = vsel %vm657, %v2043, %v1946
        %v2170 = vrot.slane %v2169, 6
        %v2171 = vsel %vm2056, %v1948, %v2044
        %v2172 = vsel %vm2058, %v1948, %v2044
        %v2173 = vrot.slane %v2172, 2
        %v2174 = vsel %vm2061, %v1948, %v2044
        %v2175 = vrot.slane %v2174, 4
        %v2176 = vsel %vm657, %v2044, %v1948
        %v2177 = vrot.slane %v2176, 6
        %v2178 = vsel %vm2056, %v1950, %v2045
        %v2179 = vsel %vm2058, %v1950, %v2045
        %v2180 = vrot.slane %v2179, 2
        %v2181 = vsel %vm2061, %v1950, %v2045
        %v2182 = vrot.slane %v2181, 4
        %v2183 = vsel %vm657, %v2045, %v1950
        %v2184 = vrot.slane %v2183, 6
        %v2185 = vsel %vm2056, %v1952, %v2046
        %v2186 = vsel %vm2058, %v1952, %v2046
        %v2187 = vrot.slane %v2186, 2
        %v2188 = vsel %vm2061, %v1952, %v2046
        %v2189 = vrot.slane %v2188, 4
        %v2190 = vsel %vm657, %v2046, %v1952
        %v2191 = vrot.slane %v2190, 6
        %v2192 = vsel %vm2056, %v1954, %v2047
        %v2193 = vsel %vm2058, %v1954, %v2047
        %v2194 = vrot.slane %v2193, 2
        %v2195 = vsel %vm2061, %v1954, %v2047
        %v2196 = vrot.slane %v2195, 4
        %v2197 = vsel %vm657, %v2047, %v1954
        %v2198 = vrot.slane %v2197, 6
        %v2199 = vsel %vm2056, %v1956, %v2048
        %v2200 = vsel %vm2058, %v1956, %v2048
        %v2201 = vrot.slane %v2200, 2
        %v2202 = vsel %vm2061, %v1956, %v2048
        %v2203 = vrot.slane %v2202, 4
        %v2204 = vsel %vm657, %v2048, %v1956
        %v2205 = vrot.slane %v2204, 6
        %v2206 = vsel %vm2056, %v1958, %v2049
        %v2207 = vsel %vm2058, %v1958, %v2049
        %v2208 = vrot.slane %v2207, 2
        %v2209 = vsel %vm2061, %v1958, %v2049
        %v2210 = vrot.slane %v2209, 4
        %v2211 = vsel %vm657, %v2049, %v1958
        %v2212 = vrot.slane %v2211, 6
        %v2213 = vsel %vm2056, %v1960, %v2050
        %v2214 = vsel %vm2058, %v1960, %v2050
        %v2215 = vrot.slane %v2214, 2
        %v2216 = vsel %vm2061, %v1960, %v2050
        %v2217 = vrot.slane %v2216, 4
        %v2218 = vsel %vm657, %v2050, %v1960
        %v2219 = vrot.slane %v2218, 6
        %v2220 = vsel %vm2056, %v1962, %v2051
        %v2221 = vsel %vm2058, %v1962, %v2051
        %v2222 = vrot.slane %v2221, 2
        %v2223 = vsel %vm2061, %v1962, %v2051
        %v2224 = vrot.slane %v2223, 4
        %v2225 = vsel %vm657, %v2051, %v1962
        %v2226 = vrot.slane %v2225, 6
        %v2227 = vsel %vm2056, %v1964, %v2052
        %v2228 = vsel %vm2058, %v1964, %v2052
        %v2229 = vrot.slane %v2228, 2
        %v2230 = vsel %vm2061, %v1964, %v2052
        %v2231 = vrot.slane %v2230, 4
        %v2232 = vsel %vm657, %v2052, %v1964
        %v2233 = vrot.slane %v2232, 6
        %v2234 = vsel %vm2056, %v1966, %v2053
        %v2235 = vsel %vm2058, %v1966, %v2053
        %v2236 = vrot.slane %v2235, 2
        %v2237 = vsel %vm2061, %v1966, %v2053
        %v2238 = vrot.slane %v2237, 4
        %v2239 = vsel %vm657, %v2053, %v1966
        %v2240 = vrot.slane %v2239, 6
        %v2241 = vsel %vm2056, %v1968, %v2054
        %v2242 = vsel %vm2058, %v1968, %v2054
        %v2243 = vrot.slane %v2242, 2
        %v2244 = vsel %vm2061, %v1968, %v2054
        %v2245 = vrot.slane %v2244, 4
        %v2246 = vsel %vm657, %v2054, %v1968
        %v2247 = vrot.slane %v2246, 6
        %v2248 = vsel %vm2056, %v1970, %v2055
        %v2249 = vsel %vm2058, %v1970, %v2055
        %v2250 = vrot.slane %v2249, 2
        %v2251 = vsel %vm2061, %v1970, %v2055
        %v2252 = vrot.slane %v2251, 4
        %v2253 = vsel %vm657, %v2055, %v1970
        %v2254 = vrot.slane %v2253, 6
        %v2367 = vrot.slane %v2057, 7
        %v2368 = vrot.slane %v2367, 2
        %v2369 = vrot.slane %v2060, 7
        %v2370 = vrot.slane %v2369, 2
        %v2371 = vrot.slane %v2063, 7
        %v2372 = vrot.slane %v2371, 2
        %v2373 = vrot.slane %v2065, 7
        %v2374 = vrot.slane %v2373, 2
        %v2375 = vrot.slane %v2066, 7
        %v2376 = vrot.slane %v2375, 2
        %v2377 = vrot.slane %v2068, 7
        %v2378 = vrot.slane %v2377, 2
        %v2379 = vrot.slane %v2070, 7
        %v2380 = vrot.slane %v2379, 2
        %v2381 = vrot.slane %v2072, 7
        %v2382 = vrot.slane %v2381, 2
        %v2383 = vrot.slane %v2073, 7
        %v2384 = vrot.slane %v2383, 2
        %v2385 = vrot.slane %v2075, 7
        %v2386 = vrot.slane %v2385, 2
        %v2387 = vrot.slane %v2077, 7
        %v2388 = vrot.slane %v2387, 2
        %v2389 = vrot.slane %v2079, 7
        %v2390 = vrot.slane %v2389, 2
        %v2391 = vrot.slane %v2080, 7
        %v2392 = vrot.slane %v2391, 2
        %v2393 = vrot.slane %v2082, 7
        %v2394 = vrot.slane %v2393, 2
        %v2395 = vrot.slane %v2084, 7
        %v2396 = vrot.slane %v2395, 2
        %v2397 = vrot.slane %v2086, 7
        %v2398 = vrot.slane %v2397, 2
        %v2399 = vrot.slane %v2087, 7
        %v2400 = vrot.slane %v2399, 2
        %v2401 = vrot.slane %v2089, 7
        %v2402 = vrot.slane %v2401, 2
        %v2403 = vrot.slane %v2091, 7
        %v2404 = vrot.slane %v2403, 2
        %v2405 = vrot.slane %v2093, 7
        %v2406 = vrot.slane %v2405, 2
        %v2407 = vrot.slane %v2094, 7
        %v2408 = vrot.slane %v2407, 2
        %v2409 = vrot.slane %v2096, 7
        %v2410 = vrot.slane %v2409, 2
        %v2411 = vrot.slane %v2098, 7
        %v2412 = vrot.slane %v2411, 2
        %v2413 = vrot.slane %v2100, 7
        %v2414 = vrot.slane %v2413, 2
        %v2415 = vrot.slane %v2101, 7
        %v2416 = vrot.slane %v2415, 2
        %v2417 = vrot.slane %v2103, 7
        %v2418 = vrot.slane %v2417, 2
        %v2419 = vrot.slane %v2105, 7
        %v2420 = vrot.slane %v2419, 2
        %v2421 = vrot.slane %v2107, 7
        %v2422 = vrot.slane %v2421, 2
        %v2423 = vrot.slane %v2108, 7
        %v2424 = vrot.slane %v2423, 2
        %v2425 = vrot.slane %v2110, 7
        %v2426 = vrot.slane %v2425, 2
        %v2427 = vrot.slane %v2112, 7
        %v2428 = vrot.slane %v2427, 2
        %v2429 = vrot.slane %v2114, 7
        %v2430 = vrot.slane %v2429, 2
        %v2431 = vrot.slane %v2115, 7
        %v2432 = vrot.slane %v2431, 2
        %v2433 = vrot.slane %v2117, 7
        %v2434 = vrot.slane %v2433, 2
        %v2435 = vrot.slane %v2119, 7
        %v2436 = vrot.slane %v2435, 2
        %v2437 = vrot.slane %v2121, 7
        %v2438 = vrot.slane %v2437, 2
        %v2439 = vrot.slane %v2122, 7
        %v2440 = vrot.slane %v2439, 2
        %v2441 = vrot.slane %v2124, 7
        %v2442 = vrot.slane %v2441, 2
        %v2443 = vrot.slane %v2126, 7
        %v2444 = vrot.slane %v2443, 2
        %v2445 = vrot.slane %v2128, 7
        %v2446 = vrot.slane %v2445, 2
        %v2447 = vrot.slane %v2129, 7
        %v2448 = vrot.slane %v2447, 2
        %v2449 = vrot.slane %v2131, 7
        %v2450 = vrot.slane %v2449, 2
        %v2451 = vrot.slane %v2133, 7
        %v2452 = vrot.slane %v2451, 2
        %v2453 = vrot.slane %v2135, 7
        %v2454 = vrot.slane %v2453, 2
        %v2455 = vrot.slane %v2136, 7
        %v2456 = vrot.slane %v2455, 2
        %v2457 = vrot.slane %v2138, 7
        %v2458 = vrot.slane %v2457, 2
        %v2459 = vrot.slane %v2140, 7
        %v2460 = vrot.slane %v2459, 2
        %v2461 = vrot.slane %v2142, 7
        %v2462 = vrot.slane %v2461, 2
        %v2463 = vrot.slane %v2143, 7
        %v2464 = vrot.slane %v2463, 2
        %v2465 = vrot.slane %v2145, 7
        %v2466 = vrot.slane %v2465, 2
        %v2467 = vrot.slane %v2147, 7
        %v2468 = vrot.slane %v2467, 2
        %v2469 = vrot.slane %v2149, 7
        %v2470 = vrot.slane %v2469, 2
        %v2471 = vrot.slane %v2150, 7
        %v2472 = vrot.slane %v2471, 2
        %v2473 = vrot.slane %v2152, 7
        %v2474 = vrot.slane %v2473, 2
        %v2475 = vrot.slane %v2154, 7
        %v2476 = vrot.slane %v2475, 2
        %v2477 = vrot.slane %v2156, 7
        %v2478 = vrot.slane %v2477, 2
        %v2479 = vrot.slane %v2157, 7
        %v2480 = vrot.slane %v2479, 2
        %v2481 = vrot.slane %v2159, 7
        %v2482 = vrot.slane %v2481, 2
        %v2483 = vrot.slane %v2161, 7
        %v2484 = vrot.slane %v2483, 2
        %v2485 = vrot.slane %v2163, 7
        %v2486 = vrot.slane %v2485, 2
        %v2487 = vrot.slane %v2164, 7
        %v2488 = vrot.slane %v2487, 2
        %v2489 = vrot.slane %v2166, 7
        %v2490 = vrot.slane %v2489, 2
        %v2491 = vrot.slane %v2168, 7
        %v2492 = vrot.slane %v2491, 2
        %v2493 = vrot.slane %v2170, 7
        %v2494 = vrot.slane %v2493, 2
        %v2495 = vrot.slane %v2171, 7
        %v2496 = vrot.slane %v2495, 2
        %v2497 = vrot.slane %v2173, 7
        %v2498 = vrot.slane %v2497, 2
        %v2499 = vrot.slane %v2175, 7
        %v2500 = vrot.slane %v2499, 2
        %v2501 = vrot.slane %v2177, 7
        %v2502 = vrot.slane %v2501, 2
        %v2503 = vrot.slane %v2178, 7
        %v2504 = vrot.slane %v2503, 2
        %v2505 = vrot.slane %v2180, 7
        %v2506 = vrot.slane %v2505, 2
        %v2507 = vrot.slane %v2182, 7
        %v2508 = vrot.slane %v2507, 2
        %v2509 = vrot.slane %v2184, 7
        %v2510 = vrot.slane %v2509, 2
        %v2511 = vrot.slane %v2185, 7
        %v2512 = vrot.slane %v2511, 2
        %v2513 = vrot.slane %v2187, 7
        %v2514 = vrot.slane %v2513, 2
        %v2515 = vrot.slane %v2189, 7
        %v2516 = vrot.slane %v2515, 2
        %v2517 = vrot.slane %v2191, 7
        %v2518 = vrot.slane %v2517, 2
        %v2519 = vrot.slane %v2192, 7
        %v2520 = vrot.slane %v2519, 2
        %v2521 = vrot.slane %v2194, 7
        %v2522 = vrot.slane %v2521, 2
        %v2523 = vrot.slane %v2196, 7
        %v2524 = vrot.slane %v2523, 2
        %v2525 = vrot.slane %v2198, 7
        %v2526 = vrot.slane %v2525, 2
        %v2527 = vrot.slane %v2199, 7
        %v2528 = vrot.slane %v2527, 2
        %v2529 = vrot.slane %v2201, 7
        %v2530 = vrot.slane %v2529, 2
        %v2531 = vrot.slane %v2203, 7
        %v2532 = vrot.slane %v2531, 2
        %v2533 = vrot.slane %v2205, 7
        %v2534 = vrot.slane %v2533, 2
        %v2535 = vrot.slane %v2206, 7
        %v2536 = vrot.slane %v2535, 2
        %v2537 = vrot.slane %v2208, 7
        %v2538 = vrot.slane %v2537, 2
        %v2539 = vrot.slane %v2210, 7
        %v2540 = vrot.slane %v2539, 2
        %v2541 = vrot.slane %v2212, 7
        %v2542 = vrot.slane %v2541, 2
        %v2543 = vrot.slane %v2213, 7
        %v2544 = vrot.slane %v2543, 2
        %v2545 = vrot.slane %v2215, 7
        %v2546 = vrot.slane %v2545, 2
        %v2547 = vrot.slane %v2217, 7
        %v2548 = vrot.slane %v2547, 2
        %v2549 = vrot.slane %v2219, 7
        %v2550 = vrot.slane %v2549, 2
        %v2551 = vrot.slane %v2220, 7
        %v2552 = vrot.slane %v2551, 2
        %v2553 = vrot.slane %v2222, 7
        %v2554 = vrot.slane %v2553, 2
        %v2555 = vrot.slane %v2224, 7
        %v2556 = vrot.slane %v2555, 2
        %v2557 = vrot.slane %v2226, 7
        %v2558 = vrot.slane %v2557, 2
        %v2559 = vrot.slane %v2227, 7
        %v2560 = vrot.slane %v2559, 2
        %v2561 = vrot.slane %v2229, 7
        %v2562 = vrot.slane %v2561, 2
        %v2563 = vrot.slane %v2231, 7
        %v2564 = vrot.slane %v2563, 2
        %v2565 = vrot.slane %v2233, 7
        %v2566 = vrot.slane %v2565, 2
        %v2567 = vrot.slane %v2234, 7
        %v2568 = vrot.slane %v2567, 2
        %v2569 = vrot.slane %v2236, 7
        %v2570 = vrot.slane %v2569, 2
        %v2571 = vrot.slane %v2238, 7
        %v2572 = vrot.slane %v2571, 2
        %v2573 = vrot.slane %v2240, 7
        %v2574 = vrot.slane %v2573, 2
        %v2575 = vrot.slane %v2241, 7
        %v2576 = vrot.slane %v2575, 2
        %v2577 = vrot.slane %v2243, 7
        %v2578 = vrot.slane %v2577, 2
        %v2579 = vrot.slane %v2245, 7
        %v2580 = vrot.slane %v2579, 2
        %v2581 = vrot.slane %v2247, 7
        %v2582 = vrot.slane %v2581, 2
        %v2583 = vrot.slane %v2248, 7
        %v2584 = vrot.slane %v2583, 2
        %v2585 = vrot.slane %v2250, 7
        %v2586 = vrot.slane %v2585, 2
        %v2587 = vrot.slane %v2252, 7
        %v2588 = vrot.slane %v2587, 2
        %v2589 = vrot.slane %v2254, 7
        %v2590 = vrot.slane %v2589, 2
        %v2703 = vmax.f32 %v2057, %v2368
        %v2704 = vmax.f32 %v2060, %v2370
        %v2705 = vmax.f32 %v2063, %v2372
        %v2706 = vmax.f32 %v2065, %v2374
        %v2707 = vmax.f32 %v2066, %v2376
        %v2708 = vmax.f32 %v2068, %v2378
        %v2709 = vmax.f32 %v2070, %v2380
        %v2710 = vmax.f32 %v2072, %v2382
        %v2711 = vmax.f32 %v2073, %v2384
        %v2712 = vmax.f32 %v2075, %v2386
        %v2713 = vmax.f32 %v2077, %v2388
        %v2714 = vmax.f32 %v2079, %v2390
        %v2715 = vmax.f32 %v2080, %v2392
        %v2716 = vmax.f32 %v2082, %v2394
        %v2717 = vmax.f32 %v2084, %v2396
        %v2718 = vmax.f32 %v2086, %v2398
        %v2719 = vmax.f32 %v2087, %v2400
        %v2720 = vmax.f32 %v2089, %v2402
        %v2721 = vmax.f32 %v2091, %v2404
        %v2722 = vmax.f32 %v2093, %v2406
        %v2723 = vmax.f32 %v2094, %v2408
        %v2724 = vmax.f32 %v2096, %v2410
        %v2725 = vmax.f32 %v2098, %v2412
        %v2726 = vmax.f32 %v2100, %v2414
        %v2727 = vmax.f32 %v2101, %v2416
        %v2728 = vmax.f32 %v2103, %v2418
        %v2729 = vmax.f32 %v2105, %v2420
        %v2730 = vmax.f32 %v2107, %v2422
        %v2731 = vmax.f32 %v2108, %v2424
        %v2732 = vmax.f32 %v2110, %v2426
        %v2733 = vmax.f32 %v2112, %v2428
        %v2734 = vmax.f32 %v2114, %v2430
        %v2735 = vmax.f32 %v2115, %v2432
        %v2736 = vmax.f32 %v2117, %v2434
        %v2737 = vmax.f32 %v2119, %v2436
        %v2738 = vmax.f32 %v2121, %v2438
        %v2739 = vmax.f32 %v2122, %v2440
        %v2740 = vmax.f32 %v2124, %v2442
        %v2741 = vmax.f32 %v2126, %v2444
        %v2742 = vmax.f32 %v2128, %v2446
        %v2743 = vmax.f32 %v2129, %v2448
        %v2744 = vmax.f32 %v2131, %v2450
        %v2745 = vmax.f32 %v2133, %v2452
        %v2746 = vmax.f32 %v2135, %v2454
        %v2747 = vmax.f32 %v2136, %v2456
        %v2748 = vmax.f32 %v2138, %v2458
        %v2749 = vmax.f32 %v2140, %v2460
        %v2750 = vmax.f32 %v2142, %v2462
        %v2751 = vmax.f32 %v2143, %v2464
        %v2752 = vmax.f32 %v2145, %v2466
        %v2753 = vmax.f32 %v2147, %v2468
        %v2754 = vmax.f32 %v2149, %v2470
        %v2755 = vmax.f32 %v2150, %v2472
        %v2756 = vmax.f32 %v2152, %v2474
        %v2757 = vmax.f32 %v2154, %v2476
        %v2758 = vmax.f32 %v2156, %v2478
        %v2759 = vmax.f32 %v2157, %v2480
        %v2760 = vmax.f32 %v2159, %v2482
        %v2761 = vmax.f32 %v2161, %v2484
        %v2762 = vmax.f32 %v2163, %v2486
        %v2763 = vmax.f32 %v2164, %v2488
        %v2764 = vmax.f32 %v2166, %v2490
        %v2765 = vmax.f32 %v2168, %v2492
        %v2766 = vmax.f32 %v2170, %v2494
        %v2767 = vmax.f32 %v2171, %v2496
        %v2768 = vmax.f32 %v2173, %v2498
        %v2769 = vmax.f32 %v2175, %v2500
        %v2770 = vmax.f32 %v2177, %v2502
        %v2771 = vmax.f32 %v2178, %v2504
        %v2772 = vmax.f32 %v2180, %v2506
        %v2773 = vmax.f32 %v2182, %v2508
        %v2774 = vmax.f32 %v2184, %v2510
        %v2775 = vmax.f32 %v2185, %v2512
        %v2776 = vmax.f32 %v2187, %v2514
        %v2777 = vmax.f32 %v2189, %v2516
        %v2778 = vmax.f32 %v2191, %v2518
        %v2779 = vmax.f32 %v2192, %v2520
        %v2780 = vmax.f32 %v2194, %v2522
        %v2781 = vmax.f32 %v2196, %v2524
        %v2782 = vmax.f32 %v2198, %v2526
        %v2783 = vmax.f32 %v2199, %v2528
        %v2784 = vmax.f32 %v2201, %v2530
        %v2785 = vmax.f32 %v2203, %v2532
        %v2786 = vmax.f32 %v2205, %v2534
        %v2787 = vmax.f32 %v2206, %v2536
        %v2788 = vmax.f32 %v2208, %v2538
        %v2789 = vmax.f32 %v2210, %v2540
        %v2790 = vmax.f32 %v2212, %v2542
        %v2791 = vmax.f32 %v2213, %v2544
        %v2792 = vmax.f32 %v2215, %v2546
        %v2793 = vmax.f32 %v2217, %v2548
        %v2794 = vmax.f32 %v2219, %v2550
        %v2795 = vmax.f32 %v2220, %v2552
        %v2796 = vmax.f32 %v2222, %v2554
        %v2797 = vmax.f32 %v2224, %v2556
        %v2798 = vmax.f32 %v2226, %v2558
        %v2799 = vmax.f32 %v2227, %v2560
        %v2800 = vmax.f32 %v2229, %v2562
        %v2801 = vmax.f32 %v2231, %v2564
        %v2802 = vmax.f32 %v2233, %v2566
        %v2803 = vmax.f32 %v2234, %v2568
        %v2804 = vmax.f32 %v2236, %v2570
        %v2805 = vmax.f32 %v2238, %v2572
        %v2806 = vmax.f32 %v2240, %v2574
        %v2807 = vmax.f32 %v2241, %v2576
        %v2808 = vmax.f32 %v2243, %v2578
        %v2809 = vmax.f32 %v2245, %v2580
        %v2810 = vmax.f32 %v2247, %v2582
        %v2811 = vmax.f32 %v2248, %v2584
        %v2812 = vmax.f32 %v2250, %v2586
        %v2813 = vmax.f32 %v2252, %v2588
        %v2814 = vmax.f32 %v2254, %v2590
        %v2927 = vrot.slane %v2703, 2
        %v2928 = vrot.slane %v2704, 2
        %v2929 = vrot.slane %v2705, 2
        %v2930 = vrot.slane %v2706, 2
        %v2931 = vrot.slane %v2707, 2
        %v2932 = vrot.slane %v2708, 2
        %v2933 = vrot.slane %v2709, 2
        %v2934 = vrot.slane %v2710, 2
        %v2935 = vrot.slane %v2711, 2
        %v2936 = vrot.slane %v2712, 2
        %v2937 = vrot.slane %v2713, 2
        %v2938 = vrot.slane %v2714, 2
        %v2939 = vrot.slane %v2715, 2
        %v2940 = vrot.slane %v2716, 2
        %v2941 = vrot.slane %v2717, 2
        %v2942 = vrot.slane %v2718, 2
        %v2943 = vrot.slane %v2719, 2
        %v2944 = vrot.slane %v2720, 2
        %v2945 = vrot.slane %v2721, 2
        %v2946 = vrot.slane %v2722, 2
        %v2947 = vrot.slane %v2723, 2
        %v2948 = vrot.slane %v2724, 2
        %v2949 = vrot.slane %v2725, 2
        %v2950 = vrot.slane %v2726, 2
        %v2951 = vrot.slane %v2727, 2
        %v2952 = vrot.slane %v2728, 2
        %v2953 = vrot.slane %v2729, 2
        %v2954 = vrot.slane %v2730, 2
        %v2955 = vrot.slane %v2731, 2
        %v2956 = vrot.slane %v2732, 2
        %v2957 = vrot.slane %v2733, 2
        %v2958 = vrot.slane %v2734, 2
        %v2959 = vrot.slane %v2735, 2
        %v2960 = vrot.slane %v2736, 2
        %v2961 = vrot.slane %v2737, 2
        %v2962 = vrot.slane %v2738, 2
        %v2963 = vrot.slane %v2739, 2
        %v2964 = vrot.slane %v2740, 2
        %v2965 = vrot.slane %v2741, 2
        %v2966 = vrot.slane %v2742, 2
        %v2967 = vrot.slane %v2743, 2
        %v2968 = vrot.slane %v2744, 2
        %v2969 = vrot.slane %v2745, 2
        %v2970 = vrot.slane %v2746, 2
        %v2971 = vrot.slane %v2747, 2
        %v2972 = vrot.slane %v2748, 2
        %v2973 = vrot.slane %v2749, 2
        %v2974 = vrot.slane %v2750, 2
        %v2975 = vrot.slane %v2751, 2
        %v2976 = vrot.slane %v2752, 2
        %v2977 = vrot.slane %v2753, 2
        %v2978 = vrot.slane %v2754, 2
        %v2979 = vrot.slane %v2755, 2
        %v2980 = vrot.slane %v2756, 2
        %v2981 = vrot.slane %v2757, 2
        %v2982 = vrot.slane %v2758, 2
        %v2983 = vrot.slane %v2759, 2
        %v2984 = vrot.slane %v2760, 2
        %v2985 = vrot.slane %v2761, 2
        %v2986 = vrot.slane %v2762, 2
        %v2987 = vrot.slane %v2763, 2
        %v2988 = vrot.slane %v2764, 2
        %v2989 = vrot.slane %v2765, 2
        %v2990 = vrot.slane %v2766, 2
        %v2991 = vrot.slane %v2767, 2
        %v2992 = vrot.slane %v2768, 2
        %v2993 = vrot.slane %v2769, 2
        %v2994 = vrot.slane %v2770, 2
        %v2995 = vrot.slane %v2771, 2
        %v2996 = vrot.slane %v2772, 2
        %v2997 = vrot.slane %v2773, 2
        %v2998 = vrot.slane %v2774, 2
        %v2999 = vrot.slane %v2775, 2
        %v3000 = vrot.slane %v2776, 2
        %v3001 = vrot.slane %v2777, 2
        %v3002 = vrot.slane %v2778, 2
        %v3003 = vrot.slane %v2779, 2
        %v3004 = vrot.slane %v2780, 2
        %v3005 = vrot.slane %v2781, 2
        %v3006 = vrot.slane %v2782, 2
        %v3007 = vrot.slane %v2783, 2
        %v3008 = vrot.slane %v2784, 2
        %v3009 = vrot.slane %v2785, 2
        %v3010 = vrot.slane %v2786, 2
        %v3011 = vrot.slane %v2787, 2
        %v3012 = vrot.slane %v2788, 2
        %v3013 = vrot.slane %v2789, 2
        %v3014 = vrot.slane %v2790, 2
        %v3015 = vrot.slane %v2791, 2
        %v3016 = vrot.slane %v2792, 2
        %v3017 = vrot.slane %v2793, 2
        %v3018 = vrot.slane %v2794, 2
        %v3019 = vrot.slane %v2795, 2
        %v3020 = vrot.slane %v2796, 2
        %v3021 = vrot.slane %v2797, 2
        %v3022 = vrot.slane %v2798, 2
        %v3023 = vrot.slane %v2799, 2
        %v3024 = vrot.slane %v2800, 2
        %v3025 = vrot.slane %v2801, 2
        %v3026 = vrot.slane %v2802, 2
        %v3027 = vrot.slane %v2803, 2
        %v3028 = vrot.slane %v2804, 2
        %v3029 = vrot.slane %v2805, 2
        %v3030 = vrot.slane %v2806, 2
        %v3031 = vrot.slane %v2807, 2
        %v3032 = vrot.slane %v2808, 2
        %v3033 = vrot.slane %v2809, 2
        %v3034 = vrot.slane %v2810, 2
        %v3035 = vrot.slane %v2811, 2
        %v3036 = vrot.slane %v2812, 2
        %v3037 = vrot.slane %v2813, 2
        %v3038 = vrot.slane %v2814, 2
        %v3151 = vmax.f32 %v2703, %v2927
        %v3152 = vmax.f32 %v2704, %v2928
        %v3153 = vmax.f32 %v2705, %v2929
        %v3154 = vmax.f32 %v2706, %v2930
        %v3155 = vmax.f32 %v2707, %v2931
        %v3156 = vmax.f32 %v2708, %v2932
        %v3157 = vmax.f32 %v2709, %v2933
        %v3158 = vmax.f32 %v2710, %v2934
        %v3159 = vmax.f32 %v2711, %v2935
        %v3160 = vmax.f32 %v2712, %v2936
        %v3161 = vmax.f32 %v2713, %v2937
        %v3162 = vmax.f32 %v2714, %v2938
        %v3163 = vmax.f32 %v2715, %v2939
        %v3164 = vmax.f32 %v2716, %v2940
        %v3165 = vmax.f32 %v2717, %v2941
        %v3166 = vmax.f32 %v2718, %v2942
        %v3167 = vmax.f32 %v2719, %v2943
        %v3168 = vmax.f32 %v2720, %v2944
        %v3169 = vmax.f32 %v2721, %v2945
        %v3170 = vmax.f32 %v2722, %v2946
        %v3171 = vmax.f32 %v2723, %v2947
        %v3172 = vmax.f32 %v2724, %v2948
        %v3173 = vmax.f32 %v2725, %v2949
        %v3174 = vmax.f32 %v2726, %v2950
        %v3175 = vmax.f32 %v2727, %v2951
        %v3176 = vmax.f32 %v2728, %v2952
        %v3177 = vmax.f32 %v2729, %v2953
        %v3178 = vmax.f32 %v2730, %v2954
        %v3179 = vmax.f32 %v2731, %v2955
        %v3180 = vmax.f32 %v2732, %v2956
        %v3181 = vmax.f32 %v2733, %v2957
        %v3182 = vmax.f32 %v2734, %v2958
        %v3183 = vmax.f32 %v2735, %v2959
        %v3184 = vmax.f32 %v2736, %v2960
        %v3185 = vmax.f32 %v2737, %v2961
        %v3186 = vmax.f32 %v2738, %v2962
        %v3187 = vmax.f32 %v2739, %v2963
        %v3188 = vmax.f32 %v2740, %v2964
        %v3189 = vmax.f32 %v2741, %v2965
        %v3190 = vmax.f32 %v2742, %v2966
        %v3191 = vmax.f32 %v2743, %v2967
        %v3192 = vmax.f32 %v2744, %v2968
        %v3193 = vmax.f32 %v2745, %v2969
        %v3194 = vmax.f32 %v2746, %v2970
        %v3195 = vmax.f32 %v2747, %v2971
        %v3196 = vmax.f32 %v2748, %v2972
        %v3197 = vmax.f32 %v2749, %v2973
        %v3198 = vmax.f32 %v2750, %v2974
        %v3199 = vmax.f32 %v2751, %v2975
        %v3200 = vmax.f32 %v2752, %v2976
        %v3201 = vmax.f32 %v2753, %v2977
        %v3202 = vmax.f32 %v2754, %v2978
        %v3203 = vmax.f32 %v2755, %v2979
        %v3204 = vmax.f32 %v2756, %v2980
        %v3205 = vmax.f32 %v2757, %v2981
        %v3206 = vmax.f32 %v2758, %v2982
        %v3207 = vmax.f32 %v2759, %v2983
        %v3208 = vmax.f32 %v2760, %v2984
        %v3209 = vmax.f32 %v2761, %v2985
        %v3210 = vmax.f32 %v2762, %v2986
        %v3211 = vmax.f32 %v2763, %v2987
        %v3212 = vmax.f32 %v2764, %v2988
        %v3213 = vmax.f32 %v2765, %v2989
        %v3214 = vmax.f32 %v2766, %v2990
        %v3215 = vmax.f32 %v2767, %v2991
        %v3216 = vmax.f32 %v2768, %v2992
        %v3217 = vmax.f32 %v2769, %v2993
        %v3218 = vmax.f32 %v2770, %v2994
        %v3219 = vmax.f32 %v2771, %v2995
        %v3220 = vmax.f32 %v2772, %v2996
        %v3221 = vmax.f32 %v2773, %v2997
        %v3222 = vmax.f32 %v2774, %v2998
        %v3223 = vmax.f32 %v2775, %v2999
        %v3224 = vmax.f32 %v2776, %v3000
        %v3225 = vmax.f32 %v2777, %v3001
        %v3226 = vmax.f32 %v2778, %v3002
        %v3227 = vmax.f32 %v2779, %v3003
        %v3228 = vmax.f32 %v2780, %v3004
        %v3229 = vmax.f32 %v2781, %v3005
        %v3230 = vmax.f32 %v2782, %v3006
        %v3231 = vmax.f32 %v2783, %v3007
        %v3232 = vmax.f32 %v2784, %v3008
        %v3233 = vmax.f32 %v2785, %v3009
        %v3234 = vmax.f32 %v2786, %v3010
        %v3235 = vmax.f32 %v2787, %v3011
        %v3236 = vmax.f32 %v2788, %v3012
        %v3237 = vmax.f32 %v2789, %v3013
        %v3238 = vmax.f32 %v2790, %v3014
        %v3239 = vmax.f32 %v2791, %v3015
        %v3240 = vmax.f32 %v2792, %v3016
        %v3241 = vmax.f32 %v2793, %v3017
        %v3242 = vmax.f32 %v2794, %v3018
        %v3243 = vmax.f32 %v2795, %v3019
        %v3244 = vmax.f32 %v2796, %v3020
        %v3245 = vmax.f32 %v2797, %v3021
        %v3246 = vmax.f32 %v2798, %v3022
        %v3247 = vmax.f32 %v2799, %v3023
        %v3248 = vmax.f32 %v2800, %v3024
        %v3249 = vmax.f32 %v2801, %v3025
        %v3250 = vmax.f32 %v2802, %v3026
        %v3251 = vmax.f32 %v2803, %v3027
        %v3252 = vmax.f32 %v2804, %v3028
        %v3253 = vmax.f32 %v2805, %v3029
        %v3254 = vmax.f32 %v2806, %v3030
        %v3255 = vmax.f32 %v2807, %v3031
        %v3256 = vmax.f32 %v2808, %v3032
        %v3257 = vmax.f32 %v2809, %v3033
        %v3258 = vmax.f32 %v2810, %v3034
        %v3259 = vmax.f32 %v2811, %v3035
        %v3260 = vmax.f32 %v2812, %v3036
        %v3261 = vmax.f32 %v2813, %v3037
        %v3262 = vmax.f32 %v2814, %v3038
        %v3343 = vperm.slane %v3151, 0
        %v3344 = vperm.slane %v3152, 0
        %v3345 = vperm.slane %v3153, 0
        %v3346 = vperm.slane %v3154, 0
        %v3347 = vperm.slane %v3155, 0
        %v3348 = vperm.slane %v3156, 0
        %v3349 = vperm.slane %v3157, 0
        %v3350 = vperm.slane %v3158, 0
        %v3351 = vperm.slane %v3159, 0
        %v3352 = vperm.slane %v3160, 0
        %v3353 = vperm.slane %v3165, 0
        %v3354 = vperm.slane %v3166, 0
        %v3355 = vperm.slane %v3167, 0
        %v3356 = vperm.slane %v3168, 0
        %v3357 = vperm.slane %v3169, 0
        %v3358 = vperm.slane %v3170, 0
        %v3359 = vperm.slane %v3171, 0
        %v3360 = vperm.slane %v3172, 0
        %v3361 = vperm.slane %v3173, 0
        %v3362 = vperm.slane %v3174, 0
        %v3363 = vperm.slane %v3179, 0
        %v3364 = vperm.slane %v3180, 0
        %v3365 = vperm.slane %v3181, 0
        %v3366 = vperm.slane %v3182, 0
        %v3367 = vperm.slane %v3183, 0
        %v3368 = vperm.slane %v3184, 0
        %v3369 = vperm.slane %v3185, 0
        %v3370 = vperm.slane %v3186, 0
        %v3371 = vperm.slane %v3187, 0
        %v3372 = vperm.slane %v3188, 0
        %v3373 = vperm.slane %v3193, 0
        %v3374 = vperm.slane %v3194, 0
        %v3375 = vperm.slane %v3195, 0
        %v3376 = vperm.slane %v3196, 0
        %v3377 = vperm.slane %v3197, 0
        %v3378 = vperm.slane %v3198, 0
        %v3379 = vperm.slane %v3199, 0
        %v3380 = vperm.slane %v3200, 0
        %v3381 = vperm.slane %v3201, 0
        %v3382 = vperm.slane %v3202, 0
        %v3383 = vperm.slane %v3207, 0
        %v3384 = vperm.slane %v3208, 0
        %v3385 = vperm.slane %v3209, 0
        %v3386 = vperm.slane %v3210, 0
        %v3387 = vperm.slane %v3211, 0
        %v3388 = vperm.slane %v3212, 0
        %v3389 = vperm.slane %v3213, 0
        %v3390 = vperm.slane %v3214, 0
        %v3391 = vperm.slane %v3215, 0
        %v3392 = vperm.slane %v3216, 0
        %v3393 = vperm.slane %v3221, 0
        %v3394 = vperm.slane %v3222, 0
        %v3395 = vperm.slane %v3223, 0
        %v3396 = vperm.slane %v3224, 0
        %v3397 = vperm.slane %v3225, 0
        %v3398 = vperm.slane %v3226, 0
        %v3399 = vperm.slane %v3227, 0
        %v3400 = vperm.slane %v3228, 0
        %v3401 = vperm.slane %v3229, 0
        %v3402 = vperm.slane %v3230, 0
        %v3403 = vperm.slane %v3235, 0
        %v3404 = vperm.slane %v3236, 0
        %v3405 = vperm.slane %v3237, 0
        %v3406 = vperm.slane %v3238, 0
        %v3407 = vperm.slane %v3239, 0
        %v3408 = vperm.slane %v3240, 0
        %v3409 = vperm.slane %v3241, 0
        %v3410 = vperm.slane %v3242, 0
        %v3411 = vperm.slane %v3243, 0
        %v3412 = vperm.slane %v3244, 0
        %v3413 = vperm.slane %v3249, 0
        %v3414 = vperm.slane %v3250, 0
        %v3415 = vperm.slane %v3251, 0
        %v3416 = vperm.slane %v3252, 0
        %v3417 = vperm.slane %v3253, 0
        %v3418 = vperm.slane %v3254, 0
        %v3419 = vperm.slane %v3255, 0
        %v3420 = vperm.slane %v3256, 0
        %v3421 = vperm.slane %v3257, 0
        %v3422 = vperm.slane %v3258, 0
        %vm3423 = vcmask 1041409
        %v3424 = vsel %vm3423, %v3344, %v3343
        %vm3425 = vcmask 1042434
        %v3426 = vsel %vm3425, %v3345, %v3424
        %vm3427 = vcmask 1043459
        %v3428 = vsel %vm3427, %v3346, %v3426
        %vm3429 = vcmask 1044484
        %v3430 = vsel %vm3429, %v3347, %v3428
        %vm3431 = vcmask 1045509
        %v3432 = vsel %vm3431, %v3348, %v3430
        %vm3433 = vcmask 1046534
        %v3434 = vsel %vm3433, %v3349, %v3432
        %vm3435 = vcmask 1047559
        %v3436 = vsel %vm3435, %v3350, %v3434
        %v3437 = vsel %vm3423, %v3352, %v3351
        %v3438 = vsel %vm3423, %v3354, %v3353
        %v3439 = vsel %vm3425, %v3355, %v3438
        %v3440 = vsel %vm3427, %v3356, %v3439
        %v3441 = vsel %vm3429, %v3357, %v3440
        %v3442 = vsel %vm3431, %v3358, %v3441
        %v3443 = vsel %vm3433, %v3359, %v3442
        %v3444 = vsel %vm3435, %v3360, %v3443
        %v3445 = vsel %vm3423, %v3362, %v3361
        %v3446 = vsel %vm3423, %v3364, %v3363
        %v3447 = vsel %vm3425, %v3365, %v3446
        %v3448 = vsel %vm3427, %v3366, %v3447
        %v3449 = vsel %vm3429, %v3367, %v3448
        %v3450 = vsel %vm3431, %v3368, %v3449
        %v3451 = vsel %vm3433, %v3369, %v3450
        %v3452 = vsel %vm3435, %v3370, %v3451
        %v3453 = vsel %vm3423, %v3372, %v3371
        %v3454 = vsel %vm3423, %v3374, %v3373
        %v3455 = vsel %vm3425, %v3375, %v3454
        %v3456 = vsel %vm3427, %v3376, %v3455
        %v3457 = vsel %vm3429, %v3377, %v3456
        %v3458 = vsel %vm3431, %v3378, %v3457
        %v3459 = vsel %vm3433, %v3379, %v3458
        %v3460 = vsel %vm3435, %v3380, %v3459
        %v3461 = vsel %vm3423, %v3382, %v3381
        %v3462 = vsel %vm3423, %v3384, %v3383
        %v3463 = vsel %vm3425, %v3385, %v3462
        %v3464 = vsel %vm3427, %v3386, %v3463
        %v3465 = vsel %vm3429, %v3387, %v3464
        %v3466 = vsel %vm3431, %v3388, %v3465
        %v3467 = vsel %vm3433, %v3389, %v3466
        %v3468 = vsel %vm3435, %v3390, %v3467
        %v3469 = vsel %vm3423, %v3392, %v3391
        %v3470 = vsel %vm3423, %v3394, %v3393
        %v3471 = vsel %vm3425, %v3395, %v3470
        %v3472 = vsel %vm3427, %v3396, %v3471
        %v3473 = vsel %vm3429, %v3397, %v3472
        %v3474 = vsel %vm3431, %v3398, %v3473
        %v3475 = vsel %vm3433, %v3399, %v3474
        %v3476 = vsel %vm3435, %v3400, %v3475
        %v3477 = vsel %vm3423, %v3402, %v3401
        %v3478 = vsel %vm3423, %v3404, %v3403
        %v3479 = vsel %vm3425, %v3405, %v3478
        %v3480 = vsel %vm3427, %v3406, %v3479
        %v3481 = vsel %vm3429, %v3407, %v3480
        %v3482 = vsel %vm3431, %v3408, %v3481
        %v3483 = vsel %vm3433, %v3409, %v3482
        %v3484 = vsel %vm3435, %v3410, %v3483
        %v3485 = vsel %vm3423, %v3412, %v3411
        %v3486 = vsel %vm3423, %v3414, %v3413
        %v3487 = vsel %vm3425, %v3415, %v3486
        %v3488 = vsel %vm3427, %v3416, %v3487
        %v3489 = vsel %vm3429, %v3417, %v3488
        %v3490 = vsel %vm3431, %v3418, %v3489
        %v3491 = vsel %vm3433, %v3419, %v3490
        %v3492 = vsel %vm3435, %v3420, %v3491
        %v3493 = vsel %vm3423, %v3422, %v3421
        %v3502 = vperm.slane %v3161, 0
        %v3503 = vperm.slane %v3175, 0
        %v3504 = vperm.slane %v3189, 0
        %v3505 = vperm.slane %v3203, 0
        %v3506 = vperm.slane %v3217, 0
        %v3507 = vperm.slane %v3231, 0
        %v3508 = vperm.slane %v3245, 0
        %v3509 = vperm.slane %v3259, 0
        %v3510 = vsel %vm3423, %v3345, %v3344
        %v3511 = vsel %vm3425, %v3346, %v3510
        %v3512 = vsel %vm3427, %v3347, %v3511
        %v3513 = vsel %vm3429, %v3348, %v3512
        %v3514 = vsel %vm3431, %v3349, %v3513
        %v3515 = vsel %vm3433, %v3350, %v3514
        %v3516 = vsel %vm3435, %v3351, %v3515
        %v3517 = vsel %vm3423, %v3502, %v3352
        %v3518 = vsel %vm3423, %v3355, %v3354
        %v3519 = vsel %vm3425, %v3356, %v3518
        %v3520 = vsel %vm3427, %v3357, %v3519
        %v3521 = vsel %vm3429, %v3358, %v3520
        %v3522 = vsel %vm3431, %v3359, %v3521
        %v3523 = vsel %vm3433, %v3360, %v3522
        %v3524 = vsel %vm3435, %v3361, %v3523
        %v3525 = vsel %vm3423, %v3503, %v3362
        %v3526 = vsel %vm3423, %v3365, %v3364
        %v3527 = vsel %vm3425, %v3366, %v3526
        %v3528 = vsel %vm3427, %v3367, %v3527
        %v3529 = vsel %vm3429, %v3368, %v3528
        %v3530 = vsel %vm3431, %v3369, %v3529
        %v3531 = vsel %vm3433, %v3370, %v3530
        %v3532 = vsel %vm3435, %v3371, %v3531
        %v3533 = vsel %vm3423, %v3504, %v3372
        %v3534 = vsel %vm3423, %v3375, %v3374
        %v3535 = vsel %vm3425, %v3376, %v3534
        %v3536 = vsel %vm3427, %v3377, %v3535
        %v3537 = vsel %vm3429, %v3378, %v3536
        %v3538 = vsel %vm3431, %v3379, %v3537
        %v3539 = vsel %vm3433, %v3380, %v3538
        %v3540 = vsel %vm3435, %v3381, %v3539
        %v3541 = vsel %vm3423, %v3505, %v3382
        %v3542 = vsel %vm3423, %v3385, %v3384
        %v3543 = vsel %vm3425, %v3386, %v3542
        %v3544 = vsel %vm3427, %v3387, %v3543
        %v3545 = vsel %vm3429, %v3388, %v3544
        %v3546 = vsel %vm3431, %v3389, %v3545
        %v3547 = vsel %vm3433, %v3390, %v3546
        %v3548 = vsel %vm3435, %v3391, %v3547
        %v3549 = vsel %vm3423, %v3506, %v3392
        %v3550 = vsel %vm3423, %v3395, %v3394
        %v3551 = vsel %vm3425, %v3396, %v3550
        %v3552 = vsel %vm3427, %v3397, %v3551
        %v3553 = vsel %vm3429, %v3398, %v3552
        %v3554 = vsel %vm3431, %v3399, %v3553
        %v3555 = vsel %vm3433, %v3400, %v3554
        %v3556 = vsel %vm3435, %v3401, %v3555
        %v3557 = vsel %vm3423, %v3507, %v3402
        %v3558 = vsel %vm3423, %v3405, %v3404
        %v3559 = vsel %vm3425, %v3406, %v3558
        %v3560 = vsel %vm3427, %v3407, %v3559
        %v3561 = vsel %vm3429, %v3408, %v3560
        %v3562 = vsel %vm3431, %v3409, %v3561
        %v3563 = vsel %vm3433, %v3410, %v3562
        %v3564 = vsel %vm3435, %v3411, %v3563
        %v3565 = vsel %vm3423, %v3508, %v3412
        %v3566 = vsel %vm3423, %v3415, %v3414
        %v3567 = vsel %vm3425, %v3416, %v3566
        %v3568 = vsel %vm3427, %v3417, %v3567
        %v3569 = vsel %vm3429, %v3418, %v3568
        %v3570 = vsel %vm3431, %v3419, %v3569
        %v3571 = vsel %vm3433, %v3420, %v3570
        %v3572 = vsel %vm3435, %v3421, %v3571
        %v3573 = vsel %vm3423, %v3509, %v3422
        %v3582 = vperm.slane %v3162, 0
        %v3583 = vperm.slane %v3176, 0
        %v3584 = vperm.slane %v3190, 0
        %v3585 = vperm.slane %v3204, 0
        %v3586 = vperm.slane %v3218, 0
        %v3587 = vperm.slane %v3232, 0
        %v3588 = vperm.slane %v3246, 0
        %v3589 = vperm.slane %v3260, 0
        %v3590 = vsel %vm3423, %v3346, %v3345
        %v3591 = vsel %vm3425, %v3347, %v3590
        %v3592 = vsel %vm3427, %v3348, %v3591
        %v3593 = vsel %vm3429, %v3349, %v3592
        %v3594 = vsel %vm3431, %v3350, %v3593
        %v3595 = vsel %vm3433, %v3351, %v3594
        %v3596 = vsel %vm3435, %v3352, %v3595
        %v3597 = vsel %vm3423, %v3582, %v3502
        %v3598 = vsel %vm3423, %v3356, %v3355
        %v3599 = vsel %vm3425, %v3357, %v3598
        %v3600 = vsel %vm3427, %v3358, %v3599
        %v3601 = vsel %vm3429, %v3359, %v3600
        %v3602 = vsel %vm3431, %v3360, %v3601
        %v3603 = vsel %vm3433, %v3361, %v3602
        %v3604 = vsel %vm3435, %v3362, %v3603
        %v3605 = vsel %vm3423, %v3583, %v3503
        %v3606 = vsel %vm3423, %v3366, %v3365
        %v3607 = vsel %vm3425, %v3367, %v3606
        %v3608 = vsel %vm3427, %v3368, %v3607
        %v3609 = vsel %vm3429, %v3369, %v3608
        %v3610 = vsel %vm3431, %v3370, %v3609
        %v3611 = vsel %vm3433, %v3371, %v3610
        %v3612 = vsel %vm3435, %v3372, %v3611
        %v3613 = vsel %vm3423, %v3584, %v3504
        %v3614 = vsel %vm3423, %v3376, %v3375
        %v3615 = vsel %vm3425, %v3377, %v3614
        %v3616 = vsel %vm3427, %v3378, %v3615
        %v3617 = vsel %vm3429, %v3379, %v3616
        %v3618 = vsel %vm3431, %v3380, %v3617
        %v3619 = vsel %vm3433, %v3381, %v3618
        %v3620 = vsel %vm3435, %v3382, %v3619
        %v3621 = vsel %vm3423, %v3585, %v3505
        %v3622 = vsel %vm3423, %v3386, %v3385
        %v3623 = vsel %vm3425, %v3387, %v3622
        %v3624 = vsel %vm3427, %v3388, %v3623
        %v3625 = vsel %vm3429, %v3389, %v3624
        %v3626 = vsel %vm3431, %v3390, %v3625
        %v3627 = vsel %vm3433, %v3391, %v3626
        %v3628 = vsel %vm3435, %v3392, %v3627
        %v3629 = vsel %vm3423, %v3586, %v3506
        %v3630 = vsel %vm3423, %v3396, %v3395
        %v3631 = vsel %vm3425, %v3397, %v3630
        %v3632 = vsel %vm3427, %v3398, %v3631
        %v3633 = vsel %vm3429, %v3399, %v3632
        %v3634 = vsel %vm3431, %v3400, %v3633
        %v3635 = vsel %vm3433, %v3401, %v3634
        %v3636 = vsel %vm3435, %v3402, %v3635
        %v3637 = vsel %vm3423, %v3587, %v3507
        %v3638 = vsel %vm3423, %v3406, %v3405
        %v3639 = vsel %vm3425, %v3407, %v3638
        %v3640 = vsel %vm3427, %v3408, %v3639
        %v3641 = vsel %vm3429, %v3409, %v3640
        %v3642 = vsel %vm3431, %v3410, %v3641
        %v3643 = vsel %vm3433, %v3411, %v3642
        %v3644 = vsel %vm3435, %v3412, %v3643
        %v3645 = vsel %vm3423, %v3588, %v3508
        %v3646 = vsel %vm3423, %v3416, %v3415
        %v3647 = vsel %vm3425, %v3417, %v3646
        %v3648 = vsel %vm3427, %v3418, %v3647
        %v3649 = vsel %vm3429, %v3419, %v3648
        %v3650 = vsel %vm3431, %v3420, %v3649
        %v3651 = vsel %vm3433, %v3421, %v3650
        %v3652 = vsel %vm3435, %v3422, %v3651
        %v3653 = vsel %vm3423, %v3589, %v3509
        %v3662 = vperm.slane %v3163, 0
        %v3663 = vperm.slane %v3177, 0
        %v3664 = vperm.slane %v3191, 0
        %v3665 = vperm.slane %v3205, 0
        %v3666 = vperm.slane %v3219, 0
        %v3667 = vperm.slane %v3233, 0
        %v3668 = vperm.slane %v3247, 0
        %v3669 = vperm.slane %v3261, 0
        %v3670 = vsel %vm3423, %v3347, %v3346
        %v3671 = vsel %vm3425, %v3348, %v3670
        %v3672 = vsel %vm3427, %v3349, %v3671
        %v3673 = vsel %vm3429, %v3350, %v3672
        %v3674 = vsel %vm3431, %v3351, %v3673
        %v3675 = vsel %vm3433, %v3352, %v3674
        %v3676 = vsel %vm3435, %v3502, %v3675
        %v3677 = vsel %vm3423, %v3662, %v3582
        %v3678 = vsel %vm3423, %v3357, %v3356
        %v3679 = vsel %vm3425, %v3358, %v3678
        %v3680 = vsel %vm3427, %v3359, %v3679
        %v3681 = vsel %vm3429, %v3360, %v3680
        %v3682 = vsel %vm3431, %v3361, %v3681
        %v3683 = vsel %vm3433, %v3362, %v3682
        %v3684 = vsel %vm3435, %v3503, %v3683
        %v3685 = vsel %vm3423, %v3663, %v3583
        %v3686 = vsel %vm3423, %v3367, %v3366
        %v3687 = vsel %vm3425, %v3368, %v3686
        %v3688 = vsel %vm3427, %v3369, %v3687
        %v3689 = vsel %vm3429, %v3370, %v3688
        %v3690 = vsel %vm3431, %v3371, %v3689
        %v3691 = vsel %vm3433, %v3372, %v3690
        %v3692 = vsel %vm3435, %v3504, %v3691
        %v3693 = vsel %vm3423, %v3664, %v3584
        %v3694 = vsel %vm3423, %v3377, %v3376
        %v3695 = vsel %vm3425, %v3378, %v3694
        %v3696 = vsel %vm3427, %v3379, %v3695
        %v3697 = vsel %vm3429, %v3380, %v3696
        %v3698 = vsel %vm3431, %v3381, %v3697
        %v3699 = vsel %vm3433, %v3382, %v3698
        %v3700 = vsel %vm3435, %v3505, %v3699
        %v3701 = vsel %vm3423, %v3665, %v3585
        %v3702 = vsel %vm3423, %v3387, %v3386
        %v3703 = vsel %vm3425, %v3388, %v3702
        %v3704 = vsel %vm3427, %v3389, %v3703
        %v3705 = vsel %vm3429, %v3390, %v3704
        %v3706 = vsel %vm3431, %v3391, %v3705
        %v3707 = vsel %vm3433, %v3392, %v3706
        %v3708 = vsel %vm3435, %v3506, %v3707
        %v3709 = vsel %vm3423, %v3666, %v3586
        %v3710 = vsel %vm3423, %v3397, %v3396
        %v3711 = vsel %vm3425, %v3398, %v3710
        %v3712 = vsel %vm3427, %v3399, %v3711
        %v3713 = vsel %vm3429, %v3400, %v3712
        %v3714 = vsel %vm3431, %v3401, %v3713
        %v3715 = vsel %vm3433, %v3402, %v3714
        %v3716 = vsel %vm3435, %v3507, %v3715
        %v3717 = vsel %vm3423, %v3667, %v3587
        %v3718 = vsel %vm3423, %v3407, %v3406
        %v3719 = vsel %vm3425, %v3408, %v3718
        %v3720 = vsel %vm3427, %v3409, %v3719
        %v3721 = vsel %vm3429, %v3410, %v3720
        %v3722 = vsel %vm3431, %v3411, %v3721
        %v3723 = vsel %vm3433, %v3412, %v3722
        %v3724 = vsel %vm3435, %v3508, %v3723
        %v3725 = vsel %vm3423, %v3668, %v3588
        %v3726 = vsel %vm3423, %v3417, %v3416
        %v3727 = vsel %vm3425, %v3418, %v3726
        %v3728 = vsel %vm3427, %v3419, %v3727
        %v3729 = vsel %vm3429, %v3420, %v3728
        %v3730 = vsel %vm3431, %v3421, %v3729
        %v3731 = vsel %vm3433, %v3422, %v3730
        %v3732 = vsel %vm3435, %v3509, %v3731
        %v3733 = vsel %vm3423, %v3669, %v3589
        %v3742 = vperm.slane %v3164, 0
        %v3743 = vperm.slane %v3178, 0
        %v3744 = vperm.slane %v3192, 0
        %v3745 = vperm.slane %v3206, 0
        %v3746 = vperm.slane %v3220, 0
        %v3747 = vperm.slane %v3234, 0
        %v3748 = vperm.slane %v3248, 0
        %v3749 = vperm.slane %v3262, 0
        %v3750 = vsel %vm3423, %v3348, %v3347
        %v3751 = vsel %vm3425, %v3349, %v3750
        %v3752 = vsel %vm3427, %v3350, %v3751
        %v3753 = vsel %vm3429, %v3351, %v3752
        %v3754 = vsel %vm3431, %v3352, %v3753
        %v3755 = vsel %vm3433, %v3502, %v3754
        %v3756 = vsel %vm3435, %v3582, %v3755
        %v3757 = vsel %vm3423, %v3742, %v3662
        %v3758 = vsel %vm3423, %v3358, %v3357
        %v3759 = vsel %vm3425, %v3359, %v3758
        %v3760 = vsel %vm3427, %v3360, %v3759
        %v3761 = vsel %vm3429, %v3361, %v3760
        %v3762 = vsel %vm3431, %v3362, %v3761
        %v3763 = vsel %vm3433, %v3503, %v3762
        %v3764 = vsel %vm3435, %v3583, %v3763
        %v3765 = vsel %vm3423, %v3743, %v3663
        %v3766 = vsel %vm3423, %v3368, %v3367
        %v3767 = vsel %vm3425, %v3369, %v3766
        %v3768 = vsel %vm3427, %v3370, %v3767
        %v3769 = vsel %vm3429, %v3371, %v3768
        %v3770 = vsel %vm3431, %v3372, %v3769
        %v3771 = vsel %vm3433, %v3504, %v3770
        %v3772 = vsel %vm3435, %v3584, %v3771
        %v3773 = vsel %vm3423, %v3744, %v3664
        %v3774 = vsel %vm3423, %v3378, %v3377
        %v3775 = vsel %vm3425, %v3379, %v3774
        %v3776 = vsel %vm3427, %v3380, %v3775
        %v3777 = vsel %vm3429, %v3381, %v3776
        %v3778 = vsel %vm3431, %v3382, %v3777
        %v3779 = vsel %vm3433, %v3505, %v3778
        %v3780 = vsel %vm3435, %v3585, %v3779
        %v3781 = vsel %vm3423, %v3745, %v3665
        %v3782 = vsel %vm3423, %v3388, %v3387
        %v3783 = vsel %vm3425, %v3389, %v3782
        %v3784 = vsel %vm3427, %v3390, %v3783
        %v3785 = vsel %vm3429, %v3391, %v3784
        %v3786 = vsel %vm3431, %v3392, %v3785
        %v3787 = vsel %vm3433, %v3506, %v3786
        %v3788 = vsel %vm3435, %v3586, %v3787
        %v3789 = vsel %vm3423, %v3746, %v3666
        %v3790 = vsel %vm3423, %v3398, %v3397
        %v3791 = vsel %vm3425, %v3399, %v3790
        %v3792 = vsel %vm3427, %v3400, %v3791
        %v3793 = vsel %vm3429, %v3401, %v3792
        %v3794 = vsel %vm3431, %v3402, %v3793
        %v3795 = vsel %vm3433, %v3507, %v3794
        %v3796 = vsel %vm3435, %v3587, %v3795
        %v3797 = vsel %vm3423, %v3747, %v3667
        %v3798 = vsel %vm3423, %v3408, %v3407
        %v3799 = vsel %vm3425, %v3409, %v3798
        %v3800 = vsel %vm3427, %v3410, %v3799
        %v3801 = vsel %vm3429, %v3411, %v3800
        %v3802 = vsel %vm3431, %v3412, %v3801
        %v3803 = vsel %vm3433, %v3508, %v3802
        %v3804 = vsel %vm3435, %v3588, %v3803
        %v3805 = vsel %vm3423, %v3748, %v3668
        %v3806 = vsel %vm3423, %v3418, %v3417
        %v3807 = vsel %vm3425, %v3419, %v3806
        %v3808 = vsel %vm3427, %v3420, %v3807
        %v3809 = vsel %vm3429, %v3421, %v3808
        %v3810 = vsel %vm3431, %v3422, %v3809
        %v3811 = vsel %vm3433, %v3509, %v3810
        %v3812 = vsel %vm3435, %v3589, %v3811
        %v3813 = vsel %vm3423, %v3749, %v3669
        %v3814 = vrot.slane %v3516, 6
        %v3815 = vrot.slane %v3596, 4
        %v3816 = vrot.slane %v3676, 2
        %v3817 = vrot.slane %v3517, 6
        %v3818 = vrot.slane %v3597, 4
        %v3819 = vrot.slane %v3677, 2
        %v3820 = vrot.slane %v3524, 6
        %v3821 = vrot.slane %v3604, 4
        %v3822 = vrot.slane %v3684, 2
        %v3823 = vrot.slane %v3525, 6
        %v3824 = vrot.slane %v3605, 4
        %v3825 = vrot.slane %v3685, 2
        %v3826 = vrot.slane %v3532, 6
        %v3827 = vrot.slane %v3612, 4
        %v3828 = vrot.slane %v3692, 2
        %v3829 = vrot.slane %v3533, 6
        %v3830 = vrot.slane %v3613, 4
        %v3831 = vrot.slane %v3693, 2
        %v3832 = vrot.slane %v3540, 6
        %v3833 = vrot.slane %v3620, 4
        %v3834 = vrot.slane %v3700, 2
        %v3835 = vrot.slane %v3541, 6
        %v3836 = vrot.slane %v3621, 4
        %v3837 = vrot.slane %v3701, 2
        %v3838 = vrot.slane %v3548, 6
        %v3839 = vrot.slane %v3628, 4
        %v3840 = vrot.slane %v3708, 2
        %v3841 = vrot.slane %v3549, 6
        %v3842 = vrot.slane %v3629, 4
        %v3843 = vrot.slane %v3709, 2
        %v3844 = vrot.slane %v3556, 6
        %v3845 = vrot.slane %v3636, 4
        %v3846 = vrot.slane %v3716, 2
        %v3847 = vrot.slane %v3557, 6
        %v3848 = vrot.slane %v3637, 4
        %v3849 = vrot.slane %v3717, 2
        %v3850 = vrot.slane %v3564, 6
        %v3851 = vrot.slane %v3644, 4
        %v3852 = vrot.slane %v3724, 2
        %v3853 = vrot.slane %v3565, 6
        %v3854 = vrot.slane %v3645, 4
        %v3855 = vrot.slane %v3725, 2
        %v3856 = vrot.slane %v3572, 6
        %v3857 = vrot.slane %v3652, 4
        %v3858 = vrot.slane %v3732, 2
        %v3859 = vrot.slane %v3573, 6
        %v3860 = vrot.slane %v3653, 4
        %v3861 = vrot.slane %v3733, 2
        %v3862 = vsel %vm2056, %v3436, %v3814
        %v3863 = vsel %vm2061, %v3815, %v3816
        %v3864 = vsel %vm963, %v3862, %v3863
        %v3865 = vsel %vm2058, %v3436, %v3814
        %v3866 = vsel %vm657, %v3816, %v3815
        %vm3867 = vcmask 1045506
        %v3868 = vsel %vm3867, %v3865, %v3866
        %v3869 = vrot.slane %v3868, 2
        %v3870 = vrot.slane %v3756, 2
        %v3871 = vsel %vm2061, %v3436, %v3814
        %v3872 = vsel %vm2056, %v3815, %v3816
        %v3873 = vsel %vm963, %v3872, %v3871
        %v3874 = vrot.slane %v3873, 4
        %v3875 = vrot.slane %v3756, 4
        %v3876 = vsel %vm657, %v3814, %v3436
        %v3877 = vsel %vm2058, %v3815, %v3816
        %v3878 = vsel %vm3867, %v3877, %v3876
        %v3879 = vrot.slane %v3878, 6
        %v3880 = vrot.slane %v3756, 6
        %v3881 = vsel %vm2056, %v3437, %v3817
        %v3882 = vsel %vm2061, %v3818, %v3819
        %v3883 = vsel %vm963, %v3881, %v3882
        %v3884 = vsel %vm2056, %v3444, %v3820
        %v3885 = vsel %vm2061, %v3821, %v3822
        %v3886 = vsel %vm963, %v3884, %v3885
        %v3887 = vsel %vm2058, %v3444, %v3820
        %v3888 = vsel %vm657, %v3822, %v3821
        %v3889 = vsel %vm3867, %v3887, %v3888
        %v3890 = vrot.slane %v3889, 2
        %v3891 = vrot.slane %v3764, 2
        %v3892 = vsel %vm2061, %v3444, %v3820
        %v3893 = vsel %vm2056, %v3821, %v3822
        %v3894 = vsel %vm963, %v3893, %v3892
        %v3895 = vrot.slane %v3894, 4
        %v3896 = vrot.slane %v3764, 4
        %v3897 = vsel %vm657, %v3820, %v3444
        %v3898 = vsel %vm2058, %v3821, %v3822
        %v3899 = vsel %vm3867, %v3898, %v3897
        %v3900 = vrot.slane %v3899, 6
        %v3901 = vrot.slane %v3764, 6
        %v3902 = vsel %vm2056, %v3445, %v3823
        %v3903 = vsel %vm2061, %v3824, %v3825
        %v3904 = vsel %vm963, %v3902, %v3903
        %v3905 = vsel %vm2056, %v3452, %v3826
        %v3906 = vsel %vm2061, %v3827, %v3828
        %v3907 = vsel %vm963, %v3905, %v3906
        %v3908 = vsel %vm2058, %v3452, %v3826
        %v3909 = vsel %vm657, %v3828, %v3827
        %v3910 = vsel %vm3867, %v3908, %v3909
        %v3911 = vrot.slane %v3910, 2
        %v3912 = vrot.slane %v3772, 2
        %v3913 = vsel %vm2061, %v3452, %v3826
        %v3914 = vsel %vm2056, %v3827, %v3828
        %v3915 = vsel %vm963, %v3914, %v3913
        %v3916 = vrot.slane %v3915, 4
        %v3917 = vrot.slane %v3772, 4
        %v3918 = vsel %vm657, %v3826, %v3452
        %v3919 = vsel %vm2058, %v3827, %v3828
        %v3920 = vsel %vm3867, %v3919, %v3918
        %v3921 = vrot.slane %v3920, 6
        %v3922 = vrot.slane %v3772, 6
        %v3923 = vsel %vm2056, %v3453, %v3829
        %v3924 = vsel %vm2061, %v3830, %v3831
        %v3925 = vsel %vm963, %v3923, %v3924
        %v3926 = vsel %vm2056, %v3460, %v3832
        %v3927 = vsel %vm2061, %v3833, %v3834
        %v3928 = vsel %vm963, %v3926, %v3927
        %v3929 = vsel %vm2058, %v3460, %v3832
        %v3930 = vsel %vm657, %v3834, %v3833
        %v3931 = vsel %vm3867, %v3929, %v3930
        %v3932 = vrot.slane %v3931, 2
        %v3933 = vrot.slane %v3780, 2
        %v3934 = vsel %vm2061, %v3460, %v3832
        %v3935 = vsel %vm2056, %v3833, %v3834
        %v3936 = vsel %vm963, %v3935, %v3934
        %v3937 = vrot.slane %v3936, 4
        %v3938 = vrot.slane %v3780, 4
        %v3939 = vsel %vm657, %v3832, %v3460
        %v3940 = vsel %vm2058, %v3833, %v3834
        %v3941 = vsel %vm3867, %v3940, %v3939
        %v3942 = vrot.slane %v3941, 6
        %v3943 = vrot.slane %v3780, 6
        %v3944 = vsel %vm2056, %v3461, %v3835
        %v3945 = vsel %vm2061, %v3836, %v3837
        %v3946 = vsel %vm963, %v3944, %v3945
        %v3947 = vsel %vm2056, %v3468, %v3838
        %v3948 = vsel %vm2061, %v3839, %v3840
        %v3949 = vsel %vm963, %v3947, %v3948
        %v3950 = vsel %vm2058, %v3468, %v3838
        %v3951 = vsel %vm657, %v3840, %v3839
        %v3952 = vsel %vm3867, %v3950, %v3951
        %v3953 = vrot.slane %v3952, 2
        %v3954 = vrot.slane %v3788, 2
        %v3955 = vsel %vm2061, %v3468, %v3838
        %v3956 = vsel %vm2056, %v3839, %v3840
        %v3957 = vsel %vm963, %v3956, %v3955
        %v3958 = vrot.slane %v3957, 4
        %v3959 = vrot.slane %v3788, 4
        %v3960 = vsel %vm657, %v3838, %v3468
        %v3961 = vsel %vm2058, %v3839, %v3840
        %v3962 = vsel %vm3867, %v3961, %v3960
        %v3963 = vrot.slane %v3962, 6
        %v3964 = vrot.slane %v3788, 6
        %v3965 = vsel %vm2056, %v3469, %v3841
        %v3966 = vsel %vm2061, %v3842, %v3843
        %v3967 = vsel %vm963, %v3965, %v3966
        %v3968 = vsel %vm2056, %v3476, %v3844
        %v3969 = vsel %vm2061, %v3845, %v3846
        %v3970 = vsel %vm963, %v3968, %v3969
        %v3971 = vsel %vm2058, %v3476, %v3844
        %v3972 = vsel %vm657, %v3846, %v3845
        %v3973 = vsel %vm3867, %v3971, %v3972
        %v3974 = vrot.slane %v3973, 2
        %v3975 = vrot.slane %v3796, 2
        %v3976 = vsel %vm2061, %v3476, %v3844
        %v3977 = vsel %vm2056, %v3845, %v3846
        %v3978 = vsel %vm963, %v3977, %v3976
        %v3979 = vrot.slane %v3978, 4
        %v3980 = vrot.slane %v3796, 4
        %v3981 = vsel %vm657, %v3844, %v3476
        %v3982 = vsel %vm2058, %v3845, %v3846
        %v3983 = vsel %vm3867, %v3982, %v3981
        %v3984 = vrot.slane %v3983, 6
        %v3985 = vrot.slane %v3796, 6
        %v3986 = vsel %vm2056, %v3477, %v3847
        %v3987 = vsel %vm2061, %v3848, %v3849
        %v3988 = vsel %vm963, %v3986, %v3987
        %v3989 = vsel %vm2056, %v3484, %v3850
        %v3990 = vsel %vm2061, %v3851, %v3852
        %v3991 = vsel %vm963, %v3989, %v3990
        %v3992 = vsel %vm2058, %v3484, %v3850
        %v3993 = vsel %vm657, %v3852, %v3851
        %v3994 = vsel %vm3867, %v3992, %v3993
        %v3995 = vrot.slane %v3994, 2
        %v3996 = vrot.slane %v3804, 2
        %v3997 = vsel %vm2061, %v3484, %v3850
        %v3998 = vsel %vm2056, %v3851, %v3852
        %v3999 = vsel %vm963, %v3998, %v3997
        %v4000 = vrot.slane %v3999, 4
        %v4001 = vrot.slane %v3804, 4
        %v4002 = vsel %vm657, %v3850, %v3484
        %v4003 = vsel %vm2058, %v3851, %v3852
        %v4004 = vsel %vm3867, %v4003, %v4002
        %v4005 = vrot.slane %v4004, 6
        %v4006 = vrot.slane %v3804, 6
        %v4007 = vsel %vm2056, %v3485, %v3853
        %v4008 = vsel %vm2061, %v3854, %v3855
        %v4009 = vsel %vm963, %v4007, %v4008
        %v4010 = vsel %vm2056, %v3492, %v3856
        %v4011 = vsel %vm2061, %v3857, %v3858
        %v4012 = vsel %vm963, %v4010, %v4011
        %v4013 = vsel %vm2058, %v3492, %v3856
        %v4014 = vsel %vm657, %v3858, %v3857
        %v4015 = vsel %vm3867, %v4013, %v4014
        %v4016 = vrot.slane %v4015, 2
        %v4017 = vrot.slane %v3812, 2
        %v4018 = vsel %vm2061, %v3492, %v3856
        %v4019 = vsel %vm2056, %v3857, %v3858
        %v4020 = vsel %vm963, %v4019, %v4018
        %v4021 = vrot.slane %v4020, 4
        %v4022 = vrot.slane %v3812, 4
        %v4023 = vsel %vm657, %v3856, %v3492
        %v4024 = vsel %vm2058, %v3857, %v3858
        %v4025 = vsel %vm3867, %v4024, %v4023
        %v4026 = vrot.slane %v4025, 6
        %v4027 = vrot.slane %v3812, 6
        %v4028 = vsel %vm2056, %v3493, %v3859
        %v4029 = vsel %vm2061, %v3860, %v3861
        %v4030 = vsel %vm963, %v4028, %v4029
        %v4031 = vld [vmem:[%s3] sm:$0xff]
        %v4032 = vld [vmem:[%s3 + $0x8] sm:$0xff]
        %v4033 = vld [vmem:[%s3 + $0x10] sm:$0xff]
        %v4034 = vld [vmem:[%s3 + $0x18] sm:$0xff]
        %v4035 = vld [vmem:[%s3 + $0x20] sm:$0xff]
        %v4036 = vld [vmem:[%s3 + $0x28] sm:$0xff]
        %v4037 = vld [vmem:[%s3 + $0x30] sm:$0xff]
        %v4038 = vld [vmem:[%s3 + $0x38] sm:$0xff]
        %v4039 = vld [vmem:[%s3 + $0x40] sm:$0xff]
        %v4040 = vld [vmem:[%s3 + $0x48] sm:$0xff]
        %v4041 = vld [vmem:[%s3 + $0x50] sm:$0xff]
        %v4042 = vld [vmem:[%s3 + $0x58] sm:$0xff]
        %v4043 = vld [vmem:[%s3 + $0x60] sm:$0xff]
        %v4044 = vld [vmem:[%s3 + $0x68] sm:$0xff]
        %v4045 = vld [vmem:[%s3 + $0x70] sm:$0xff]
        %v4046 = vld [vmem:[%s3 + $0x78] sm:$0xff]
        %v4047 = vld [vmem:[%s3 + $0x80] sm:$0xff]
        %v4048 = vld [vmem:[%s3 + $0x88] sm:$0xff]
        %v4049 = vld [vmem:[%s3 + $0x90] sm:$0xff]
        %v4050 = vld [vmem:[%s3 + $0x98] sm:$0xff]
        %v4051 = vld [vmem:[%s3 + $0xa0] sm:$0xff]
        %v4052 = vld [vmem:[%s3 + $0xa8] sm:$0xff]
        %v4053 = vld [vmem:[%s3 + $0xb0] sm:$0xff]
        %v4054 = vld [vmem:[%s3 + $0xb8] sm:$0xff]
        %v4055 = vld [vmem:[%s3 + $0xc0] sm:$0xff]
        %v4056 = vld [vmem:[%s3 + $0xc8] sm:$0xff]
        %v4057 = vld [vmem:[%s3 + $0xd0] sm:$0xff]
        %v4058 = vld [vmem:[%s3 + $0xd8] sm:$0xff]
        %v4059 = vld [vmem:[%s3 + $0xe0] sm:$0xff]
        %v4060 = vld [vmem:[%s3 + $0xe8] sm:$0xff]
        %v4061 = vld [vmem:[%s3 + $0xf0] sm:$0xff]
        %v4062 = vld [vmem:[%s3 + $0xf8] sm:$0xff]
        %v4063 = vld [vmem:[%s3 + $0x100] sm:$0xff]
        %v4064 = vld [vmem:[%s3 + $0x108] sm:$0xff]
        %v4065 = vld [vmem:[%s3 + $0x110] sm:$0xff]
        %v4066 = vld [vmem:[%s3 + $0x118] sm:$0xff]
        %v4067 = vld [vmem:[%s3 + $0x120] sm:$0xff]
        %v4068 = vld [vmem:[%s3 + $0x128] sm:$0xff]
        %v4069 = vld [vmem:[%s3 + $0x130] sm:$0xff]
        %v4070 = vld [vmem:[%s3 + $0x138] sm:$0xff]
        %v4071 = vld [vmem:[%s3 + $0x140] sm:$0xff]
        %v4072 = vld [vmem:[%s3 + $0x148] sm:$0xff]
        %v4073 = vld [vmem:[%s3 + $0x150] sm:$0xff]
        %v4074 = vld [vmem:[%s3 + $0x158] sm:$0xff]
        %v4075 = vld [vmem:[%s3 + $0x160] sm:$0xff]
        %v4076 = vld [vmem:[%s3 + $0x168] sm:$0xff]
        %v4077 = vld [vmem:[%s3 + $0x170] sm:$0xff]
        %v4078 = vld [vmem:[%s3 + $0x178] sm:$0xff]
        %v4079 = vld [vmem:[%s3 + $0x180] sm:$0xff]
        %v4080 = vld [vmem:[%s3 + $0x188] sm:$0xff]
        %v4081 = vld [vmem:[%s3 + $0x190] sm:$0xff]
        %v4082 = vld [vmem:[%s3 + $0x198] sm:$0xff]
        %v4083 = vld [vmem:[%s3 + $0x1a0] sm:$0xff]
        %v4084 = vld [vmem:[%s3 + $0x1a8] sm:$0xff]
        %v4085 = vld [vmem:[%s3 + $0x1b0] sm:$0xff]
        %v4086 = vld [vmem:[%s3 + $0x1b8] sm:$0xff]
        %v4087 = vld [vmem:[%s3 + $0x1c0] sm:$0xff]
        %v4088 = vld [vmem:[%s3 + $0x1c8] sm:$0xff]
        %v4089 = vld [vmem:[%s3 + $0x1d0] sm:$0xff]
        %v4090 = vld [vmem:[%s3 + $0x1d8] sm:$0xff]
        %v4091 = vld [vmem:[%s3 + $0x1e0] sm:$0xff]
        %v4092 = vld [vmem:[%s3 + $0x1e8] sm:$0xff]
        %v4093 = vld [vmem:[%s3 + $0x1f0] sm:$0xff]
        %v4094 = vld [vmem:[%s3 + $0x1f8] sm:$0xff]
        %v4095 = vld [vmem:[%s3 + $0x200] sm:$0xff]
        %v4096 = vld [vmem:[%s3 + $0x208] sm:$0xff]
        %v4097 = vld [vmem:[%s3 + $0x210] sm:$0xff]
        %v4098 = vld [vmem:[%s3 + $0x218] sm:$0xff]
        %v4099 = vld [vmem:[%s3 + $0x220] sm:$0xff]
        %v4100 = vld [vmem:[%s3 + $0x228] sm:$0xff]
        %v4101 = vld [vmem:[%s3 + $0x230] sm:$0xff]
        %v4102 = vld [vmem:[%s3 + $0x238] sm:$0xff]
        %v4103 = vld [vmem:[%s3 + $0x240] sm:$0xff]
        %v4104 = vld [vmem:[%s3 + $0x248] sm:$0xff]
        %v4105 = vld [vmem:[%s3 + $0x250] sm:$0xff]
        %v4106 = vld [vmem:[%s3 + $0x258] sm:$0xff]
        %v4107 = vld [vmem:[%s3 + $0x260] sm:$0xff]
        %v4108 = vld [vmem:[%s3 + $0x268] sm:$0xff]
        %v4109 = vld [vmem:[%s3 + $0x270] sm:$0xff]
        %v4110 = vld [vmem:[%s3 + $0x278] sm:$0xff]
        %v4111 = vld [vmem:[%s3 + $0x280] sm:$0xff]
        %v4112 = vld [vmem:[%s3 + $0x288] sm:$0xff]
        %v4113 = vld [vmem:[%s3 + $0x290] sm:$0xff]
        %v4114 = vld [vmem:[%s3 + $0x298] sm:$0xff]
        %v4115 = vld [vmem:[%s3 + $0x2a0] sm:$0xff]
        %v4116 = vld [vmem:[%s3 + $0x2a8] sm:$0xff]
        %v4117 = vld [vmem:[%s3 + $0x2b0] sm:$0xff]
        %v4118 = vld [vmem:[%s3 + $0x2b8] sm:$0xff]
        %v4119 = vld [vmem:[%s3 + $0x2c0] sm:$0xff]
        %v4120 = vld [vmem:[%s3 + $0x2c8] sm:$0xff]
        %v4121 = vld [vmem:[%s3 + $0x2d0] sm:$0xff]
        %v4122 = vld [vmem:[%s3 + $0x2d8] sm:$0xff]
        %v4123 = vld [vmem:[%s3 + $0x2e0] sm:$0xff]
        %v4124 = vld [vmem:[%s3 + $0x2e8] sm:$0xff]
        %v4125 = vld [vmem:[%s3 + $0x2f0] sm:$0xff]
        %v4126 = vld [vmem:[%s3 + $0x2f8] sm:$0xff]
        %v4127 = vld [vmem:[%s3 + $0x300] sm:$0xff]
        %v4128 = vld [vmem:[%s3 + $0x308] sm:$0xff]
        %v4129 = vld [vmem:[%s3 + $0x310] sm:$0xff]
        %v4130 = vld [vmem:[%s3 + $0x318] sm:$0xff]
        %v4131 = vld [vmem:[%s3 + $0x320] sm:$0xff]
        %v4132 = vld [vmem:[%s3 + $0x328] sm:$0xff]
        %v4133 = vld [vmem:[%s3 + $0x330] sm:$0xff]
        %v4134 = vld [vmem:[%s3 + $0x338] sm:$0xff]
        %v4135 = vld [vmem:[%s3 + $0x340] sm:$0xff]
        %v4136 = vld [vmem:[%s3 + $0x348] sm:$0xff]
        %v4137 = vld [vmem:[%s3 + $0x350] sm:$0xff]
        %v4138 = vld [vmem:[%s3 + $0x358] sm:$0xff]
        %v4139 = vld [vmem:[%s3 + $0x360] sm:$0xff]
        %v4140 = vld [vmem:[%s3 + $0x368] sm:$0xff]
        %v4141 = vld [vmem:[%s3 + $0x370] sm:$0xff]
        %v4142 = vld [vmem:[%s3 + $0x378] sm:$0xff]
        %v4143 = vld [vmem:[%s3 + $0x380] sm:$0xff]
        %v4144 = vld [vmem:[%s3 + $0x388] sm:$0xff]
        %v4145 = vld [vmem:[%s3 + $0x390] sm:$0xff]
        %v4146 = vld [vmem:[%s3 + $0x398] sm:$0xff]
        %v4147 = vld [vmem:[%s3 + $0x3a0] sm:$0xff]
        %v4148 = vld [vmem:[%s3 + $0x3a8] sm:$0xff]
        %v4149 = vld [vmem:[%s3 + $0x3b0] sm:$0xff]
        %v4150 = vld [vmem:[%s3 + $0x3b8] sm:$0xff]
        %v4151 = vld [vmem:[%s3 + $0x3c0] sm:$0xff]
        %v4152 = vld [vmem:[%s3 + $0x3c8] sm:$0xff]
        %v4153 = vld [vmem:[%s3 + $0x3d0] sm:$0xff]
        %v4154 = vld [vmem:[%s3 + $0x3d8] sm:$0xff]
        %v4155 = vld [vmem:[%s3 + $0x3e0] sm:$0xff]
        %v4156 = vld [vmem:[%s3 + $0x3e8] sm:$0xff]
        %v4157 = vld [vmem:[%s3 + $0x3f0] sm:$0xff]
        %v4158 = vld [vmem:[%s3 + $0x3f8] sm:$0xff]
        %v4159 = vld [vmem:[%s3 + $0x400] sm:$0xff]
        %v4160 = vld [vmem:[%s3 + $0x408] sm:$0xff]
        %v4161 = vld [vmem:[%s3 + $0x410] sm:$0xff]
        %v4162 = vld [vmem:[%s3 + $0x418] sm:$0xff]
        %v4163 = vld [vmem:[%s3 + $0x420] sm:$0xff]
        %v4164 = vld [vmem:[%s3 + $0x428] sm:$0xff]
        %v4165 = vld [vmem:[%s3 + $0x430] sm:$0xff]
        %v4166 = vld [vmem:[%s3 + $0x438] sm:$0xff]
        %v4167 = vld [vmem:[%s3 + $0x440] sm:$0xff]
        %v4168 = vld [vmem:[%s3 + $0x448] sm:$0xff]
        %v4169 = vld [vmem:[%s3 + $0x450] sm:$0xff]
        %v4170 = vld [vmem:[%s3 + $0x458] sm:$0xff]
        %v4171 = vld [vmem:[%s3 + $0x460] sm:$0xff]
        %v4172 = vld [vmem:[%s3 + $0x468] sm:$0xff]
        %v4173 = vld [vmem:[%s3 + $0x470] sm:$0xff]
        %v4174 = vld [vmem:[%s3 + $0x478] sm:$0xff]
        %v4175 = vld [vmem:[%s3 + $0x480] sm:$0xff]
        %v4176 = vld [vmem:[%s3 + $0x488] sm:$0xff]
        %v4177 = vld [vmem:[%s3 + $0x490] sm:$0xff]
        %v4178 = vld [vmem:[%s3 + $0x498] sm:$0xff]
        %v4179 = vld [vmem:[%s3 + $0x4a0] sm:$0xff]
        %v4180 = vld [vmem:[%s3 + $0x4a8] sm:$0xff]
        %v4181 = vld [vmem:[%s3 + $0x4b0] sm:$0xff]
        %v4182 = vld [vmem:[%s3 + $0x4b8] sm:$0xff]
        %v4183 = vld [vmem:[%s3 + $0x4c0] sm:$0xff]
        %v4184 = vld [vmem:[%s3 + $0x4c8] sm:$0xff]
        %v4185 = vld [vmem:[%s3 + $0x4d0] sm:$0xff]
        %v4186 = vld [vmem:[%s3 + $0x4d8] sm:$0xff]
        %v4187 = vld [vmem:[%s3 + $0x4e0] sm:$0xff]
        %v4188 = vld [vmem:[%s3 + $0x4e8] sm:$0xff]
        %v4189 = vld [vmem:[%s3 + $0x4f0] sm:$0xff]
        %v4190 = vld [vmem:[%s3 + $0x4f8] sm:$0xff]
        %v4191 = vld [vmem:[%s4] sm:$0x3]
        %v4193 = vperm.slane %v4191, 0
        %v4194 = vperm.slane %v4191, 1
        %4197 = vst [vmem:[#allocation1] ss:$4 sm:$0xff] %v3864
        %s4198 = scalar_lea.vmem [#allocation1], 1
        %4199 = vst [vmem:[%s4198] ss:$4 sm:$0xff] %v3869
        %s4200 = scalar_lea.vmem [#allocation1], 2
        %4201 = vst [vmem:[%s4200] ss:$4 sm:$0xff] %v3874
        %s4202 = scalar_lea.vmem [#allocation1], 3
        %4203 = vst [vmem:[%s4202] ss:$4 sm:$0xff] %v3879
        %s4204 = scalar_lea.vmem [#allocation1], 32
        %4205 = vst [vmem:[%s4204] ss:$4 sm:$0xff] %v3756
        %s4206 = scalar_lea.vmem [#allocation1], 33
        %4207 = vst [vmem:[%s4206] ss:$4 sm:$0xff] %v3870
        %s4208 = scalar_lea.vmem [#allocation1], 34
        %4209 = vst [vmem:[%s4208] ss:$4 sm:$0xff] %v3875
        %s4210 = scalar_lea.vmem [#allocation1], 35
        %4211 = vst [vmem:[%s4210] ss:$4 sm:$0xff] %v3880
        %v4212 = vld.sshfl [vmem:[#allocation1] sm:$0xff pattern:$0x73625140]
        %v4213 = vld.sshfl [vmem:[#allocation1 + $0x8] sm:$0xff pattern:$0x73625140]
        %v4214 = vld.sshfl [vmem:[#allocation1 + $0x10] sm:$0xff pattern:$0x73625140]
        %v4215 = vld.sshfl [vmem:[#allocation1 + $0x18] sm:$0xff pattern:$0x73625140]
        %v4216 = vld.sshfl [vmem:[#allocation1 + $0x20] sm:$0xff pattern:$0x73625140]
        %4217 = vst [vmem:[#allocation1] ss:$4 sm:$0xff] %v3883
        %4218 = vst [vmem:[%s4198] ss:$4 sm:$0xff] %v3886
        %4219 = vst [vmem:[%s4200] ss:$4 sm:$0xff] %v3890
        %4220 = vst [vmem:[%s4202] ss:$4 sm:$0xff] %v3895
        %4221 = vst [vmem:[%s4204] ss:$4 sm:$0xff] %v3757
        %4222 = vst [vmem:[%s4206] ss:$4 sm:$0xff] %v3764
        %4223 = vst [vmem:[%s4208] ss:$4 sm:$0xff] %v3891
        %4224 = vst [vmem:[%s4210] ss:$4 sm:$0xff] %v3896
        %v4225 = vld.sshfl [vmem:[#allocation1] sm:$0xff pattern:$0x73625140]
        %v4226 = vld.sshfl [vmem:[#allocation1 + $0x8] sm:$0xff pattern:$0x73625140]
        %v4227 = vld.sshfl [vmem:[#allocation1 + $0x10] sm:$0xff pattern:$0x73625140]
        %v4228 = vld.sshfl [vmem:[#allocation1 + $0x18] sm:$0xff pattern:$0x73625140]
        %v4229 = vld.sshfl [vmem:[#allocation1 + $0x20] sm:$0xff pattern:$0x73625140]
        %4230 = vst [vmem:[#allocation1] ss:$4 sm:$0xff] %v3900
        %4231 = vst [vmem:[%s4198] ss:$4 sm:$0xff] %v3904
        %4232 = vst [vmem:[%s4200] ss:$4 sm:$0xff] %v3907
        %4233 = vst [vmem:[%s4202] ss:$4 sm:$0xff] %v3911
        %4234 = vst [vmem:[%s4204] ss:$4 sm:$0xff] %v3901
        %4235 = vst [vmem:[%s4206] ss:$4 sm:$0xff] %v3765
        %4236 = vst [vmem:[%s4208] ss:$4 sm:$0xff] %v3772
        %4237 = vst [vmem:[%s4210] ss:$4 sm:$0xff] %v3912
        %v4238 = vld.sshfl [vmem:[#allocation1] sm:$0xff pattern:$0x73625140]
        %v4239 = vld.sshfl [vmem:[#allocation1 + $0x8] sm:$0xff pattern:$0x73625140]
        %v4240 = vld.sshfl [vmem:[#allocation1 + $0x10] sm:$0xff pattern:$0x73625140]
        %v4241 = vld.sshfl [vmem:[#allocation1 + $0x18] sm:$0xff pattern:$0x73625140]
        %v4242 = vld.sshfl [vmem:[#allocation1 + $0x20] sm:$0xff pattern:$0x73625140]
        %4243 = vst [vmem:[#allocation1] ss:$4 sm:$0xff] %v3916
        %4244 = vst [vmem:[%s4198] ss:$4 sm:$0xff] %v3921
        %4245 = vst [vmem:[%s4200] ss:$4 sm:$0xff] %v3925
        %4246 = vst [vmem:[%s4202] ss:$4 sm:$0xff] %v3928
        %4247 = vst [vmem:[%s4204] ss:$4 sm:$0xff] %v3917
        %4248 = vst [vmem:[%s4206] ss:$4 sm:$0xff] %v3922
        %4249 = vst [vmem:[%s4208] ss:$4 sm:$0xff] %v3773
        %4250 = vst [vmem:[%s4210] ss:$4 sm:$0xff] %v3780
        %v4251 = vld.sshfl [vmem:[#allocation1] sm:$0xff pattern:$0x73625140]
        %v4252 = vld.sshfl [vmem:[#allocation1 + $0x8] sm:$0xff pattern:$0x73625140]
        %v4253 = vld.sshfl [vmem:[#allocation1 + $0x10] sm:$0xff pattern:$0x73625140]
        %v4254 = vld.sshfl [vmem:[#allocation1 + $0x18] sm:$0xff pattern:$0x73625140]
        %v4255 = vld.sshfl [vmem:[#allocation1 + $0x20] sm:$0xff pattern:$0x73625140]
        %4256 = vst [vmem:[#allocation1] ss:$4 sm:$0xff] %v3932
        %4257 = vst [vmem:[%s4198] ss:$4 sm:$0xff] %v3937
        %4258 = vst [vmem:[%s4200] ss:$4 sm:$0xff] %v3942
        %4259 = vst [vmem:[%s4202] ss:$4 sm:$0xff] %v3946
        %4260 = vst [vmem:[%s4204] ss:$4 sm:$0xff] %v3933
        %4261 = vst [vmem:[%s4206] ss:$4 sm:$0xff] %v3938
        %4262 = vst [vmem:[%s4208] ss:$4 sm:$0xff] %v3943
        %4263 = vst [vmem:[%s4210] ss:$4 sm:$0xff] %v3781
        %v4264 = vld.sshfl [vmem:[#allocation1] sm:$0xff pattern:$0x73625140]
        %v4265 = vld.sshfl [vmem:[#allocation1 + $0x8] sm:$0xff pattern:$0x73625140]
        %v4266 = vld.sshfl [vmem:[#allocation1 + $0x10] sm:$0xff pattern:$0x73625140]
        %v4267 = vld.sshfl [vmem:[#allocation1 + $0x18] sm:$0xff pattern:$0x73625140]
        %v4268 = vld.sshfl [vmem:[#allocation1 + $0x20] sm:$0xff pattern:$0x73625140]
        %4269 = vst [vmem:[#allocation1] ss:$4 sm:$0xff] %v3949
        %4270 = vst [vmem:[%s4198] ss:$4 sm:$0xff] %v3953
        %4271 = vst [vmem:[%s4200] ss:$4 sm:$0xff] %v3958
        %4272 = vst [vmem:[%s4202] ss:$4 sm:$0xff] %v3963
        %4273 = vst [vmem:[%s4204] ss:$4 sm:$0xff] %v3788
        %4274 = vst [vmem:[%s4206] ss:$4 sm:$0xff] %v3954
        %4275 = vst [vmem:[%s4208] ss:$4 sm:$0xff] %v3959
        %4276 = vst [vmem:[%s4210] ss:$4 sm:$0xff] %v3964
        %v4277 = vld.sshfl [vmem:[#allocation1] sm:$0xff pattern:$0x73625140]
        %v4278 = vld.sshfl [vmem:[#allocation1 + $0x8] sm:$0xff pattern:$0x73625140]
        %v4279 = vld.sshfl [vmem:[#allocation1 + $0x10] sm:$0xff pattern:$0x73625140]
        %v4280 = vld.sshfl [vmem:[#allocation1 + $0x18] sm:$0xff pattern:$0x73625140]
        %v4281 = vld.sshfl [vmem:[#allocation1 + $0x20] sm:$0xff pattern:$0x73625140]
        %4282 = vst [vmem:[#allocation1] ss:$4 sm:$0xff] %v3967
        %4283 = vst [vmem:[%s4198] ss:$4 sm:$0xff] %v3970
        %4284 = vst [vmem:[%s4200] ss:$4 sm:$0xff] %v3974
        %4285 = vst [vmem:[%s4202] ss:$4 sm:$0xff] %v3979
        %4286 = vst [vmem:[%s4204] ss:$4 sm:$0xff] %v3789
        %4287 = vst [vmem:[%s4206] ss:$4 sm:$0xff] %v3796
        %4288 = vst [vmem:[%s4208] ss:$4 sm:$0xff] %v3975
        %4289 = vst [vmem:[%s4210] ss:$4 sm:$0xff] %v3980
        %v4290 = vld.sshfl [vmem:[#allocation1] sm:$0xff pattern:$0x73625140]
        %v4291 = vld.sshfl [vmem:[#allocation1 + $0x8] sm:$0xff pattern:$0x73625140]
        %v4292 = vld.sshfl [vmem:[#allocation1 + $0x10] sm:$0xff pattern:$0x73625140]
        %v4293 = vld.sshfl [vmem:[#allocation1 + $0x18] sm:$0xff pattern:$0x73625140]
        %v4294 = vld.sshfl [vmem:[#allocation1 + $0x20] sm:$0xff pattern:$0x73625140]
        %4295 = vst [vmem:[#allocation1] ss:$4 sm:$0xff] %v3984
        %4296 = vst [vmem:[%s4198] ss:$4 sm:$0xff] %v3988
        %4297 = vst [vmem:[%s4200] ss:$4 sm:$0xff] %v3991
        %4298 = vst [vmem:[%s4202] ss:$4 sm:$0xff] %v3995
        %4299 = vst [vmem:[%s4204] ss:$4 sm:$0xff] %v3985
        %4300 = vst [vmem:[%s4206] ss:$4 sm:$0xff] %v3797
        %4301 = vst [vmem:[%s4208] ss:$4 sm:$0xff] %v3804
        %4302 = vst [vmem:[%s4210] ss:$4 sm:$0xff] %v3996
        %v4303 = vld.sshfl [vmem:[#allocation1] sm:$0xff pattern:$0x73625140]
        %v4304 = vld.sshfl [vmem:[#allocation1 + $0x8] sm:$0xff pattern:$0x73625140]
        %v4305 = vld.sshfl [vmem:[#allocation1 + $0x10] sm:$0xff pattern:$0x73625140]
        %v4306 = vld.sshfl [vmem:[#allocation1 + $0x18] sm:$0xff pattern:$0x73625140]
        %v4307 = vld.sshfl [vmem:[#allocation1 + $0x20] sm:$0xff pattern:$0x73625140]
        %4308 = vst [vmem:[#allocation1] ss:$4 sm:$0xff] %v4000
        %4309 = vst [vmem:[%s4198] ss:$4 sm:$0xff] %v4005
        %4310 = vst [vmem:[%s4200] ss:$4 sm:$0xff] %v4009
        %4311 = vst [vmem:[%s4202] ss:$4 sm:$0xff] %v4012
        %4312 = vst [vmem:[%s4204] ss:$4 sm:$0xff] %v4001
        %4313 = vst [vmem:[%s4206] ss:$4 sm:$0xff] %v4006
        %4314 = vst [vmem:[%s4208] ss:$4 sm:$0xff] %v3805
        %4315 = vst [vmem:[%s4210] ss:$4 sm:$0xff] %v3812
        %v4316 = vld.sshfl [vmem:[#allocation1] sm:$0xff pattern:$0x73625140]
        %v4317 = vld.sshfl [vmem:[#allocation1 + $0x8] sm:$0xff pattern:$0x73625140]
        %v4318 = vld.sshfl [vmem:[#allocation1 + $0x10] sm:$0xff pattern:$0x73625140]
        %v4319 = vld.sshfl [vmem:[#allocation1 + $0x18] sm:$0xff pattern:$0x73625140]
        %v4320 = vld.sshfl [vmem:[#allocation1 + $0x20] sm:$0xff pattern:$0x73625140]
        %4321 = vst [vmem:[#allocation1] ss:$4 sm:$0xff] %v4016
        %4322 = vst [vmem:[%s4198] ss:$4 sm:$0xff] %v4021
        %4323 = vst [vmem:[%s4200] ss:$4 sm:$0xff] %v4026
        %4324 = vst [vmem:[%s4202] ss:$4 sm:$0xff] %v4030
        %4325 = vst [vmem:[%s4204] ss:$4 sm:$0xff] %v4017
        %4326 = vst [vmem:[%s4206] ss:$4 sm:$0xff] %v4022
        %4327 = vst [vmem:[%s4208] ss:$4 sm:$0xff] %v4027
        %4328 = vst [vmem:[%s4210] ss:$4 sm:$0xff] %v3813
        %v4329 = vld.sshfl [vmem:[#allocation1] sm:$0xff pattern:$0x73625140]
        %v4330 = vld.sshfl [vmem:[#allocation1 + $0x8] sm:$0xff pattern:$0x73625140]
        %v4331 = vld.sshfl [vmem:[#allocation1 + $0x10] sm:$0xff pattern:$0x73625140]
        %v4332 = vld.sshfl [vmem:[#allocation1 + $0x18] sm:$0xff pattern:$0x73625140]
        %v4333 = vld.sshfl [vmem:[#allocation1 + $0x20] sm:$0xff pattern:$0x73625140]
        %4384 = vmatpush.msra.mxu0 %v4061
        %4385 = vmatpush.msra.mxu0 %v4059
        %4386 = vmatpush.msra.mxu0 %v4057
        %4387 = vmatpush.msra.mxu0 %v4055
        %4388 = vmatpush.msra.mxu0 %v4053
        %4389 = vmatpush.msra.mxu0 %v4051
        %4390 = vmatpush.msra.mxu0 %v4049
        %4391 = vmatpush.msra.mxu0 %v4047
        %4392 = vmatpush.msra.mxu0 %v4045
        %4393 = vmatpush.msra.mxu0 %v4043
        %4394 = vmatpush.msra.mxu0 %v4041
        %4395 = vmatpush.msra.mxu0 %v4039
        %4396 = vmatpush.msra.mxu0 %v4037
        %4397 = vmatpush.msra.mxu0 %v4035
        %4398 = vmatpush.msra.mxu0 %v4033
        %4399 = vmatpush.msra.mxu0 %v4031
        %4400 = vmatmul.f32.gmra.mxu0 %v4212
        %v4401 = vpop.f32.mrf.mxu0
        %v4402 = vadd.f32 %v4193, %v4401
        %4403 = vmatmul.f32.gmra.mxu0 %v4225
        %v4404 = vpop.f32.mrf.mxu0
        %v4405 = vadd.f32 %v4193, %v4404
        %4406 = vmatmul.f32.gmra.mxu0 %v4238
        %v4407 = vpop.f32.mrf.mxu0
        %v4408 = vadd.f32 %v4193, %v4407
        %4409 = vmatmul.f32.gmra.mxu0 %v4251
        %v4410 = vpop.f32.mrf.mxu0
        %v4411 = vadd.f32 %v4193, %v4410
        %4412 = vmatmul.f32.gmra.mxu0 %v4264
        %v4413 = vpop.f32.mrf.mxu0
        %v4414 = vadd.f32 %v4193, %v4413
        %4415 = vmatmul.f32.gmra.mxu0 %v4277
        %v4416 = vpop.f32.mrf.mxu0
        %v4417 = vadd.f32 %v4193, %v4416
        %4418 = vmatmul.f32.gmra.mxu0 %v4290
        %v4419 = vpop.f32.mrf.mxu0
        %v4420 = vadd.f32 %v4193, %v4419
        %4421 = vmatmul.f32.gmra.mxu0 %v4303
        %v4422 = vpop.f32.mrf.mxu0
        %v4423 = vadd.f32 %v4193, %v4422
        %4424 = vmatmul.f32.gmra.mxu0 %v4316
        %v4425 = vpop.f32.mrf.mxu0
        %v4426 = vadd.f32 %v4193, %v4425
        %4427 = vmatmul.f32.gmra.mxu0 %v4329
        %v4428 = vpop.f32.mrf.mxu0
        %v4429 = vadd.f32 %v4193, %v4428
        %4430 = vdwg.mxu0
        %4431 = vmatpush.msra.mxu0 %v4093
        %4432 = vmatpush.msra.mxu0 %v4091
        %4433 = vmatpush.msra.mxu0 %v4089
        %4434 = vmatpush.msra.mxu0 %v4087
        %4435 = vmatpush.msra.mxu0 %v4085
        %4436 = vmatpush.msra.mxu0 %v4083
        %4437 = vmatpush.msra.mxu0 %v4081
        %4438 = vmatpush.msra.mxu0 %v4079
        %4439 = vmatpush.msra.mxu0 %v4077
        %4440 = vmatpush.msra.mxu0 %v4075
        %4441 = vmatpush.msra.mxu0 %v4073
        %4442 = vmatpush.msra.mxu0 %v4071
        %4443 = vmatpush.msra.mxu0 %v4069
        %4444 = vmatpush.msra.mxu0 %v4067
        %4445 = vmatpush.msra.mxu0 %v4065
        %4446 = vmatpush.msra.mxu0 %v4063
        %4447 = vmatmul.f32.gmra.mxu0 %v4213
        %v4448 = vpop.f32.mrf.mxu0
        %v4449 = vadd.f32 %v4402, %v4448
        %4450 = vmatmul.f32.gmra.mxu0 %v4226
        %v4451 = vpop.f32.mrf.mxu0
        %v4452 = vadd.f32 %v4405, %v4451
        %4453 = vmatmul.f32.gmra.mxu0 %v4239
        %v4454 = vpop.f32.mrf.mxu0
        %v4455 = vadd.f32 %v4408, %v4454
        %4456 = vmatmul.f32.gmra.mxu0 %v4252
        %v4457 = vpop.f32.mrf.mxu0
        %v4458 = vadd.f32 %v4411, %v4457
        %4459 = vmatmul.f32.gmra.mxu0 %v4265
        %v4460 = vpop.f32.mrf.mxu0
        %v4461 = vadd.f32 %v4414, %v4460
        %4462 = vmatmul.f32.gmra.mxu0 %v4278
        %v4463 = vpop.f32.mrf.mxu0
        %v4464 = vadd.f32 %v4417, %v4463
        %4465 = vmatmul.f32.gmra.mxu0 %v4291
        %v4466 = vpop.f32.mrf.mxu0
        %v4467 = vadd.f32 %v4420, %v4466
        %4468 = vmatmul.f32.gmra.mxu0 %v4304
        %v4469 = vpop.f32.mrf.mxu0
        %v4470 = vadd.f32 %v4423, %v4469
        %4471 = vmatmul.f32.gmra.mxu0 %v4317
        %v4472 = vpop.f32.mrf.mxu0
        %v4473 = vadd.f32 %v4426, %v4472
        %4474 = vmatmul.f32.gmra.mxu0 %v4330
        %v4475 = vpop.f32.mrf.mxu0
        %v4476 = vadd.f32 %v4429, %v4475
        %4477 = vdwg.mxu0
        %4478 = vmatpush.msra.mxu0 %v4125
        %4479 = vmatpush.msra.mxu0 %v4123
        %4480 = vmatpush.msra.mxu0 %v4121
        %4481 = vmatpush.msra.mxu0 %v4119
        %4482 = vmatpush.msra.mxu0 %v4117
        %4483 = vmatpush.msra.mxu0 %v4115
        %4484 = vmatpush.msra.mxu0 %v4113
        %4485 = vmatpush.msra.mxu0 %v4111
        %4486 = vmatpush.msra.mxu0 %v4109
        %4487 = vmatpush.msra.mxu0 %v4107
        %4488 = vmatpush.msra.mxu0 %v4105
        %4489 = vmatpush.msra.mxu0 %v4103
        %4490 = vmatpush.msra.mxu0 %v4101
        %4491 = vmatpush.msra.mxu0 %v4099
        %4492 = vmatpush.msra.mxu0 %v4097
        %4493 = vmatpush.msra.mxu0 %v4095
        %4494 = vmatmul.f32.gmra.mxu0 %v4214
        %v4495 = vpop.f32.mrf.mxu0
        %v4496 = vadd.f32 %v4449, %v4495
        %4497 = vmatmul.f32.gmra.mxu0 %v4227
        %v4498 = vpop.f32.mrf.mxu0
        %v4499 = vadd.f32 %v4452, %v4498
        %4500 = vmatmul.f32.gmra.mxu0 %v4240
        %v4501 = vpop.f32.mrf.mxu0
        %v4502 = vadd.f32 %v4455, %v4501
        %4503 = vmatmul.f32.gmra.mxu0 %v4253
        %v4504 = vpop.f32.mrf.mxu0
        %v4505 = vadd.f32 %v4458, %v4504
        %4506 = vmatmul.f32.gmra.mxu0 %v4266
        %v4507 = vpop.f32.mrf.mxu0
        %v4508 = vadd.f32 %v4461, %v4507
        %4509 = vmatmul.f32.gmra.mxu0 %v4279
        %v4510 = vpop.f32.mrf.mxu0
        %v4511 = vadd.f32 %v4464, %v4510
        %4512 = vmatmul.f32.gmra.mxu0 %v4292
        %v4513 = vpop.f32.mrf.mxu0
        %v4514 = vadd.f32 %v4467, %v4513
        %4515 = vmatmul.f32.gmra.mxu0 %v4305
        %v4516 = vpop.f32.mrf.mxu0
        %v4517 = vadd.f32 %v4470, %v4516
        %4518 = vmatmul.f32.gmra.mxu0 %v4318
        %v4519 = vpop.f32.mrf.mxu0
        %v4520 = vadd.f32 %v4473, %v4519
        %4521 = vmatmul.f32.gmra.mxu0 %v4331
        %v4522 = vpop.f32.mrf.mxu0
        %v4523 = vadd.f32 %v4476, %v4522
        %4524 = vdwg.mxu0
        %4525 = vmatpush.msra.mxu0 %v4157
        %4526 = vmatpush.msra.mxu0 %v4155
        %4527 = vmatpush.msra.mxu0 %v4153
        %4528 = vmatpush.msra.mxu0 %v4151
        %4529 = vmatpush.msra.mxu0 %v4149
        %4530 = vmatpush.msra.mxu0 %v4147
        %4531 = vmatpush.msra.mxu0 %v4145
        %4532 = vmatpush.msra.mxu0 %v4143
        %4533 = vmatpush.msra.mxu0 %v4141
        %4534 = vmatpush.msra.mxu0 %v4139
        %4535 = vmatpush.msra.mxu0 %v4137
        %4536 = vmatpush.msra.mxu0 %v4135
        %4537 = vmatpush.msra.mxu0 %v4133
        %4538 = vmatpush.msra.mxu0 %v4131
        %4539 = vmatpush.msra.mxu0 %v4129
        %4540 = vmatpush.msra.mxu0 %v4127
        %4541 = vmatmul.f32.gmra.mxu0 %v4215
        %v4542 = vpop.f32.mrf.mxu0
        %v4543 = vadd.f32 %v4496, %v4542
        %4544 = vmatmul.f32.gmra.mxu0 %v4228
        %v4545 = vpop.f32.mrf.mxu0
        %v4546 = vadd.f32 %v4499, %v4545
        %4547 = vmatmul.f32.gmra.mxu0 %v4241
        %v4548 = vpop.f32.mrf.mxu0
        %v4549 = vadd.f32 %v4502, %v4548
        %4550 = vmatmul.f32.gmra.mxu0 %v4254
        %v4551 = vpop.f32.mrf.mxu0
        %v4552 = vadd.f32 %v4505, %v4551
        %4553 = vmatmul.f32.gmra.mxu0 %v4267
        %v4554 = vpop.f32.mrf.mxu0
        %v4555 = vadd.f32 %v4508, %v4554
        %4556 = vmatmul.f32.gmra.mxu0 %v4280
        %v4557 = vpop.f32.mrf.mxu0
        %v4558 = vadd.f32 %v4511, %v4557
        %4559 = vmatmul.f32.gmra.mxu0 %v4293
        %v4560 = vpop.f32.mrf.mxu0
        %v4561 = vadd.f32 %v4514, %v4560
        %4562 = vmatmul.f32.gmra.mxu0 %v4306
        %v4563 = vpop.f32.mrf.mxu0
        %v4564 = vadd.f32 %v4517, %v4563
        %4565 = vmatmul.f32.gmra.mxu0 %v4319
        %v4566 = vpop.f32.mrf.mxu0
        %v4567 = vadd.f32 %v4520, %v4566
        %4568 = vmatmul.f32.gmra.mxu0 %v4332
        %v4569 = vpop.f32.mrf.mxu0
        %v4570 = vadd.f32 %v4523, %v4569
        %4571 = vdwg.mxu0
        %4572 = vmatpush.msra.mxu0 %v4189
        %4573 = vmatpush.msra.mxu0 %v4187
        %4574 = vmatpush.msra.mxu0 %v4185
        %4575 = vmatpush.msra.mxu0 %v4183
        %4576 = vmatpush.msra.mxu0 %v4181
        %4577 = vmatpush.msra.mxu0 %v4179
        %4578 = vmatpush.msra.mxu0 %v4177
        %4579 = vmatpush.msra.mxu0 %v4175
        %4580 = vmatpush.msra.mxu0 %v4173
        %4581 = vmatpush.msra.mxu0 %v4171
        %4582 = vmatpush.msra.mxu0 %v4169
        %4583 = vmatpush.msra.mxu0 %v4167
        %4584 = vmatpush.msra.mxu0 %v4165
        %4585 = vmatpush.msra.mxu0 %v4163
        %4586 = vmatpush.msra.mxu0 %v4161
        %4587 = vmatpush.msra.mxu0 %v4159
        %4588 = vmatmul.f32.gmra.mxu0 %v4216
        %v4589 = vpop.f32.mrf.mxu0
        %v4590 = vadd.f32 %v4543, %v4589
        %4591 = vmatmul.f32.gmra.mxu0 %v4229
        %v4592 = vpop.f32.mrf.mxu0
        %v4593 = vadd.f32 %v4546, %v4592
        %4594 = vmatmul.f32.gmra.mxu0 %v4242
        %v4595 = vpop.f32.mrf.mxu0
        %v4596 = vadd.f32 %v4549, %v4595
        %4597 = vmatmul.f32.gmra.mxu0 %v4255
        %v4598 = vpop.f32.mrf.mxu0
        %v4599 = vadd.f32 %v4552, %v4598
        %4600 = vmatmul.f32.gmra.mxu0 %v4268
        %v4601 = vpop.f32.mrf.mxu0
        %v4602 = vadd.f32 %v4555, %v4601
        %4603 = vmatmul.f32.gmra.mxu0 %v4281
        %v4604 = vpop.f32.mrf.mxu0
        %v4605 = vadd.f32 %v4558, %v4604
        %4606 = vmatmul.f32.gmra.mxu0 %v4294
        %v4607 = vpop.f32.mrf.mxu0
        %v4608 = vadd.f32 %v4561, %v4607
        %4609 = vmatmul.f32.gmra.mxu0 %v4307
        %v4610 = vpop.f32.mrf.mxu0
        %v4611 = vadd.f32 %v4564, %v4610
        %4612 = vmatmul.f32.gmra.mxu0 %v4320
        %v4613 = vpop.f32.mrf.mxu0
        %v4614 = vadd.f32 %v4567, %v4613
        %4615 = vmatmul.f32.gmra.mxu0 %v4333
        %v4616 = vpop.f32.mrf.mxu0
        %v4617 = vadd.f32 %v4570, %v4616
        %4618 = vdwg.mxu0
        %4619 = vmatpush.msra.mxu0 %v4062
        %4620 = vmatpush.msra.mxu0 %v4060
        %4621 = vmatpush.msra.mxu0 %v4058
        %4622 = vmatpush.msra.mxu0 %v4056
        %4623 = vmatpush.msra.mxu0 %v4054
        %4624 = vmatpush.msra.mxu0 %v4052
        %4625 = vmatpush.msra.mxu0 %v4050
        %4626 = vmatpush.msra.mxu0 %v4048
        %4627 = vmatpush.msra.mxu0 %v4046
        %4628 = vmatpush.msra.mxu0 %v4044
        %4629 = vmatpush.msra.mxu0 %v4042
        %4630 = vmatpush.msra.mxu0 %v4040
        %4631 = vmatpush.msra.mxu0 %v4038
        %4632 = vmatpush.msra.mxu0 %v4036
        %4633 = vmatpush.msra.mxu0 %v4034
        %4634 = vmatpush.msra.mxu0 %v4032
        %4635 = vmatmul.f32.gmra.mxu0 %v4212
        %v4636 = vpop.f32.mrf.mxu0
        %v4637 = vadd.f32 %v4194, %v4636
        %4638 = vmatmul.f32.gmra.mxu0 %v4225
        %v4639 = vpop.f32.mrf.mxu0
        %v4640 = vadd.f32 %v4194, %v4639
        %4641 = vmatmul.f32.gmra.mxu0 %v4238
        %v4642 = vpop.f32.mrf.mxu0
        %v4643 = vadd.f32 %v4194, %v4642
        %4644 = vmatmul.f32.gmra.mxu0 %v4251
        %v4645 = vpop.f32.mrf.mxu0
        %v4646 = vadd.f32 %v4194, %v4645
        %4647 = vmatmul.f32.gmra.mxu0 %v4264
        %v4648 = vpop.f32.mrf.mxu0
        %v4649 = vadd.f32 %v4194, %v4648
        %4650 = vmatmul.f32.gmra.mxu0 %v4277
        %v4651 = vpop.f32.mrf.mxu0
        %v4652 = vadd.f32 %v4194, %v4651
        %4653 = vmatmul.f32.gmra.mxu0 %v4290
        %v4654 = vpop.f32.mrf.mxu0
        %v4655 = vadd.f32 %v4194, %v4654
        %4656 = vmatmul.f32.gmra.mxu0 %v4303
        %v4657 = vpop.f32.mrf.mxu0
        %v4658 = vadd.f32 %v4194, %v4657
        %4659 = vmatmul.f32.gmra.mxu0 %v4316
        %v4660 = vpop.f32.mrf.mxu0
        %v4661 = vadd.f32 %v4194, %v4660
        %4662 = vmatmul.f32.gmra.mxu0 %v4329
        %v4663 = vpop.f32.mrf.mxu0
        %v4664 = vadd.f32 %v4194, %v4663
        %4665 = vdwg.mxu0
        %4666 = vmatpush.msra.mxu0 %v4094
        %4667 = vmatpush.msra.mxu0 %v4092
        %4668 = vmatpush.msra.mxu0 %v4090
        %4669 = vmatpush.msra.mxu0 %v4088
        %4670 = vmatpush.msra.mxu0 %v4086
        %4671 = vmatpush.msra.mxu0 %v4084
        %4672 = vmatpush.msra.mxu0 %v4082
        %4673 = vmatpush.msra.mxu0 %v4080
        %4674 = vmatpush.msra.mxu0 %v4078
        %4675 = vmatpush.msra.mxu0 %v4076
        %4676 = vmatpush.msra.mxu0 %v4074
        %4677 = vmatpush.msra.mxu0 %v4072
        %4678 = vmatpush.msra.mxu0 %v4070
        %4679 = vmatpush.msra.mxu0 %v4068
        %4680 = vmatpush.msra.mxu0 %v4066
        %4681 = vmatpush.msra.mxu0 %v4064
        %4682 = vmatmul.f32.gmra.mxu0 %v4213
        %v4683 = vpop.f32.mrf.mxu0
        %v4684 = vadd.f32 %v4637, %v4683
        %4685 = vmatmul.f32.gmra.mxu0 %v4226
        %v4686 = vpop.f32.mrf.mxu0
        %v4687 = vadd.f32 %v4640, %v4686
        %4688 = vmatmul.f32.gmra.mxu0 %v4239
        %v4689 = vpop.f32.mrf.mxu0
        %v4690 = vadd.f32 %v4643, %v4689
        %4691 = vmatmul.f32.gmra.mxu0 %v4252
        %v4692 = vpop.f32.mrf.mxu0
        %v4693 = vadd.f32 %v4646, %v4692
        %4694 = vmatmul.f32.gmra.mxu0 %v4265
        %v4695 = vpop.f32.mrf.mxu0
        %v4696 = vadd.f32 %v4649, %v4695
        %4697 = vmatmul.f32.gmra.mxu0 %v4278
        %v4698 = vpop.f32.mrf.mxu0
        %v4699 = vadd.f32 %v4652, %v4698
        %4700 = vmatmul.f32.gmra.mxu0 %v4291
        %v4701 = vpop.f32.mrf.mxu0
        %v4702 = vadd.f32 %v4655, %v4701
        %4703 = vmatmul.f32.gmra.mxu0 %v4304
        %v4704 = vpop.f32.mrf.mxu0
        %v4705 = vadd.f32 %v4658, %v4704
        %4706 = vmatmul.f32.gmra.mxu0 %v4317
        %v4707 = vpop.f32.mrf.mxu0
        %v4708 = vadd.f32 %v4661, %v4707
        %4709 = vmatmul.f32.gmra.mxu0 %v4330
        %v4710 = vpop.f32.mrf.mxu0
        %v4711 = vadd.f32 %v4664, %v4710
        %4712 = vdwg.mxu0
        %4713 = vmatpush.msra.mxu0 %v4126
        %4714 = vmatpush.msra.mxu0 %v4124
        %4715 = vmatpush.msra.mxu0 %v4122
        %4716 = vmatpush.msra.mxu0 %v4120
        %4717 = vmatpush.msra.mxu0 %v4118
        %4718 = vmatpush.msra.mxu0 %v4116
        %4719 = vmatpush.msra.mxu0 %v4114
        %4720 = vmatpush.msra.mxu0 %v4112
        %4721 = vmatpush.msra.mxu0 %v4110
        %4722 = vmatpush.msra.mxu0 %v4108
        %4723 = vmatpush.msra.mxu0 %v4106
        %4724 = vmatpush.msra.mxu0 %v4104
        %4725 = vmatpush.msra.mxu0 %v4102
        %4726 = vmatpush.msra.mxu0 %v4100
        %4727 = vmatpush.msra.mxu0 %v4098
        %4728 = vmatpush.msra.mxu0 %v4096
        %4729 = vmatmul.f32.gmra.mxu0 %v4214
        %v4730 = vpop.f32.mrf.mxu0
        %v4731 = vadd.f32 %v4684, %v4730
        %4732 = vmatmul.f32.gmra.mxu0 %v4227
        %v4733 = vpop.f32.mrf.mxu0
        %v4734 = vadd.f32 %v4687, %v4733
        %4735 = vmatmul.f32.gmra.mxu0 %v4240
        %v4736 = vpop.f32.mrf.mxu0
        %v4737 = vadd.f32 %v4690, %v4736
        %4738 = vmatmul.f32.gmra.mxu0 %v4253
        %v4739 = vpop.f32.mrf.mxu0
        %v4740 = vadd.f32 %v4693, %v4739
        %4741 = vmatmul.f32.gmra.mxu0 %v4266
        %v4742 = vpop.f32.mrf.mxu0
        %v4743 = vadd.f32 %v4696, %v4742
        %4744 = vmatmul.f32.gmra.mxu0 %v4279
        %v4745 = vpop.f32.mrf.mxu0
        %v4746 = vadd.f32 %v4699, %v4745
        %4747 = vmatmul.f32.gmra.mxu0 %v4292
        %v4748 = vpop.f32.mrf.mxu0
        %v4749 = vadd.f32 %v4702, %v4748
        %4750 = vmatmul.f32.gmra.mxu0 %v4305
        %v4751 = vpop.f32.mrf.mxu0
        %v4752 = vadd.f32 %v4705, %v4751
        %4753 = vmatmul.f32.gmra.mxu0 %v4318
        %v4754 = vpop.f32.mrf.mxu0
        %v4755 = vadd.f32 %v4708, %v4754
        %4756 = vmatmul.f32.gmra.mxu0 %v4331
        %v4757 = vpop.f32.mrf.mxu0
        %v4758 = vadd.f32 %v4711, %v4757
        %4759 = vdwg.mxu0
        %4760 = vmatpush.msra.mxu0 %v4158
        %4761 = vmatpush.msra.mxu0 %v4156
        %4762 = vmatpush.msra.mxu0 %v4154
        %4763 = vmatpush.msra.mxu0 %v4152
        %4764 = vmatpush.msra.mxu0 %v4150
        %4765 = vmatpush.msra.mxu0 %v4148
        %4766 = vmatpush.msra.mxu0 %v4146
        %4767 = vmatpush.msra.mxu0 %v4144
        %4768 = vmatpush.msra.mxu0 %v4142
        %4769 = vmatpush.msra.mxu0 %v4140
        %4770 = vmatpush.msra.mxu0 %v4138
        %4771 = vmatpush.msra.mxu0 %v4136
        %4772 = vmatpush.msra.mxu0 %v4134
        %4773 = vmatpush.msra.mxu0 %v4132
        %4774 = vmatpush.msra.mxu0 %v4130
        %4775 = vmatpush.msra.mxu0 %v4128
        %4776 = vmatmul.f32.gmra.mxu0 %v4215
        %v4777 = vpop.f32.mrf.mxu0
        %v4778 = vadd.f32 %v4731, %v4777
        %4779 = vmatmul.f32.gmra.mxu0 %v4228
        %v4780 = vpop.f32.mrf.mxu0
        %v4781 = vadd.f32 %v4734, %v4780
        %4782 = vmatmul.f32.gmra.mxu0 %v4241
        %v4783 = vpop.f32.mrf.mxu0
        %v4784 = vadd.f32 %v4737, %v4783
        %4785 = vmatmul.f32.gmra.mxu0 %v4254
        %v4786 = vpop.f32.mrf.mxu0
        %v4787 = vadd.f32 %v4740, %v4786
        %4788 = vmatmul.f32.gmra.mxu0 %v4267
        %v4789 = vpop.f32.mrf.mxu0
        %v4790 = vadd.f32 %v4743, %v4789
        %4791 = vmatmul.f32.gmra.mxu0 %v4280
        %v4792 = vpop.f32.mrf.mxu0
        %v4793 = vadd.f32 %v4746, %v4792
        %4794 = vmatmul.f32.gmra.mxu0 %v4293
        %v4795 = vpop.f32.mrf.mxu0
        %v4796 = vadd.f32 %v4749, %v4795
        %4797 = vmatmul.f32.gmra.mxu0 %v4306
        %v4798 = vpop.f32.mrf.mxu0
        %v4799 = vadd.f32 %v4752, %v4798
        %4800 = vmatmul.f32.gmra.mxu0 %v4319
        %v4801 = vpop.f32.mrf.mxu0
        %v4802 = vadd.f32 %v4755, %v4801
        %4803 = vmatmul.f32.gmra.mxu0 %v4332
        %v4804 = vpop.f32.mrf.mxu0
        %v4805 = vadd.f32 %v4758, %v4804
        %4806 = vdwg.mxu0
        %4807 = vmatpush.msra.mxu0 %v4190
        %4808 = vmatpush.msra.mxu0 %v4188
        %4809 = vmatpush.msra.mxu0 %v4186
        %4810 = vmatpush.msra.mxu0 %v4184
        %4811 = vmatpush.msra.mxu0 %v4182
        %4812 = vmatpush.msra.mxu0 %v4180
        %4813 = vmatpush.msra.mxu0 %v4178
        %4814 = vmatpush.msra.mxu0 %v4176
        %4815 = vmatpush.msra.mxu0 %v4174
        %4816 = vmatpush.msra.mxu0 %v4172
        %4817 = vmatpush.msra.mxu0 %v4170
        %4818 = vmatpush.msra.mxu0 %v4168
        %4819 = vmatpush.msra.mxu0 %v4166
        %4820 = vmatpush.msra.mxu0 %v4164
        %4821 = vmatpush.msra.mxu0 %v4162
        %4822 = vmatpush.msra.mxu0 %v4160
        %4823 = vmatmul.f32.gmra.mxu0 %v4216
        %v4824 = vpop.f32.mrf.mxu0
        %v4825 = vadd.f32 %v4778, %v4824
        %4826 = vmatmul.f32.gmra.mxu0 %v4229
        %v4827 = vpop.f32.mrf.mxu0
        %v4828 = vadd.f32 %v4781, %v4827
        %4829 = vmatmul.f32.gmra.mxu0 %v4242
        %v4830 = vpop.f32.mrf.mxu0
        %v4831 = vadd.f32 %v4784, %v4830
        %4832 = vmatmul.f32.gmra.mxu0 %v4255
        %v4833 = vpop.f32.mrf.mxu0
        %v4834 = vadd.f32 %v4787, %v4833
        %4835 = vmatmul.f32.gmra.mxu0 %v4268
        %v4836 = vpop.f32.mrf.mxu0
        %v4837 = vadd.f32 %v4790, %v4836
        %4838 = vmatmul.f32.gmra.mxu0 %v4281
        %v4839 = vpop.f32.mrf.mxu0
        %v4840 = vadd.f32 %v4793, %v4839
        %4841 = vmatmul.f32.gmra.mxu0 %v4294
        %v4842 = vpop.f32.mrf.mxu0
        %v4843 = vadd.f32 %v4796, %v4842
        %4844 = vmatmul.f32.gmra.mxu0 %v4307
        %v4845 = vpop.f32.mrf.mxu0
        %v4846 = vadd.f32 %v4799, %v4845
        %4847 = vmatmul.f32.gmra.mxu0 %v4320
        %v4848 = vpop.f32.mrf.mxu0
        %v4849 = vadd.f32 %v4802, %v4848
        %4850 = vmatmul.f32.gmra.mxu0 %v4333
        %v4851 = vpop.f32.mrf.mxu0
        %v4852 = vadd.f32 %v4805, %v4851
        %4853 = vdwg.mxu0
        %v4854 = vmax.f32 %v4590, 0.0
        %v4855 = vmax.f32 %v4825, 0.0
        %v4856 = vmax.f32 %v4593, 0.0
        %v4857 = vmax.f32 %v4828, 0.0
        %v4858 = vmax.f32 %v4596, 0.0
        %v4859 = vmax.f32 %v4831, 0.0
        %v4860 = vmax.f32 %v4599, 0.0
        %v4861 = vmax.f32 %v4834, 0.0
        %v4862 = vmax.f32 %v4602, 0.0
        %v4863 = vmax.f32 %v4837, 0.0
        %v4864 = vmax.f32 %v4605, 0.0
        %v4865 = vmax.f32 %v4840, 0.0
        %v4866 = vmax.f32 %v4608, 0.0
        %v4867 = vmax.f32 %v4843, 0.0
        %v4868 = vmax.f32 %v4611, 0.0
        %v4869 = vmax.f32 %v4846, 0.0
        %v4870 = vmax.f32 %v4614, 0.0
        %v4871 = vmax.f32 %v4849, 0.0
        %v4872 = vmax.f32 %v4617, 0.0
        %v4873 = vmax.f32 %v4852, 0.0
        %v4894 = vrot.slane %v4855, 6
        %v4895 = vrot.slane %v4857, 6
        %v4896 = vrot.slane %v4859, 6
        %v4897 = vrot.slane %v4861, 6
        %v4898 = vrot.slane %v4863, 6
        %v4899 = vrot.slane %v4865, 6
        %v4900 = vrot.slane %v4867, 6
        %v4901 = vrot.slane %v4869, 6
        %v4902 = vrot.slane %v4871, 6
        %v4903 = vrot.slane %v4873, 6
        %v4904 = vsel %vm2056, %v4854, %v4894
        %v4905 = vsel %vm2058, %v4854, %v4894
        %v4906 = vrot.slane %v4905, 2
        %v4907 = vsel %vm2061, %v4854, %v4894
        %v4908 = vrot.slane %v4907, 4
        %v4909 = vsel %vm657, %v4894, %v4854
        %v4910 = vrot.slane %v4909, 6
        %v4911 = vsel %vm2056, %v4856, %v4895
        %v4912 = vsel %vm2058, %v4856, %v4895
        %v4913 = vrot.slane %v4912, 2
        %v4914 = vsel %vm2061, %v4856, %v4895
        %v4915 = vrot.slane %v4914, 4
        %v4916 = vsel %vm657, %v4895, %v4856
        %v4917 = vrot.slane %v4916, 6
        %v4918 = vsel %vm2056, %v4858, %v4896
        %v4919 = vsel %vm2058, %v4858, %v4896
        %v4920 = vrot.slane %v4919, 2
        %v4921 = vsel %vm2061, %v4858, %v4896
        %v4922 = vrot.slane %v4921, 4
        %v4923 = vsel %vm657, %v4896, %v4858
        %v4924 = vrot.slane %v4923, 6
        %v4925 = vsel %vm2056, %v4860, %v4897
        %v4926 = vsel %vm2058, %v4860, %v4897
        %v4927 = vrot.slane %v4926, 2
        %v4928 = vsel %vm2061, %v4860, %v4897
        %v4929 = vrot.slane %v4928, 4
        %v4930 = vsel %vm657, %v4897, %v4860
        %v4931 = vrot.slane %v4930, 6
        %v4932 = vsel %vm2056, %v4862, %v4898
        %v4933 = vsel %vm2058, %v4862, %v4898
        %v4934 = vrot.slane %v4933, 2
        %v4935 = vsel %vm2061, %v4862, %v4898
        %v4936 = vrot.slane %v4935, 4
        %v4937 = vsel %vm657, %v4898, %v4862
        %v4938 = vrot.slane %v4937, 6
        %v4939 = vsel %vm2056, %v4864, %v4899
        %v4940 = vsel %vm2058, %v4864, %v4899
        %v4941 = vrot.slane %v4940, 2
        %v4942 = vsel %vm2061, %v4864, %v4899
        %v4943 = vrot.slane %v4942, 4
        %v4944 = vsel %vm657, %v4899, %v4864
        %v4945 = vrot.slane %v4944, 6
        %v4946 = vsel %vm2056, %v4866, %v4900
        %v4947 = vsel %vm2058, %v4866, %v4900
        %v4948 = vrot.slane %v4947, 2
        %v4949 = vsel %vm2061, %v4866, %v4900
        %v4950 = vrot.slane %v4949, 4
        %v4951 = vsel %vm657, %v4900, %v4866
        %v4952 = vrot.slane %v4951, 6
        %v4953 = vsel %vm2056, %v4868, %v4901
        %v4954 = vsel %vm2058, %v4868, %v4901
        %v4955 = vrot.slane %v4954, 2
        %v4956 = vsel %vm2061, %v4868, %v4901
        %v4957 = vrot.slane %v4956, 4
        %v4958 = vsel %vm657, %v4901, %v4868
        %v4959 = vrot.slane %v4958, 6
        %v4960 = vsel %vm2056, %v4870, %v4902
        %v4961 = vsel %vm2058, %v4870, %v4902
        %v4962 = vrot.slane %v4961, 2
        %v4963 = vsel %vm2061, %v4870, %v4902
        %v4964 = vrot.slane %v4963, 4
        %v4965 = vsel %vm657, %v4902, %v4870
        %v4966 = vrot.slane %v4965, 6
        %v4967 = vsel %vm2056, %v4872, %v4903
        %v4968 = vsel %vm2058, %v4872, %v4903
        %v4969 = vrot.slane %v4968, 2
        %v4970 = vsel %vm2061, %v4872, %v4903
        %v4971 = vrot.slane %v4970, 4
        %v4972 = vsel %vm657, %v4903, %v4872
        %v4973 = vrot.slane %v4972, 6
        %v5014 = vrot.slane %v4904, 7
        %v5015 = vrot.slane %v5014, 2
        %v5016 = vrot.slane %v4906, 7
        %v5017 = vrot.slane %v5016, 2
        %v5018 = vrot.slane %v4908, 7
        %v5019 = vrot.slane %v5018, 2
        %v5020 = vrot.slane %v4910, 7
        %v5021 = vrot.slane %v5020, 2
        %v5022 = vrot.slane %v4911, 7
        %v5023 = vrot.slane %v5022, 2
        %v5024 = vrot.slane %v4913, 7
        %v5025 = vrot.slane %v5024, 2
        %v5026 = vrot.slane %v4915, 7
        %v5027 = vrot.slane %v5026, 2
        %v5028 = vrot.slane %v4917, 7
        %v5029 = vrot.slane %v5028, 2
        %v5030 = vrot.slane %v4918, 7
        %v5031 = vrot.slane %v5030, 2
        %v5032 = vrot.slane %v4920, 7
        %v5033 = vrot.slane %v5032, 2
        %v5034 = vrot.slane %v4922, 7
        %v5035 = vrot.slane %v5034, 2
        %v5036 = vrot.slane %v4924, 7
        %v5037 = vrot.slane %v5036, 2
        %v5038 = vrot.slane %v4925, 7
        %v5039 = vrot.slane %v5038, 2
        %v5040 = vrot.slane %v4927, 7
        %v5041 = vrot.slane %v5040, 2
        %v5042 = vrot.slane %v4929, 7
        %v5043 = vrot.slane %v5042, 2
        %v5044 = vrot.slane %v4931, 7
        %v5045 = vrot.slane %v5044, 2
        %v5046 = vrot.slane %v4932, 7
        %v5047 = vrot.slane %v5046, 2
        %v5048 = vrot.slane %v4934, 7
        %v5049 = vrot.slane %v5048, 2
        %v5050 = vrot.slane %v4936, 7
        %v5051 = vrot.slane %v5050, 2
        %v5052 = vrot.slane %v4938, 7
        %v5053 = vrot.slane %v5052, 2
        %v5054 = vrot.slane %v4939, 7
        %v5055 = vrot.slane %v5054, 2
        %v5056 = vrot.slane %v4941, 7
        %v5057 = vrot.slane %v5056, 2
        %v5058 = vrot.slane %v4943, 7
        %v5059 = vrot.slane %v5058, 2
        %v5060 = vrot.slane %v4945, 7
        %v5061 = vrot.slane %v5060, 2
        %v5062 = vrot.slane %v4946, 7
        %v5063 = vrot.slane %v5062, 2
        %v5064 = vrot.slane %v4948, 7
        %v5065 = vrot.slane %v5064, 2
        %v5066 = vrot.slane %v4950, 7
        %v5067 = vrot.slane %v5066, 2
        %v5068 = vrot.slane %v4952, 7
        %v5069 = vrot.slane %v5068, 2
        %v5070 = vrot.slane %v4953, 7
        %v5071 = vrot.slane %v5070, 2
        %v5072 = vrot.slane %v4955, 7
        %v5073 = vrot.slane %v5072, 2
        %v5074 = vrot.slane %v4957, 7
        %v5075 = vrot.slane %v5074, 2
        %v5076 = vrot.slane %v4959, 7
        %v5077 = vrot.slane %v5076, 2
        %v5078 = vrot.slane %v4960, 7
        %v5079 = vrot.slane %v5078, 2
        %v5080 = vrot.slane %v4962, 7
        %v5081 = vrot.slane %v5080, 2
        %v5082 = vrot.slane %v4964, 7
        %v5083 = vrot.slane %v5082, 2
        %v5084 = vrot.slane %v4966, 7
        %v5085 = vrot.slane %v5084, 2
        %v5086 = vrot.slane %v4967, 7
        %v5087 = vrot.slane %v5086, 2
        %v5088 = vrot.slane %v4969, 7
        %v5089 = vrot.slane %v5088, 2
        %v5090 = vrot.slane %v4971, 7
        %v5091 = vrot.slane %v5090, 2
        %v5092 = vrot.slane %v4973, 7
        %v5093 = vrot.slane %v5092, 2
        %v5134 = vmax.f32 %v4904, %v5015
        %v5135 = vmax.f32 %v4906, %v5017
        %v5136 = vmax.f32 %v4908, %v5019
        %v5137 = vmax.f32 %v4910, %v5021
        %v5138 = vmax.f32 %v4911, %v5023
        %v5139 = vmax.f32 %v4913, %v5025
        %v5140 = vmax.f32 %v4915, %v5027
        %v5141 = vmax.f32 %v4917, %v5029
        %v5142 = vmax.f32 %v4918, %v5031
        %v5143 = vmax.f32 %v4920, %v5033
        %v5144 = vmax.f32 %v4922, %v5035
        %v5145 = vmax.f32 %v4924, %v5037
        %v5146 = vmax.f32 %v4925, %v5039
        %v5147 = vmax.f32 %v4927, %v5041
        %v5148 = vmax.f32 %v4929, %v5043
        %v5149 = vmax.f32 %v4931, %v5045
        %v5150 = vmax.f32 %v4932, %v5047
        %v5151 = vmax.f32 %v4934, %v5049
        %v5152 = vmax.f32 %v4936, %v5051
        %v5153 = vmax.f32 %v4938, %v5053
        %v5154 = vmax.f32 %v4939, %v5055
        %v5155 = vmax.f32 %v4941, %v5057
        %v5156 = vmax.f32 %v4943, %v5059
        %v5157 = vmax.f32 %v4945, %v5061
        %v5158 = vmax.f32 %v4946, %v5063
        %v5159 = vmax.f32 %v4948, %v5065
        %v5160 = vmax.f32 %v4950, %v5067
        %v5161 = vmax.f32 %v4952, %v5069
        %v5162 = vmax.f32 %v4953, %v5071
        %v5163 = vmax.f32 %v4955, %v5073
        %v5164 = vmax.f32 %v4957, %v5075
        %v5165 = vmax.f32 %v4959, %v5077
        %v5166 = vmax.f32 %v4960, %v5079
        %v5167 = vmax.f32 %v4962, %v5081
        %v5168 = vmax.f32 %v4964, %v5083
        %v5169 = vmax.f32 %v4966, %v5085
        %v5170 = vmax.f32 %v4967, %v5087
        %v5171 = vmax.f32 %v4969, %v5089
        %v5172 = vmax.f32 %v4971, %v5091
        %v5173 = vmax.f32 %v4973, %v5093
        %v5214 = vrot.slane %v5134, 2
        %v5215 = vrot.slane %v5135, 2
        %v5216 = vrot.slane %v5136, 2
        %v5217 = vrot.slane %v5137, 2
        %v5218 = vrot.slane %v5138, 2
        %v5219 = vrot.slane %v5139, 2
        %v5220 = vrot.slane %v5140, 2
        %v5221 = vrot.slane %v5141, 2
        %v5222 = vrot.slane %v5142, 2
        %v5223 = vrot.slane %v5143, 2
        %v5224 = vrot.slane %v5144, 2
        %v5225 = vrot.slane %v5145, 2
        %v5226 = vrot.slane %v5146, 2
        %v5227 = vrot.slane %v5147, 2
        %v5228 = vrot.slane %v5148, 2
        %v5229 = vrot.slane %v5149, 2
        %v5230 = vrot.slane %v5150, 2
        %v5231 = vrot.slane %v5151, 2
        %v5232 = vrot.slane %v5152, 2
        %v5233 = vrot.slane %v5153, 2
        %v5234 = vrot.slane %v5154, 2
        %v5235 = vrot.slane %v5155, 2
        %v5236 = vrot.slane %v5156, 2
        %v5237 = vrot.slane %v5157, 2
        %v5238 = vrot.slane %v5158, 2
        %v5239 = vrot.slane %v5159, 2
        %v5240 = vrot.slane %v5160, 2
        %v5241 = vrot.slane %v5161, 2
        %v5242 = vrot.slane %v5162, 2
        %v5243 = vrot.slane %v5163, 2
        %v5244 = vrot.slane %v5164, 2
        %v5245 = vrot.slane %v5165, 2
        %v5246 = vrot.slane %v5166, 2
        %v5247 = vrot.slane %v5167, 2
        %v5248 = vrot.slane %v5168, 2
        %v5249 = vrot.slane %v5169, 2
        %v5250 = vrot.slane %v5170, 2
        %v5251 = vrot.slane %v5171, 2
        %v5252 = vrot.slane %v5172, 2
        %v5253 = vrot.slane %v5173, 2
        %v5294 = vmax.f32 %v5134, %v5214
        %v5295 = vmax.f32 %v5135, %v5215
        %v5296 = vmax.f32 %v5136, %v5216
        %v5297 = vmax.f32 %v5137, %v5217
        %v5298 = vmax.f32 %v5138, %v5218
        %v5299 = vmax.f32 %v5139, %v5219
        %v5300 = vmax.f32 %v5140, %v5220
        %v5301 = vmax.f32 %v5141, %v5221
        %v5302 = vmax.f32 %v5142, %v5222
        %v5303 = vmax.f32 %v5143, %v5223
        %v5304 = vmax.f32 %v5144, %v5224
        %v5305 = vmax.f32 %v5145, %v5225
        %v5306 = vmax.f32 %v5146, %v5226
        %v5307 = vmax.f32 %v5147, %v5227
        %v5308 = vmax.f32 %v5148, %v5228
        %v5309 = vmax.f32 %v5149, %v5229
        %v5310 = vmax.f32 %v5150, %v5230
        %v5311 = vmax.f32 %v5151, %v5231
        %v5312 = vmax.f32 %v5152, %v5232
        %v5313 = vmax.f32 %v5153, %v5233
        %v5314 = vmax.f32 %v5154, %v5234
        %v5315 = vmax.f32 %v5155, %v5235
        %v5316 = vmax.f32 %v5156, %v5236
        %v5317 = vmax.f32 %v5157, %v5237
        %v5318 = vmax.f32 %v5158, %v5238
        %v5319 = vmax.f32 %v5159, %v5239
        %v5320 = vmax.f32 %v5160, %v5240
        %v5321 = vmax.f32 %v5161, %v5241
        %v5322 = vmax.f32 %v5162, %v5242
        %v5323 = vmax.f32 %v5163, %v5243
        %v5324 = vmax.f32 %v5164, %v5244
        %v5325 = vmax.f32 %v5165, %v5245
        %v5326 = vmax.f32 %v5166, %v5246
        %v5327 = vmax.f32 %v5167, %v5247
        %v5328 = vmax.f32 %v5168, %v5248
        %v5329 = vmax.f32 %v5169, %v5249
        %v5330 = vmax.f32 %v5170, %v5250
        %v5331 = vmax.f32 %v5171, %v5251
        %v5332 = vmax.f32 %v5172, %v5252
        %v5333 = vmax.f32 %v5173, %v5253
        %v5334 = vld [vmem:[%s5] sm:$0xff]
        %v5335 = vld [vmem:[%s5 + $0x8] sm:$0xff]
        %v5336 = vld [vmem:[%s5 + $0x10] sm:$0xff]
        %v5337 = vld [vmem:[%s5 + $0x18] sm:$0xff]
        %v5338 = vld [vmem:[%s5 + $0x20] sm:$0xff]
        %v5339 = vld [vmem:[%s5 + $0x28] sm:$0xff]
        %v5340 = vld [vmem:[%s5 + $0x30] sm:$0xff]
        %v5341 = vld [vmem:[%s5 + $0x38] sm:$0xff]
        %v5342 = vld [vmem:[%s5 + $0x40] sm:$0xff]
        %v5343 = vld [vmem:[%s5 + $0x48] sm:$0xff]
        %v5344 = vld [vmem:[%s5 + $0x50] sm:$0xff]
        %v5345 = vld [vmem:[%s5 + $0x58] sm:$0xff]
        %v5346 = vld [vmem:[%s5 + $0x60] sm:$0xff]
        %v5347 = vld [vmem:[%s5 + $0x68] sm:$0xff]
        %v5348 = vld [vmem:[%s5 + $0x70] sm:$0xff]
        %v5349 = vld [vmem:[%s5 + $0x78] sm:$0xff]
        %s5350 = scalar_lea.vmem %s5, 128
        %v5351 = vld [vmem:[%s5350] sm:$0xff]
        %v5352 = vld [vmem:[%s5350 + $0x8] sm:$0xff]
        %v5353 = vld [vmem:[%s5350 + $0x10] sm:$0xff]
        %v5354 = vld [vmem:[%s5350 + $0x18] sm:$0xff]
        %v5355 = vld [vmem:[%s5350 + $0x20] sm:$0xff]
        %v5356 = vld [vmem:[%s5350 + $0x28] sm:$0xff]
        %v5357 = vld [vmem:[%s5350 + $0x30] sm:$0xff]
        %v5358 = vld [vmem:[%s5350 + $0x38] sm:$0xff]
        %v5359 = vld [vmem:[%s5350 + $0x40] sm:$0xff]
        %v5360 = vld [vmem:[%s5350 + $0x48] sm:$0xff]
        %v5361 = vld [vmem:[%s5350 + $0x50] sm:$0xff]
        %v5362 = vld [vmem:[%s5350 + $0x58] sm:$0xff]
        %v5363 = vld [vmem:[%s5350 + $0x60] sm:$0xff]
        %v5364 = vld [vmem:[%s5350 + $0x68] sm:$0xff]
        %v5365 = vld [vmem:[%s5350 + $0x70] sm:$0xff]
        %v5366 = vld [vmem:[%s5350 + $0x78] sm:$0xff]
        %v5375 = vperm.slane %v5295, 0
        %v5376 = vperm.slane %v5300, 0
        %v5377 = vperm.slane %v5305, 0
        %v5378 = vperm.slane %v5310, 0
        %v5379 = vperm.slane %v5315, 0
        %v5380 = vperm.slane %v5320, 0
        %v5381 = vperm.slane %v5325, 0
        %v5382 = vperm.slane %v5330, 0
        %v5383 = vsel %vm3423, %v5376, %v5375
        %v5384 = vsel %vm3425, %v5377, %v5383
        %v5385 = vsel %vm3427, %v5378, %v5384
        %v5386 = vsel %vm3429, %v5379, %v5385
        %v5387 = vsel %vm3431, %v5380, %v5386
        %v5388 = vsel %vm3433, %v5381, %v5387
        %v5389 = vsel %vm3435, %v5382, %v5388
        %5391 = vmatpush.msra.mxu0 %v5366
        %5392 = vmatpush.msra.mxu0 %v5365
        %5393 = vmatpush.msra.mxu0 %v5364
        %5394 = vmatpush.msra.mxu0 %v5363
        %5395 = vmatpush.msra.mxu0 %v5362
        %5396 = vmatpush.msra.mxu0 %v5361
        %5397 = vmatpush.msra.mxu0 %v5360
        %5398 = vmatpush.msra.mxu0 %v5359
        %5399 = vmatpush.msra.mxu0 %v5358
        %5400 = vmatpush.msra.mxu0 %v5357
        %5401 = vmatpush.msra.mxu0 %v5356
        %5402 = vmatpush.msra.mxu0 %v5355
        %5403 = vmatpush.msra.mxu0 %v5354
        %5404 = vmatpush.msra.mxu0 %v5353
        %5405 = vmatpush.msra.mxu0 %v5352
        %5406 = vmatpush.msra.mxu0 %v5351
        %5407 = vmatmul.f32.gmra.mxu0 %v5389
        %v5408 = vpop.f32.mrf.mxu0
        %v5409 = vadd.f32 0.0, %v5408
        %5410 = vdwg.mxu0
        %v5419 = vperm.slane %v5294, 0
        %v5420 = vperm.slane %v5299, 0
        %v5421 = vperm.slane %v5304, 0
        %v5422 = vperm.slane %v5309, 0
        %v5423 = vperm.slane %v5314, 0
        %v5424 = vperm.slane %v5319, 0
        %v5425 = vperm.slane %v5324, 0
        %v5426 = vperm.slane %v5329, 0
        %v5427 = vsel %vm3423, %v5420, %v5419
        %v5428 = vsel %vm3425, %v5421, %v5427
        %v5429 = vsel %vm3427, %v5422, %v5428
        %v5430 = vsel %vm3429, %v5423, %v5429
        %v5431 = vsel %vm3431, %v5424, %v5430
        %v5432 = vsel %vm3433, %v5425, %v5431
        %v5433 = vsel %vm3435, %v5426, %v5432
        %5435 = vmatpush.msra.mxu0 %v5349
        %5436 = vmatpush.msra.mxu0 %v5348
        %5437 = vmatpush.msra.mxu0 %v5347
        %5438 = vmatpush.msra.mxu0 %v5346
        %5439 = vmatpush.msra.mxu0 %v5345
        %5440 = vmatpush.msra.mxu0 %v5344
        %5441 = vmatpush.msra.mxu0 %v5343
        %5442 = vmatpush.msra.mxu0 %v5342
        %5443 = vmatpush.msra.mxu0 %v5341
        %5444 = vmatpush.msra.mxu0 %v5340
        %5445 = vmatpush.msra.mxu0 %v5339
        %5446 = vmatpush.msra.mxu0 %v5338
        %5447 = vmatpush.msra.mxu0 %v5337
        %5448 = vmatpush.msra.mxu0 %v5336
        %5449 = vmatpush.msra.mxu0 %v5335
        %5450 = vmatpush.msra.mxu0 %v5334
        %5451 = vmatmul.f32.gmra.mxu0 %v5433
        %v5452 = vpop.f32.mrf.mxu0
        %v5453 = vadd.f32 %v5409, %v5452
        %5454 = vdwg.mxu0
        %s5455 = scalar_lea.vmem %s5, 256
        %v5456 = vld [vmem:[%s5455] sm:$0xff]
        %v5457 = vld [vmem:[%s5455 + $0x8] sm:$0xff]
        %v5458 = vld [vmem:[%s5455 + $0x10] sm:$0xff]
        %v5459 = vld [vmem:[%s5455 + $0x18] sm:$0xff]
        %v5460 = vld [vmem:[%s5455 + $0x20] sm:$0xff]
        %v5461 = vld [vmem:[%s5455 + $0x28] sm:$0xff]
        %v5462 = vld [vmem:[%s5455 + $0x30] sm:$0xff]
        %v5463 = vld [vmem:[%s5455 + $0x38] sm:$0xff]
        %v5464 = vld [vmem:[%s5455 + $0x40] sm:$0xff]
        %v5465 = vld [vmem:[%s5455 + $0x48] sm:$0xff]
        %v5466 = vld [vmem:[%s5455 + $0x50] sm:$0xff]
        %v5467 = vld [vmem:[%s5455 + $0x58] sm:$0xff]
        %v5468 = vld [vmem:[%s5455 + $0x60] sm:$0xff]
        %v5469 = vld [vmem:[%s5455 + $0x68] sm:$0xff]
        %v5470 = vld [vmem:[%s5455 + $0x70] sm:$0xff]
        %v5471 = vld [vmem:[%s5455 + $0x78] sm:$0xff]
        %v5480 = vperm.slane %v5296, 0
        %v5481 = vperm.slane %v5301, 0
        %v5482 = vperm.slane %v5306, 0
        %v5483 = vperm.slane %v5311, 0
        %v5484 = vperm.slane %v5316, 0
        %v5485 = vperm.slane %v5321, 0
        %v5486 = vperm.slane %v5326, 0
        %v5487 = vperm.slane %v5331, 0
        %v5488 = vsel %vm3423, %v5481, %v5480
        %v5489 = vsel %vm3425, %v5482, %v5488
        %v5490 = vsel %vm3427, %v5483, %v5489
        %v5491 = vsel %vm3429, %v5484, %v5490
        %v5492 = vsel %vm3431, %v5485, %v5491
        %v5493 = vsel %vm3433, %v5486, %v5492
        %v5494 = vsel %vm3435, %v5487, %v5493
        %5496 = vmatpush.msra.mxu0 %v5471
        %5497 = vmatpush.msra.mxu0 %v5470
        %5498 = vmatpush.msra.mxu0 %v5469
        %5499 = vmatpush.msra.mxu0 %v5468
        %5500 = vmatpush.msra.mxu0 %v5467
        %5501 = vmatpush.msra.mxu0 %v5466
        %5502 = vmatpush.msra.mxu0 %v5465
        %5503 = vmatpush.msra.mxu0 %v5464
        %5504 = vmatpush.msra.mxu0 %v5463
        %5505 = vmatpush.msra.mxu0 %v5462
        %5506 = vmatpush.msra.mxu0 %v5461
        %5507 = vmatpush.msra.mxu0 %v5460
        %5508 = vmatpush.msra.mxu0 %v5459
        %5509 = vmatpush.msra.mxu0 %v5458
        %5510 = vmatpush.msra.mxu0 %v5457
        %5511 = vmatpush.msra.mxu0 %v5456
        %5512 = vmatmul.f32.gmra.mxu0 %v5494
        %v5513 = vpop.f32.mrf.mxu0
        %v5514 = vadd.f32 0.0, %v5513
        %5515 = vdwg.mxu0
        %v5516 = vadd.f32 %v5453, %v5514
        %s5517 = scalar_lea.vmem %s5, 384
        %v5518 = vld [vmem:[%s5517] sm:$0xff]
        %v5519 = vld [vmem:[%s5517 + $0x8] sm:$0xff]
        %v5520 = vld [vmem:[%s5517 + $0x10] sm:$0xff]
        %v5521 = vld [vmem:[%s5517 + $0x18] sm:$0xff]
        %v5522 = vld [vmem:[%s5517 + $0x20] sm:$0xff]
        %v5523 = vld [vmem:[%s5517 + $0x28] sm:$0xff]
        %v5524 = vld [vmem:[%s5517 + $0x30] sm:$0xff]
        %v5525 = vld [vmem:[%s5517 + $0x38] sm:$0xff]
        %v5526 = vld [vmem:[%s5517 + $0x40] sm:$0xff]
        %v5527 = vld [vmem:[%s5517 + $0x48] sm:$0xff]
        %v5528 = vld [vmem:[%s5517 + $0x50] sm:$0xff]
        %v5529 = vld [vmem:[%s5517 + $0x58] sm:$0xff]
        %v5530 = vld [vmem:[%s5517 + $0x60] sm:$0xff]
        %v5531 = vld [vmem:[%s5517 + $0x68] sm:$0xff]
        %v5532 = vld [vmem:[%s5517 + $0x70] sm:$0xff]
        %v5533 = vld [vmem:[%s5517 + $0x78] sm:$0xff]
        %v5542 = vperm.slane %v5297, 0
        %v5543 = vperm.slane %v5302, 0
        %v5544 = vperm.slane %v5307, 0
        %v5545 = vperm.slane %v5312, 0
        %v5546 = vperm.slane %v5317, 0
        %v5547 = vperm.slane %v5322, 0
        %v5548 = vperm.slane %v5327, 0
        %v5549 = vperm.slane %v5332, 0
        %v5550 = vsel %vm3423, %v5543, %v5542
        %v5551 = vsel %vm3425, %v5544, %v5550
        %v5552 = vsel %vm3427, %v5545, %v5551
        %v5553 = vsel %vm3429, %v5546, %v5552
        %v5554 = vsel %vm3431, %v5547, %v5553
        %v5555 = vsel %vm3433, %v5548, %v5554
        %v5556 = vsel %vm3435, %v5549, %v5555
        %5558 = vmatpush.msra.mxu0 %v5533
        %5559 = vmatpush.msra.mxu0 %v5532
        %5560 = vmatpush.msra.mxu0 %v5531
        %5561 = vmatpush.msra.mxu0 %v5530
        %5562 = vmatpush.msra.mxu0 %v5529
        %5563 = vmatpush.msra.mxu0 %v5528
        %5564 = vmatpush.msra.mxu0 %v5527
        %5565 = vmatpush.msra.mxu0 %v5526
        %5566 = vmatpush.msra.mxu0 %v5525
        %5567 = vmatpush.msra.mxu0 %v5524
        %5568 = vmatpush.msra.mxu0 %v5523
        %5569 = vmatpush.msra.mxu0 %v5522
        %5570 = vmatpush.msra.mxu0 %v5521
        %5571 = vmatpush.msra.mxu0 %v5520
        %5572 = vmatpush.msra.mxu0 %v5519
        %5573 = vmatpush.msra.mxu0 %v5518
        %5574 = vmatmul.f32.gmra.mxu0 %v5556
        %v5575 = vpop.f32.mrf.mxu0
        %v5576 = vadd.f32 0.0, %v5575
        %5577 = vdwg.mxu0
        %v5578 = vadd.f32 %v5516, %v5576
        %s5579 = scalar_lea.vmem %s5, 512
        %v5580 = vld [vmem:[%s5579] sm:$0xff]
        %v5581 = vld [vmem:[%s5579 + $0x8] sm:$0xff]
        %v5582 = vld [vmem:[%s5579 + $0x10] sm:$0xff]
        %v5583 = vld [vmem:[%s5579 + $0x18] sm:$0xff]
        %v5584 = vld [vmem:[%s5579 + $0x20] sm:$0xff]
        %v5585 = vld [vmem:[%s5579 + $0x28] sm:$0xff]
        %v5586 = vld [vmem:[%s5579 + $0x30] sm:$0xff]
        %v5587 = vld [vmem:[%s5579 + $0x38] sm:$0xff]
        %v5588 = vld [vmem:[%s5579 + $0x40] sm:$0xff]
        %v5589 = vld [vmem:[%s5579 + $0x48] sm:$0xff]
        %v5590 = vld [vmem:[%s5579 + $0x50] sm:$0xff]
        %v5591 = vld [vmem:[%s5579 + $0x58] sm:$0xff]
        %v5592 = vld [vmem:[%s5579 + $0x60] sm:$0xff]
        %v5593 = vld [vmem:[%s5579 + $0x68] sm:$0xff]
        %v5594 = vld [vmem:[%s5579 + $0x70] sm:$0xff]
        %v5595 = vld [vmem:[%s5579 + $0x78] sm:$0xff]
        %v5604 = vperm.slane %v5298, 0
        %v5605 = vperm.slane %v5303, 0
        %v5606 = vperm.slane %v5308, 0
        %v5607 = vperm.slane %v5313, 0
        %v5608 = vperm.slane %v5318, 0
        %v5609 = vperm.slane %v5323, 0
        %v5610 = vperm.slane %v5328, 0
        %v5611 = vperm.slane %v5333, 0
        %v5612 = vsel %vm3423, %v5605, %v5604
        %v5613 = vsel %vm3425, %v5606, %v5612
        %v5614 = vsel %vm3427, %v5607, %v5613
        %v5615 = vsel %vm3429, %v5608, %v5614
        %v5616 = vsel %vm3431, %v5609, %v5615
        %v5617 = vsel %vm3433, %v5610, %v5616
        %v5618 = vsel %vm3435, %v5611, %v5617
        %5620 = vmatpush.msra.mxu0 %v5595
        %5621 = vmatpush.msra.mxu0 %v5594
        %5622 = vmatpush.msra.mxu0 %v5593
        %5623 = vmatpush.msra.mxu0 %v5592
        %5624 = vmatpush.msra.mxu0 %v5591
        %5625 = vmatpush.msra.mxu0 %v5590
        %5626 = vmatpush.msra.mxu0 %v5589
        %5627 = vmatpush.msra.mxu0 %v5588
        %5628 = vmatpush.msra.mxu0 %v5587
        %5629 = vmatpush.msra.mxu0 %v5586
        %5630 = vmatpush.msra.mxu0 %v5585
        %5631 = vmatpush.msra.mxu0 %v5584
        %5632 = vmatpush.msra.mxu0 %v5583
        %5633 = vmatpush.msra.mxu0 %v5582
        %5634 = vmatpush.msra.mxu0 %v5581
        %5635 = vmatpush.msra.mxu0 %v5580
        %5636 = vmatmul.f32.gmra.mxu0 %v5618
        %v5637 = vpop.f32.mrf.mxu0
        %v5638 = vadd.f32 0.0, %v5637
        %5639 = vdwg.mxu0
        %v5640 = vadd.f32 %v5578, %v5638
        %v5641 = vld [vmem:[%s6] sm:$0x1]
        %v5643 = vperm.slane %v5641, 0
        %v5645 = vadd.f32 %v5640, %v5643
        %v5646 = vmax.f32 %v5645, 0.0
        %v5647 = vld [vmem:[#allocation5] sm:$0xff]
        %v5648 = vld [vmem:[#allocation5 + $0x8] sm:$0xff]
        %v5649 = vld [vmem:[#allocation5 + $0x10] sm:$0xff]
        %v5650 = vld [vmem:[#allocation5 + $0x18] sm:$0xff]
        %v5651 = vld [vmem:[#allocation5 + $0x20] sm:$0xff]
        %v5652 = vld [vmem:[#allocation5 + $0x28] sm:$0xff]
        %v5653 = vld [vmem:[#allocation5 + $0x30] sm:$0xff]
        %v5654 = vld [vmem:[#allocation5 + $0x38] sm:$0xff]
        %v5655 = vld [vmem:[#allocation5 + $0x40] sm:$0xff]
        %v5656 = vld [vmem:[#allocation5 + $0x48] sm:$0xff]
        %v5657 = vld [vmem:[#allocation5 + $0x50] sm:$0xff]
        %v5658 = vld [vmem:[#allocation5 + $0x58] sm:$0xff]
        %v5659 = vld [vmem:[#allocation5 + $0x60] sm:$0xff]
        %v5660 = vld [vmem:[#allocation5 + $0x68] sm:$0xff]
        %v5661 = vld [vmem:[#allocation5 + $0x70] sm:$0xff]
        %v5662 = vld [vmem:[#allocation5 + $0x78] sm:$0xff]
        %v5663 = vld [vmem:[%s8] sm:$0x1]
        %v5665 = vperm.slane %v5663, 0
        %5667 = vmatpush.msra.mxu0 %v5662
        %5668 = vmatpush.msra.mxu0 %v5661
        %5669 = vmatpush.msra.mxu0 %v5660
        %5670 = vmatpush.msra.mxu0 %v5659
        %5671 = vmatpush.msra.mxu0 %v5658
        %5672 = vmatpush.msra.mxu0 %v5657
        %5673 = vmatpush.msra.mxu0 %v5656
        %5674 = vmatpush.msra.mxu0 %v5655
        %5675 = vmatpush.msra.mxu0 %v5654
        %5676 = vmatpush.msra.mxu0 %v5653
        %5677 = vmatpush.msra.mxu0 %v5652
        %5678 = vmatpush.msra.mxu0 %v5651
        %5679 = vmatpush.msra.mxu0 %v5650
        %5680 = vmatpush.msra.mxu0 %v5649
        %5681 = vmatpush.msra.mxu0 %v5648
        %5682 = vmatpush.msra.mxu0 %v5647
        %5683 = vmatmul.f32.gmra.mxu0 %v5646
        %v5684 = vpop.f32.mrf.mxu0
        %v5685 = vadd.f32 %v5665, %v5684
        %5686 = vdwg.mxu0
        %v5687 = vmax.f32 %v5685, 0.0
        %v5688 = vld [vmem:[#allocation7] sm:$0xff]
        %v5689 = vld [vmem:[#allocation7 + $0x8] sm:$0xff]
        %v5690 = vld [vmem:[#allocation7 + $0x10] sm:$0xff]
        %v5691 = vld [vmem:[#allocation7 + $0x18] sm:$0xff]
        %v5692 = vld [vmem:[#allocation7 + $0x20] sm:$0xff]
        %v5693 = vld [vmem:[#allocation7 + $0x28] sm:$0xff]
        %v5694 = vld [vmem:[#allocation7 + $0x30] sm:$0xff]
        %v5695 = vld [vmem:[#allocation7 + $0x38] sm:$0xff]
        %v5696 = vld [vmem:[#allocation7 + $0x40] sm:$0xff]
        %v5697 = vld [vmem:[#allocation7 + $0x48] sm:$0xff]
        %v5698 = vld [vmem:[#allocation7 + $0x50] sm:$0xff]
        %v5699 = vld [vmem:[#allocation7 + $0x58] sm:$0xff]
        %v5700 = vld [vmem:[#allocation7 + $0x60] sm:$0xff]
        %v5701 = vld [vmem:[#allocation7 + $0x68] sm:$0xff]
        %v5702 = vld [vmem:[#allocation7 + $0x70] sm:$0xff]
        %v5703 = vld [vmem:[#allocation7 + $0x78] sm:$0xff]
        %v5704 = vld [vmem:[%s10] sm:$0x1]
        %v5706 = vperm.slane %v5704, 0
        %5708 = vmatpush.msra.mxu0 %v5703
        %5709 = vmatpush.msra.mxu0 %v5702
        %5710 = vmatpush.msra.mxu0 %v5701
        %5711 = vmatpush.msra.mxu0 %v5700
        %5712 = vmatpush.msra.mxu0 %v5699
        %5713 = vmatpush.msra.mxu0 %v5698
        %5714 = vmatpush.msra.mxu0 %v5697
        %5715 = vmatpush.msra.mxu0 %v5696
        %5716 = vmatpush.msra.mxu0 %v5695
        %5717 = vmatpush.msra.mxu0 %v5694
        %5718 = vmatpush.msra.mxu0 %v5693
        %5719 = vmatpush.msra.mxu0 %v5692
        %5720 = vmatpush.msra.mxu0 %v5691
        %5721 = vmatpush.msra.mxu0 %v5690
        %5722 = vmatpush.msra.mxu0 %v5689
        %5723 = vmatpush.msra.mxu0 %v5688
        %5724 = vmatmul.f32.gmra.mxu0 %v5687
        %v5725 = vpop.f32.mrf.mxu0
        %v5726 = vadd.f32 %v5706, %v5725
        %5727 = vdwg.mxu0
        %5728 = vst [vmem:[%s432] sm:$0xff] %v5726
        %s5729 = sand.u32 %s271, 1
        %s5730 = scalar_lea.sflag [#allocation4], %s5729
        %s5731 = sand.u32 %s271, 1
        %s5732 = smul.addr %s5731, 8
        %s5733 = scalar_lea.vmem [#allocation8], %s5732
        // Predicated region
        $region77: #{lenet5_forward.1} parent=63 // pred_check
          %p5734 = pneg %p281
        $region78: #{lenet5_forward.1} parent=63 // pred_check_branch
          %5736 = sbr.rel (%p5734) target = $region80
        $region79: #{lenet5_forward.1} parent=63 // pred_region
          %5738 = vsyncadd %s5730, 0
          %s5739 = smul.addr %s27, 8
          %s5740 = scalar_lea.hbm %s11, %s5739
          %s5742 = sshll.u32 %s5733, 4
          %s5743 = int_to_ptr.vmem [resolvable:$true] %s5742
          %s5744 = sshll.u32 %s5740, 4
          %s5745 = int_to_ptr.hbm [resolvable:$true] %s5744
          %5747 = dma.vmem_to_hbm [thread:$0]  %s5743, 128, %s5745, %s5730
        $region80: #{lenet5_forward.1} parent=63 // pred_fallthru
          _
      $region64: #{lenet5_forward.1} parent=5 // pred_fallthru
        _
      %p5748 = scmp.le.s32.totalorder 2, %s22
      // Predicated region
      $region81: #{lenet5_forward.1} parent=5 // pred_check
        %p5749 = pneg %p5748
      $region82: #{lenet5_forward.1} parent=5 // pred_check_branch
        %5751 = sbr.rel (%p5749) target = $region84
      $region83: #{lenet5_forward.1} parent=5 // pred_region
        %s5752 = ssub.s32 %s22, 2
        // Predicated region
        $region85: #{lenet5_forward.1} parent=83 // pred_check
          %p5753 = pneg %p287
        $region86: #{lenet5_forward.1} parent=83 // pred_check_branch
          %5755 = sbr.rel (%p5753) target = $region88
        $region87: #{lenet5_forward.1} parent=83 // pred_region
          %s5756 = sand.u32 %s272, 1
          %s5757 = scalar_lea.sflag [#allocation4], %s5756
          %s5758 = sand.u32 %s272, 1
          %s5759 = smul.addr %s5758, 8
          %s5760 = scalar_lea.vmem [#allocation8], %s5759
          %5762 = dma.done %s5757, 128
        $region88: #{lenet5_forward.1} parent=83 // pred_fallthru
          _
      $region84: #{lenet5_forward.1} parent=5 // pred_fallthru
        _
    $region6: #{lenet5_forward.1} parent=1 // loop_footer
      %s26 = sadd.s32 1, %s22
    $region7: #{lenet5_forward.1} parent=1 // loop_footer_branch
      %21 = sbr.rel target = $region3
    $region8: #{lenet5_forward.1} parent=1 // loop_exit
      _
    %5763 = vsyncpa [#allocation3], 1
    %s5764 = scalar_lea.sflag [#allocation3], 1
    %5765 = vsyncpa %s5764, 1
    %5766 = vsyncpa [#allocation6], 1
    %5767 = vsyncpa [#allocation4], 1
    %s5768 = scalar_lea.sflag [#allocation4], 1
    %5769 = vsyncpa %s5768, 1

</llo_original>
